<compile_context>
chip_gen: v7x
topology: tpu7x:2x2x1
jax: 0.10.0
libtpu: 0.0.40
codegen_flags: <defaults>
</compile_context>

<pallas_src>
import jax
import jax.numpy as jnp
from jax import lax
from jax.experimental import pallas as pl
from jax.experimental.pallas import tpu as pltpu

BN_EPS = 1e-5      # nn.BatchNorm2d default eps
NORM_EPS = 1e-12   # F.normalize default eps
TEM = 0.1          # temperature


# ------------------------------ fused kernel -------------------------------- #
def _fused_kernel(x_ref, w1_ref, gamma_ref, beta_ref, w2_ref, b2_ref,
                  mask_ref, pos_ref, neg_ref, o_ref, col1_ref, col2_ref):
    B, H, W, Cin = x_ref.shape
    Mid = w1_ref.shape[-1]
    N = B * H * W

    def im2col(src, dst_ref, c):
        # Zero once (covers the implicit 1-pixel halo of every tap), then store the
        # valid sub-window of each of the 9 taps at its own lane block.
        dst_ref[...] = jnp.zeros(dst_ref.shape, dst_ref.dtype)
        for dy in range(3):
            oy = max(0, 1 - dy)
            ly = H - abs(dy - 1)
            iy = oy + dy - 1
            for dx in range(3):
                ox = max(0, 1 - dx)
                lx = W - abs(dx - 1)
                ix = ox + dx - 1
                t = dy * 3 + dx
                dst_ref[:, oy:oy + ly, ox:ox + lx, t * c:(t + 1) * c] = \
                    src[:, iy:iy + ly, ix:ix + lx, :]

    # ---- conv1: 3x3 / stride 1 / pad 1 as one (N, 9*Cin) @ (9*Cin, Mid) bf16 matmul ----
    im2col(x_ref, col1_ref, Cin)
    acc1 = jnp.dot(col1_ref[...].reshape(N, 9 * Cin), w1_ref[...],
                   preferred_element_type=jnp.float32)                    # (N, Mid) f32
    # conv1 bias intentionally omitted: it is exactly cancelled by the BN mean subtraction.

    # ---- BatchNorm2d (training-mode batch stats, biased var) + ReLU, fused scale/shift ----
    mean = jnp.mean(acc1, axis=0, keepdims=True)                          # (1, Mid)
    var = jnp.mean((acc1 - mean) ** 2, axis=0, keepdims=True)             # (1, Mid)
    scale = gamma_ref[...] * lax.rsqrt(var + BN_EPS)                      # (1, Mid)
    shift = beta_ref[...] - mean * scale                                  # (1, Mid)
    y = jnp.maximum(acc1 * scale + shift, 0.0)                            # (N, Mid) f32
    y4 = y.astype(jnp.bfloat16).reshape(B, H, W, Mid)

    # ---- foreground mean pushed through the linear conv2 -----------------------------
    # mean_fg(conv2(y)) = (mean_fg over im2col(y) rows) @ W2 + b2
    im2col(y4, col2_ref, Mid)
    m_f = (mask_ref[...] > 0.5).astype(jnp.float32)                       # (1, N) lane-dense
    cnt = jnp.sum(m_f, axis=1, keepdims=True)                             # (1, 1)
    # NOTE: cnt == 0 (no foreground) -> 0/0 NaN propagates, matching the torch NaN return.
    fg_row = jnp.dot(m_f.astype(jnp.bfloat16),                            # (1, 9*Mid) f32
                     col2_ref[...].reshape(N, 9 * Mid),
                     preferred_element_type=jnp.float32)
    fg_mean = jnp.dot(fg_row, w2_ref[...],                                # tiny f32 matvec
                      preferred_element_type=jnp.float32) / cnt + b2_ref[...]   # (1, Cin)

    # ---- contrastive loss (all f32) ----
    proto = fg_mean / jnp.maximum(
        jnp.sqrt(jnp.sum(fg_mean * fg_mean, axis=1, keepdims=True)), NORM_EPS)

    pos = pos_ref[...]
    neg = neg_ref[...]
    pos_n = pos / jnp.maximum(jnp.sqrt(jnp.sum(pos * pos, axis=1, keepdims=True)), NORM_EPS)
    neg_n = neg / jnp.maximum(jnp.sqrt(jnp.sum(neg * neg, axis=1, keepdims=True)), NORM_EPS)

    pos_sim = jnp.sum(pos_n * proto, axis=1, keepdims=True)               # (Np, 1)
    neg_sim = jnp.sum(neg_n * proto, axis=1, keepdims=True)               # (Nn, 1)

    p = jnp.mean(pos_sim, axis=0, keepdims=True) / TEM                    # (1, 1)
    nv = neg_sim / TEM                                                    # (Nn, 1)

    # cross_entropy(sim, label=0, reduction='sum') / sim.shape[0]  (shape[0] == 1)
    mx = jnp.maximum(p, jnp.max(nv, axis=0, keepdims=True))
    lse = mx + jnp.log(jnp.exp(p - mx) + jnp.sum(jnp.exp(nv - mx), axis=0, keepdims=True))
    o_ref[...] = lse - p


def _full_spec(shape):
    nd = len(shape)
    return pl.BlockSpec(shape, lambda i, _nd=nd: (0,) * _nd)


def fused_contrastive_loss(x_nhwc_bf16, w1r, gamma, beta, w2r, b2, mask_row, pos, neg):
    B, H, W, Cin = x_nhwc_bf16.shape
    Mid = w1r.shape[-1]

    out = pl.pallas_call(
        _fused_kernel,
        out_shape=jax.ShapeDtypeStruct((1, 1), jnp.float32),
        grid=(1,),
        in_specs=[_full_spec(x_nhwc_bf16.shape), _full_spec(w1r.shape),
                  _full_spec(gamma.shape), _full_spec(beta.shape),
                  _full_spec(w2r.shape), _full_spec(b2.shape),
                  _full_spec(mask_row.shape), _full_spec(pos.shape), _full_spec(neg.shape)],
        out_specs=_full_spec((1, 1)),
        scratch_shapes=[pltpu.VMEM((B, H, W, 9 * Cin), jnp.bfloat16),   # conv1 im2col slab
                        pltpu.VMEM((B, H, W, 9 * Mid), jnp.bfloat16)],  # conv2 im2col slab
        compiler_params=pltpu.CompilerParams(dimension_semantics=("arbitrary",)),
    )(x_nhwc_bf16, w1r, gamma, beta, w2r, b2, mask_row, pos, neg)
    return out[0, 0]


# ------------------------------------ glue ---------------------------------- #
def adaptive_avg_pool(label, out_hw):
    # F.adaptive_avg_pool2d equivalent for integer down-sampling ratios.
    # TODO(synk): general (non-divisible) adaptive pooling not implemented.
    B, H0, W0 = label.shape
    h, w = out_hw
    return label.reshape(B, h, H0 // h, w, W0 // w).mean(axis=(2, 4))


def contrastive_loss_module(out_nchw, pseudo_label, image_prototype, params):
    # forward() of the PyTorch module for the projector matching out's channel count.
    w1, b1, gamma, beta, w2, b2 = params          # b1 unused: cancelled by training-mode BN
    del b1
    x = jnp.transpose(out_nchw, (0, 2, 3, 1)).astype(jnp.bfloat16)       # NHWC, MXU operand dtype
    B, H, W, Cin = x.shape
    Mid = w1.shape[-1]

    w1r = w1.astype(jnp.bfloat16).reshape(9 * Cin, Mid)                  # (kh*kw*Cin, Mid) bf16
    w2r = w2.astype(jnp.float32).reshape(9 * Mid, Cin)                   # tiny matvec -> keep f32
    pooled = adaptive_avg_pool(pseudo_label.astype(jnp.float32), (H, W))
    mask_row = pooled.reshape(1, B * H * W)                              # lane-dense mask

    return fused_contrastive_loss(
        x, w1r, gamma.astype(jnp.float32), beta.astype(jnp.float32), w2r,
        b2.astype(jnp.float32), mask_row,
        image_prototype[0].astype(jnp.float32), image_prototype[1].astype(jnp.float32))


# -------------------------- pure-JAX reference check ------------------------ #
def _reference(out_nchw, pseudo_label, image_prototype, params):
    # Mirrors the module; conv1 operands and the conv2 input rounded to bf16 (as the
    # kernel feeds the MXU), accumulation / BN / loss in f32, conv2 weights f32.
    # b1 is included here to verify its exact cancellation by training-mode BN.
    x = jnp.transpose(out_nchw, (0, 2, 3, 1)).astype(jnp.float32)
    w1, b1, g, bt, w2, b2 = params
    dn = ('NHWC', 'HWIO', 'NHWC')
    rnd = lambda a: a.astype(jnp.bfloat16).astype(jnp.float32)

    y = lax.conv_general_dilated(rnd(x), rnd(w1), (1, 1), 'SAME', dimension_numbers=dn,
                                 precision=lax.Precision.HIGHEST) + b1.reshape(1, 1, 1, -1)
    m = y.mean(axis=(0, 1, 2), keepdims=True)
    v = ((y - m) ** 2).mean(axis=(0, 1, 2), keepdims=True)
    y = (y - m) / jnp.sqrt(v + BN_EPS) * g.reshape(1, 1, 1, -1) + bt.reshape(1, 1, 1, -1)
    y = jnp.maximum(y, 0.0)
    y = lax.conv_general_dilated(rnd(y), w2, (1, 1), 'SAME', dimension_numbers=dn,
                                 precision=lax.Precision.HIGHEST) + b2.reshape(1, 1, 1, -1)

    B, H, W, C = y.shape
    pooled = adaptive_avg_pool(pseudo_label.astype(jnp.float32), (H, W))
    mask = (pooled > 0.5).astype(jnp.float32).reshape(-1, 1)
    feat = y.reshape(-1, C)
    fg = jnp.sum(feat * mask, axis=0, keepdims=True) / jnp.sum(mask)

    def norm(a):
        return a / jnp.maximum(jnp.linalg.norm(a, axis=1, keepdims=True), NORM_EPS)

    proto = norm(fg)
    pos = norm(image_prototype[0].astype(jnp.float32))
    neg = norm(image_prototype[1].astype(jnp.float32))
    pos_sim = (proto @ pos.T).mean(axis=1, keepdims=True)
    neg_sim = proto @ neg.T
    sim = jnp.concatenate([pos_sim, neg_sim], axis=1) / TEM
    return (jax.nn.logsumexp(sim, axis=1) - sim[:, 0]).sum() / sim.shape[0]


# ------------------------------------ main ----------------------------------- #
if __name__ == "__main__":
    B, C, H, W = 2, 256, 8, 8           # C must be one of the module's filters -> Projector(256)
    Mid = C // 8
    Np = Nn = 8

    key = jax.random.PRNGKey(0)
    k = jax.random.split(key, 8)

    out_nchw = jax.random.normal(k[0], (B, C, H, W), jnp.float32)          # PyTorch NCHW input
    pseudo_label = (jax.random.uniform(k[1], (B, 16, 16)) > 0.45).astype(jnp.float32)
    image_prototype = jax.random.normal(k[2], (2, Np, C), jnp.float32)     # [pos, neg]

    # Deterministic projector parameters (Projector(in_dim=256)); BN affine at defaults.
    w1 = jax.random.normal(k[3], (3, 3, C, Mid), jnp.float32) * 0.02       # HWIO
    b1 = jax.random.normal(k[4], (1, Mid), jnp.float32) * 0.01
    gamma = jnp.ones((1, Mid), jnp.float32)
    beta = jnp.zeros((1, Mid), jnp.float32)
    w2 = jax.random.normal(k[5], (3, 3, Mid, C), jnp.float32) * 0.02       # HWIO
    b2 = jax.random.normal(k[6], (1, C), jnp.float32) * 0.01
    params = (w1, b1, gamma, beta, w2, b2)

    loss_fn = jax.jit(contrastive_loss_module)
    loss = jax.block_until_ready(loss_fn(out_nchw, pseudo_label, image_prototype, params))

    ref = jax.block_until_ready(_reference(out_nchw, pseudo_label, image_prototype, params))
    assert bool(jnp.isfinite(loss)), f"loss not finite: {loss}"
    assert bool(jnp.allclose(loss, ref, rtol=2e-3, atol=2e-3)), (float(loss), float(ref))

    print("KERNEL_OK")
</pallas_src>

<mosaic_0001>
module attributes {stable_mosaic.version = 11 : i64} {
  func.func @_fused_kernel(%arg0: i32, %arg1: memref<2x8x8x256xbf16, #tpu.memory_space<vmem>>, %arg2: memref<2304x32xbf16, #tpu.memory_space<vmem>>, %arg3: memref<1x32xf32, #tpu.memory_space<vmem>>, %arg4: memref<1x32xf32, #tpu.memory_space<vmem>>, %arg5: memref<288x256xf32, #tpu.memory_space<vmem>>, %arg6: memref<1x256xf32, #tpu.memory_space<vmem>>, %arg7: memref<1x128xf32, #tpu.memory_space<vmem>>, %arg8: memref<8x256xf32, #tpu.memory_space<vmem>>, %arg9: memref<8x256xf32, #tpu.memory_space<vmem>>, %arg10: memref<1x1xf32, #tpu.memory_space<vmem>>, %arg11: memref<2x8x8x2304xbf16, #tpu.memory_space<vmem>>, %arg12: memref<2x8x8x288xbf16, #tpu.memory_space<vmem>>) attributes {dimension_semantics = [#tpu.dimension_semantics<arbitrary>], iteration_bounds = array<i64: 1>, scalar_prefetch = 0 : i64, scratch_operands = 2 : i64, tpu.core_type = #tpu.core_type<tc>, window_params = [{pipeline_mode = #tpu.pipeline_mode<synchronous>, transform_indices = @transform_0, window_bounds = array<i64: 2, 8, 8, 256>}, {pipeline_mode = #tpu.pipeline_mode<synchronous>, transform_indices = @transform_1, window_bounds = array<i64: 2304, 32>}, {pipeline_mode = #tpu.pipeline_mode<synchronous>, transform_indices = @transform_2, window_bounds = array<i64: 1, 32>}, {pipeline_mode = #tpu.pipeline_mode<synchronous>, transform_indices = @transform_3, window_bounds = array<i64: 1, 32>}, {pipeline_mode = #tpu.pipeline_mode<synchronous>, transform_indices = @transform_4, window_bounds = array<i64: 288, 256>}, {pipeline_mode = #tpu.pipeline_mode<synchronous>, transform_indices = @transform_5, window_bounds = array<i64: 1, 256>}, {pipeline_mode = #tpu.pipeline_mode<synchronous>, transform_indices = @transform_6, window_bounds = array<i64: 1, 128>}, {pipeline_mode = #tpu.pipeline_mode<synchronous>, transform_indices = @transform_7, window_bounds = array<i64: 8, 256>}, {pipeline_mode = #tpu.pipeline_mode<synchronous>, transform_indices = @transform_8, window_bounds = array<i64: 8, 256>}, {pipeline_mode = #tpu.pipeline_mode<synchronous>, transform_indices = @transform_9, window_bounds = array<i64: 1, 1>}]} {
    %cst = arith.constant 0.000000e+00 : bf16
    %0 = vector.broadcast %cst : bf16 to vector<2x8x8x2304xbf16>
    %c0 = arith.constant 0 : index
    %c0_0 = arith.constant 0 : index
    %c0_1 = arith.constant 0 : index
    %c0_2 = arith.constant 0 : index
    %1 = vector.load %arg11[%c0, %c0_0, %c0_1, %c0_2] : memref<2x8x8x2304xbf16, #tpu.memory_space<vmem>>, vector<2x8x8x2304xbf16>
    tpu.vector_store %arg11[%c0, %c0_0, %c0_1, %c0_2], %0 {strides = array<i32>} : memref<2x8x8x2304xbf16, #tpu.memory_space<vmem>>, vector<2x8x8x2304xbf16>,
    %c0_3 = arith.constant 0 : index
    %c0_4 = arith.constant 0 : index
    %c0_5 = arith.constant 0 : index
    %c0_6 = arith.constant 0 : index
    %2 = vector.load %arg1[%c0_3, %c0_4, %c0_5, %c0_6] : memref<2x8x8x256xbf16, #tpu.memory_space<vmem>>, vector<2x7x7x256xbf16>
    %c0_7 = arith.constant 0 : index
    %c1 = arith.constant 1 : index
    %c1_8 = arith.constant 1 : index
    %c0_9 = arith.constant 0 : index
    %3 = vector.load %arg11[%c0_7, %c1, %c1_8, %c0_9] : memref<2x8x8x2304xbf16, #tpu.memory_space<vmem>>, vector<2x7x7x256xbf16>
    tpu.vector_store %arg11[%c0_7, %c1, %c1_8, %c0_9], %2 {strides = array<i32>} : memref<2x8x8x2304xbf16, #tpu.memory_space<vmem>>, vector<2x7x7x256xbf16>,
    %c0_10 = arith.constant 0 : index
    %c0_11 = arith.constant 0 : index
    %c0_12 = arith.constant 0 : index
    %c0_13 = arith.constant 0 : index
    %4 = vector.load %arg1[%c0_10, %c0_11, %c0_12, %c0_13] : memref<2x8x8x256xbf16, #tpu.memory_space<vmem>>, vector<2x7x8x256xbf16>
    %c0_14 = arith.constant 0 : index
    %c1_15 = arith.constant 1 : index
    %c0_16 = arith.constant 0 : index
    %c256 = arith.constant 256 : index
    %5 = vector.load %arg11[%c0_14, %c1_15, %c0_16, %c256] : memref<2x8x8x2304xbf16, #tpu.memory_space<vmem>>, vector<2x7x8x256xbf16>
    tpu.vector_store %arg11[%c0_14, %c1_15, %c0_16, %c256], %4 {strides = array<i32>} : memref<2x8x8x2304xbf16, #tpu.memory_space<vmem>>, vector<2x7x8x256xbf16>,
    %c0_17 = arith.constant 0 : index
    %c0_18 = arith.constant 0 : index
    %c1_19 = arith.constant 1 : index
    %c0_20 = arith.constant 0 : index
    %6 = vector.load %arg1[%c0_17, %c0_18, %c1_19, %c0_20] : memref<2x8x8x256xbf16, #tpu.memory_space<vmem>>, vector<2x7x7x256xbf16>
    %c0_21 = arith.constant 0 : index
    %c1_22 = arith.constant 1 : index
    %c0_23 = arith.constant 0 : index
    %c512 = arith.constant 512 : index
    %7 = vector.load %arg11[%c0_21, %c1_22, %c0_23, %c512] : memref<2x8x8x2304xbf16, #tpu.memory_space<vmem>>, vector<2x7x7x256xbf16>
    tpu.vector_store %arg11[%c0_21, %c1_22, %c0_23, %c512], %6 {strides = array<i32>} : memref<2x8x8x2304xbf16, #tpu.memory_space<vmem>>, vector<2x7x7x256xbf16>,
    %c0_24 = arith.constant 0 : index
    %c0_25 = arith.constant 0 : index
    %c0_26 = arith.constant 0 : index
    %c0_27 = arith.constant 0 : index
    %8 = vector.load %arg1[%c0_24, %c0_25, %c0_26, %c0_27] : memref<2x8x8x256xbf16, #tpu.memory_space<vmem>>, vector<2x8x7x256xbf16>
    %c0_28 = arith.constant 0 : index
    %c0_29 = arith.constant 0 : index
    %c1_30 = arith.constant 1 : index
    %c768 = arith.constant 768 : index
    %9 = vector.load %arg11[%c0_28, %c0_29, %c1_30, %c768] : memref<2x8x8x2304xbf16, #tpu.memory_space<vmem>>, vector<2x8x7x256xbf16>
    tpu.vector_store %arg11[%c0_28, %c0_29, %c1_30, %c768], %8 {strides = array<i32>} : memref<2x8x8x2304xbf16, #tpu.memory_space<vmem>>, vector<2x8x7x256xbf16>,
    %c0_31 = arith.constant 0 : index
    %c0_32 = arith.constant 0 : index
    %c0_33 = arith.constant 0 : index
    %c0_34 = arith.constant 0 : index
    %10 = vector.load %arg1[%c0_31, %c0_32, %c0_33, %c0_34] : memref<2x8x8x256xbf16, #tpu.memory_space<vmem>>, vector<2x8x8x256xbf16>
    %c0_35 = arith.constant 0 : index
    %c0_36 = arith.constant 0 : index
    %c0_37 = arith.constant 0 : index
    %c1024 = arith.constant 1024 : index
    %11 = vector.load %arg11[%c0_35, %c0_36, %c0_37, %c1024] : memref<2x8x8x2304xbf16, #tpu.memory_space<vmem>>, vector<2x8x8x256xbf16>
    tpu.vector_store %arg11[%c0_35, %c0_36, %c0_37, %c1024], %10 {strides = array<i32>} : memref<2x8x8x2304xbf16, #tpu.memory_space<vmem>>, vector<2x8x8x256xbf16>,
    %c0_38 = arith.constant 0 : index
    %c0_39 = arith.constant 0 : index
    %c1_40 = arith.constant 1 : index
    %c0_41 = arith.constant 0 : index
    %12 = vector.load %arg1[%c0_38, %c0_39, %c1_40, %c0_41] : memref<2x8x8x256xbf16, #tpu.memory_space<vmem>>, vector<2x8x7x256xbf16>
    %c0_42 = arith.constant 0 : index
    %c0_43 = arith.constant 0 : index
    %c0_44 = arith.constant 0 : index
    %c1280 = arith.constant 1280 : index
    %13 = vector.load %arg11[%c0_42, %c0_43, %c0_44, %c1280] : memref<2x8x8x2304xbf16, #tpu.memory_space<vmem>>, vector<2x8x7x256xbf16>
    tpu.vector_store %arg11[%c0_42, %c0_43, %c0_44, %c1280], %12 {strides = array<i32>} : memref<2x8x8x2304xbf16, #tpu.memory_space<vmem>>, vector<2x8x7x256xbf16>,
    %c0_45 = arith.constant 0 : index
    %c1_46 = arith.constant 1 : index
    %c0_47 = arith.constant 0 : index
    %c0_48 = arith.constant 0 : index
    %14 = vector.load %arg1[%c0_45, %c1_46, %c0_47, %c0_48] : memref<2x8x8x256xbf16, #tpu.memory_space<vmem>>, vector<2x7x7x256xbf16>
    %c0_49 = arith.constant 0 : index
    %c0_50 = arith.constant 0 : index
    %c1_51 = arith.constant 1 : index
    %c1536 = arith.constant 1536 : index
    %15 = vector.load %arg11[%c0_49, %c0_50, %c1_51, %c1536] : memref<2x8x8x2304xbf16, #tpu.memory_space<vmem>>, vector<2x7x7x256xbf16>
    tpu.vector_store %arg11[%c0_49, %c0_50, %c1_51, %c1536], %14 {strides = array<i32>} : memref<2x8x8x2304xbf16, #tpu.memory_space<vmem>>, vector<2x7x7x256xbf16>,
    %c0_52 = arith.constant 0 : index
    %c1_53 = arith.constant 1 : index
    %c0_54 = arith.constant 0 : index
    %c0_55 = arith.constant 0 : index
    %16 = vector.load %arg1[%c0_52, %c1_53, %c0_54, %c0_55] : memref<2x8x8x256xbf16, #tpu.memory_space<vmem>>, vector<2x7x8x256xbf16>
    %c0_56 = arith.constant 0 : index
    %c0_57 = arith.constant 0 : index
    %c0_58 = arith.constant 0 : index
    %c1792 = arith.constant 1792 : index
    %17 = vector.load %arg11[%c0_56, %c0_57, %c0_58, %c1792] : memref<2x8x8x2304xbf16, #tpu.memory_space<vmem>>, vector<2x7x8x256xbf16>
    tpu.vector_store %arg11[%c0_56, %c0_57, %c0_58, %c1792], %16 {strides = array<i32>} : memref<2x8x8x2304xbf16, #tpu.memory_space<vmem>>, vector<2x7x8x256xbf16>,
    %c0_59 = arith.constant 0 : index
    %c1_60 = arith.constant 1 : index
    %c1_61 = arith.constant 1 : index
    %c0_62 = arith.constant 0 : index
    %18 = vector.load %arg1[%c0_59, %c1_60, %c1_61, %c0_62] : memref<2x8x8x256xbf16, #tpu.memory_space<vmem>>, vector<2x7x7x256xbf16>
    %c0_63 = arith.constant 0 : index
    %c0_64 = arith.constant 0 : index
    %c0_65 = arith.constant 0 : index
    %c2048 = arith.constant 2048 : index
    %19 = vector.load %arg11[%c0_63, %c0_64, %c0_65, %c2048] : memref<2x8x8x2304xbf16, #tpu.memory_space<vmem>>, vector<2x7x7x256xbf16>
    tpu.vector_store %arg11[%c0_63, %c0_64, %c0_65, %c2048], %18 {strides = array<i32>} : memref<2x8x8x2304xbf16, #tpu.memory_space<vmem>>, vector<2x7x7x256xbf16>,
    %c0_66 = arith.constant 0 : index
    %c0_67 = arith.constant 0 : index
    %c0_68 = arith.constant 0 : index
    %c0_69 = arith.constant 0 : index
    %20 = vector.load %arg11[%c0_66, %c0_67, %c0_68, %c0_69] : memref<2x8x8x2304xbf16, #tpu.memory_space<vmem>>, vector<2x8x8x2304xbf16>
    %21 = vector.shape_cast %20 : vector<2x8x8x2304xbf16> to vector<128x2304xbf16>
    %c0_70 = arith.constant 0 : index
    %c0_71 = arith.constant 0 : index
    %22 = vector.load %arg2[%c0_70, %c0_71] : memref<2304x32xbf16, #tpu.memory_space<vmem>>, vector<2304x32xbf16>
    %cst_72 = arith.constant dense<0.000000e+00> : vector<128x32xf32>
    %23 = tpu.matmul %21, %22, %cst_72 {dimension_numbers = #tpu.dot_dimension_numbers<[1], [0], [0], [1], [0, 0, 1, 1], [], []>} : vector<128x2304xbf16>, vector<2304x32xbf16>, vector<128x32xf32> -> vector<128x32xf32>
    %cst_73 = arith.constant dense<0.000000e+00> : vector<32xf32>
    %24 = vector.multi_reduction <add>, %23, %cst_73 [0] : vector<128x32xf32> to vector<32xf32>
    %25 = vector.shape_cast %24 : vector<32xf32> to vector<1x32xf32>
    %cst_74 = arith.constant 1.280000e+02 : f32
    %26 = vector.broadcast %cst_74 : f32 to vector<1x32xf32>
    %27 = arith.divf %25, %26 : vector<1x32xf32>
    %28 = vector.broadcast %27 : vector<1x32xf32> to vector<128x32xf32>
    %29 = arith.subf %23, %28 : vector<128x32xf32>
    %30 = arith.mulf %29, %29 : vector<128x32xf32>
    %cst_75 = arith.constant dense<0.000000e+00> : vector<32xf32>
    %31 = vector.multi_reduction <add>, %30, %cst_75 [0] : vector<128x32xf32> to vector<32xf32>
    %32 = vector.shape_cast %31 : vector<32xf32> to vector<1x32xf32>
    %cst_76 = arith.constant 1.280000e+02 : f32
    %33 = vector.broadcast %cst_76 : f32 to vector<1x32xf32>
    %34 = arith.divf %32, %33 : vector<1x32xf32>
    %c0_77 = arith.constant 0 : index
    %c0_78 = arith.constant 0 : index
    %35 = vector.load %arg3[%c0_77, %c0_78] : memref<1x32xf32, #tpu.memory_space<vmem>>, vector<1x32xf32>
    %cst_79 = arith.constant 9.99999974E-6 : f32
    %36 = vector.broadcast %cst_79 : f32 to vector<1x32xf32>
    %37 = arith.addf %34, %36 : vector<1x32xf32>
    %38 = math.rsqrt %37 : vector<1x32xf32>
    %39 = arith.mulf %35, %38 : vector<1x32xf32>
    %c0_80 = arith.constant 0 : index
    %c0_81 = arith.constant 0 : index
    %40 = vector.load %arg4[%c0_80, %c0_81] : memref<1x32xf32, #tpu.memory_space<vmem>>, vector<1x32xf32>
    %41 = arith.mulf %27, %39 : vector<1x32xf32>
    %42 = arith.subf %40, %41 : vector<1x32xf32>
    %43 = vector.broadcast %39 : vector<1x32xf32> to vector<128x32xf32>
    %44 = arith.mulf %23, %43 : vector<128x32xf32>
    %45 = vector.broadcast %42 : vector<1x32xf32> to vector<128x32xf32>
    %46 = arith.addf %44, %45 : vector<128x32xf32>
    %cst_82 = arith.constant 0.000000e+00 : f32
    %47 = vector.broadcast %cst_82 : f32 to vector<128x32xf32>
    %48 = arith.maximumf %46, %47 : vector<128x32xf32>
    %49 = arith.truncf %48 : vector<128x32xf32> to vector<128x32xbf16>
    %50 = vector.shape_cast %49 : vector<128x32xbf16> to vector<2x8x8x32xbf16>
    %cst_83 = arith.constant 0.000000e+00 : bf16
    %51 = vector.broadcast %cst_83 : bf16 to vector<2x8x8x288xbf16>
    %c0_84 = arith.constant 0 : index
    %c0_85 = arith.constant 0 : index
    %c0_86 = arith.constant 0 : index
    %c0_87 = arith.constant 0 : index
    %52 = vector.load %arg12[%c0_84, %c0_85, %c0_86, %c0_87] : memref<2x8x8x288xbf16, #tpu.memory_space<vmem>>, vector<2x8x8x288xbf16>
    tpu.vector_store %arg12[%c0_84, %c0_85, %c0_86, %c0_87], %51 {strides = array<i32>} : memref<2x8x8x288xbf16, #tpu.memory_space<vmem>>, vector<2x8x8x288xbf16>,
    %53 = vector.extract_strided_slice %50 {offsets = [0, 0, 0, 0], sizes = [2, 7, 7, 32], strides = [1, 1, 1, 1]} : vector<2x8x8x32xbf16> to vector<2x7x7x32xbf16>
    %c0_88 = arith.constant 0 : index
    %c1_89 = arith.constant 1 : index
    %c1_90 = arith.constant 1 : index
    %c0_91 = arith.constant 0 : index
    %54 = vector.load %arg12[%c0_88, %c1_89, %c1_90, %c0_91] : memref<2x8x8x288xbf16, #tpu.memory_space<vmem>>, vector<2x7x7x32xbf16>
    tpu.vector_store %arg12[%c0_88, %c1_89, %c1_90, %c0_91], %53 {strides = array<i32>} : memref<2x8x8x288xbf16, #tpu.memory_space<vmem>>, vector<2x7x7x32xbf16>,
    %55 = vector.extract_strided_slice %50 {offsets = [0, 0, 0, 0], sizes = [2, 7, 8, 32], strides = [1, 1, 1, 1]} : vector<2x8x8x32xbf16> to vector<2x7x8x32xbf16>
    %c0_92 = arith.constant 0 : index
    %c1_93 = arith.constant 1 : index
    %c0_94 = arith.constant 0 : index
    %c32 = arith.constant 32 : index
    %56 = vector.load %arg12[%c0_92, %c1_93, %c0_94, %c32] : memref<2x8x8x288xbf16, #tpu.memory_space<vmem>>, vector<2x7x8x32xbf16>
    tpu.vector_store %arg12[%c0_92, %c1_93, %c0_94, %c32], %55 {strides = array<i32>} : memref<2x8x8x288xbf16, #tpu.memory_space<vmem>>, vector<2x7x8x32xbf16>,
    %57 = vector.extract_strided_slice %50 {offsets = [0, 0, 1, 0], sizes = [2, 7, 7, 32], strides = [1, 1, 1, 1]} : vector<2x8x8x32xbf16> to vector<2x7x7x32xbf16>
    %c0_95 = arith.constant 0 : index
    %c1_96 = arith.constant 1 : index
    %c0_97 = arith.constant 0 : index
    %c64 = arith.constant 64 : index
    %58 = vector.load %arg12[%c0_95, %c1_96, %c0_97, %c64] : memref<2x8x8x288xbf16, #tpu.memory_space<vmem>>, vector<2x7x7x32xbf16>
    tpu.vector_store %arg12[%c0_95, %c1_96, %c0_97, %c64], %57 {strides = array<i32>} : memref<2x8x8x288xbf16, #tpu.memory_space<vmem>>, vector<2x7x7x32xbf16>,
    %59 = vector.extract_strided_slice %50 {offsets = [0, 0, 0, 0], sizes = [2, 8, 7, 32], strides = [1, 1, 1, 1]} : vector<2x8x8x32xbf16> to vector<2x8x7x32xbf16>
    %c0_98 = arith.constant 0 : index
    %c0_99 = arith.constant 0 : index
    %c1_100 = arith.constant 1 : index
    %c96 = arith.constant 96 : index
    %60 = vector.load %arg12[%c0_98, %c0_99, %c1_100, %c96] : memref<2x8x8x288xbf16, #tpu.memory_space<vmem>>, vector<2x8x7x32xbf16>
    tpu.vector_store %arg12[%c0_98, %c0_99, %c1_100, %c96], %59 {strides = array<i32>} : memref<2x8x8x288xbf16, #tpu.memory_space<vmem>>, vector<2x8x7x32xbf16>,
    %c0_101 = arith.constant 0 : index
    %c0_102 = arith.constant 0 : index
    %c0_103 = arith.constant 0 : index
    %c128 = arith.constant 128 : index
    %61 = vector.load %arg12[%c0_101, %c0_102, %c0_103, %c128] : memref<2x8x8x288xbf16, #tpu.memory_space<vmem>>, vector<2x8x8x32xbf16>
    tpu.vector_store %arg12[%c0_101, %c0_102, %c0_103, %c128], %50 {strides = array<i32>} : memref<2x8x8x288xbf16, #tpu.memory_space<vmem>>, vector<2x8x8x32xbf16>,
    %62 = vector.extract_strided_slice %50 {offsets = [0, 0, 1, 0], sizes = [2, 8, 7, 32], strides = [1, 1, 1, 1]} : vector<2x8x8x32xbf16> to vector<2x8x7x32xbf16>
    %c0_104 = arith.constant 0 : index
    %c0_105 = arith.constant 0 : index
    %c0_106 = arith.constant 0 : index
    %c160 = arith.constant 160 : index
    %63 = vector.load %arg12[%c0_104, %c0_105, %c0_106, %c160] : memref<2x8x8x288xbf16, #tpu.memory_space<vmem>>, vector<2x8x7x32xbf16>
    tpu.vector_store %arg12[%c0_104, %c0_105, %c0_106, %c160], %62 {strides = array<i32>} : memref<2x8x8x288xbf16, #tpu.memory_space<vmem>>, vector<2x8x7x32xbf16>,
    %64 = vector.extract_strided_slice %50 {offsets = [0, 1, 0, 0], sizes = [2, 7, 7, 32], strides = [1, 1, 1, 1]} : vector<2x8x8x32xbf16> to vector<2x7x7x32xbf16>
    %c0_107 = arith.constant 0 : index
    %c0_108 = arith.constant 0 : index
    %c1_109 = arith.constant 1 : index
    %c192 = arith.constant 192 : index
    %65 = vector.load %arg12[%c0_107, %c0_108, %c1_109, %c192] : memref<2x8x8x288xbf16, #tpu.memory_space<vmem>>, vector<2x7x7x32xbf16>
    tpu.vector_store %arg12[%c0_107, %c0_108, %c1_109, %c192], %64 {strides = array<i32>} : memref<2x8x8x288xbf16, #tpu.memory_space<vmem>>, vector<2x7x7x32xbf16>,
    %66 = vector.extract_strided_slice %50 {offsets = [0, 1, 0, 0], sizes = [2, 7, 8, 32], strides = [1, 1, 1, 1]} : vector<2x8x8x32xbf16> to vector<2x7x8x32xbf16>
    %c0_110 = arith.constant 0 : index
    %c0_111 = arith.constant 0 : index
    %c0_112 = arith.constant 0 : index
    %c224 = arith.constant 224 : index
    %67 = vector.load %arg12[%c0_110, %c0_111, %c0_112, %c224] : memref<2x8x8x288xbf16, #tpu.memory_space<vmem>>, vector<2x7x8x32xbf16>
    tpu.vector_store %arg12[%c0_110, %c0_111, %c0_112, %c224], %66 {strides = array<i32>} : memref<2x8x8x288xbf16, #tpu.memory_space<vmem>>, vector<2x7x8x32xbf16>,
    %68 = vector.extract_strided_slice %50 {offsets = [0, 1, 1, 0], sizes = [2, 7, 7, 32], strides = [1, 1, 1, 1]} : vector<2x8x8x32xbf16> to vector<2x7x7x32xbf16>
    %c0_113 = arith.constant 0 : index
    %c0_114 = arith.constant 0 : index
    %c0_115 = arith.constant 0 : index
    %c256_116 = arith.constant 256 : index
    %69 = vector.load %arg12[%c0_113, %c0_114, %c0_115, %c256_116] : memref<2x8x8x288xbf16, #tpu.memory_space<vmem>>, vector<2x7x7x32xbf16>
    tpu.vector_store %arg12[%c0_113, %c0_114, %c0_115, %c256_116], %68 {strides = array<i32>} : memref<2x8x8x288xbf16, #tpu.memory_space<vmem>>, vector<2x7x7x32xbf16>,
    %c0_117 = arith.constant 0 : index
    %c0_118 = arith.constant 0 : index
    %70 = vector.load %arg7[%c0_117, %c0_118] : memref<1x128xf32, #tpu.memory_space<vmem>>, vector<1x128xf32>
    %cst_119 = arith.constant 5.000000e-01 : f32
    %71 = vector.broadcast %cst_119 : f32 to vector<1x128xf32>
    %72 = arith.cmpf ogt, %70, %71 : vector<1x128xf32>
    %73 = arith.extui %72 : vector<1x128xi1> to vector<1x128xi32>
    %74 = arith.sitofp %73 : vector<1x128xi32> to vector<1x128xf32>
    %cst_120 = arith.constant dense<0.000000e+00> : vector<1xf32>
    %75 = vector.multi_reduction <add>, %74, %cst_120 [1] : vector<1x128xf32> to vector<1xf32>
    %76 = vector.shape_cast %75 : vector<1xf32> to vector<1x1xf32>
    %77 = arith.truncf %74 : vector<1x128xf32> to vector<1x128xbf16>
    %c0_121 = arith.constant 0 : index
    %c0_122 = arith.constant 0 : index
    %c0_123 = arith.constant 0 : index
    %c0_124 = arith.constant 0 : index
    %78 = vector.load %arg12[%c0_121, %c0_122, %c0_123, %c0_124] : memref<2x8x8x288xbf16, #tpu.memory_space<vmem>>, vector<2x8x8x288xbf16>
    %79 = vector.shape_cast %78 : vector<2x8x8x288xbf16> to vector<128x288xbf16>
    %cst_125 = arith.constant dense<0.000000e+00> : vector<1x288xf32>
    %80 = tpu.matmul %77, %79, %cst_125 {dimension_numbers = #tpu.dot_dimension_numbers<[1], [0], [0], [1], [0, 0, 1, 1], [], []>} : vector<1x128xbf16>, vector<128x288xbf16>, vector<1x288xf32> -> vector<1x288xf32>
    %c0_126 = arith.constant 0 : index
    %c0_127 = arith.constant 0 : index
    %81 = vector.load %arg5[%c0_126, %c0_127] : memref<288x256xf32, #tpu.memory_space<vmem>>, vector<288x256xf32>
    %cst_128 = arith.constant dense<0.000000e+00> : vector<1x256xf32>
    %82 = tpu.matmul %80, %81, %cst_128 {dimension_numbers = #tpu.dot_dimension_numbers<[1], [0], [0], [1], [0, 0, 1, 1], [], []>} : vector<1x288xf32>, vector<288x256xf32>, vector<1x256xf32> -> vector<1x256xf32>
    %83 = vector.broadcast %76 : vector<1x1xf32> to vector<1x256xf32>
    %84 = arith.divf %82, %83 : vector<1x256xf32>
    %c0_129 = arith.constant 0 : index
    %c0_130 = arith.constant 0 : index
    %85 = vector.load %arg6[%c0_129, %c0_130] : memref<1x256xf32, #tpu.memory_space<vmem>>, vector<1x256xf32>
    %86 = arith.addf %84, %85 : vector<1x256xf32>
    %87 = arith.mulf %86, %86 : vector<1x256xf32>
    %cst_131 = arith.constant dense<0.000000e+00> : vector<1xf32>
    %88 = vector.multi_reduction <add>, %87, %cst_131 [1] : vector<1x256xf32> to vector<1xf32>
    %89 = vector.shape_cast %88 : vector<1xf32> to vector<1x1xf32>
    %90 = math.sqrt %89 : vector<1x1xf32>
    %cst_132 = arith.constant 9.99999996E-13 : f32
    %91 = vector.broadcast %cst_132 : f32 to vector<1x1xf32>
    %92 = arith.maximumf %90, %91 : vector<1x1xf32>
    %93 = vector.broadcast %92 : vector<1x1xf32> to vector<1x256xf32>
    %94 = arith.divf %86, %93 : vector<1x256xf32>
    %c0_133 = arith.constant 0 : index
    %c0_134 = arith.constant 0 : index
    %95 = vector.load %arg8[%c0_133, %c0_134] : memref<8x256xf32, #tpu.memory_space<vmem>>, vector<8x256xf32>
    %c0_135 = arith.constant 0 : index
    %c0_136 = arith.constant 0 : index
    %96 = vector.load %arg9[%c0_135, %c0_136] : memref<8x256xf32, #tpu.memory_space<vmem>>, vector<8x256xf32>
    %97 = arith.mulf %95, %95 : vector<8x256xf32>
    %cst_137 = arith.constant dense<0.000000e+00> : vector<8xf32>
    %98 = vector.multi_reduction <add>, %97, %cst_137 [1] : vector<8x256xf32> to vector<8xf32>
    %99 = vector.shape_cast %98 : vector<8xf32> to vector<8x1xf32>
    %100 = math.sqrt %99 : vector<8x1xf32>
    %cst_138 = arith.constant 9.99999996E-13 : f32
    %101 = vector.broadcast %cst_138 : f32 to vector<8x1xf32>
    %102 = arith.maximumf %100, %101 : vector<8x1xf32>
    %103 = vector.broadcast %102 : vector<8x1xf32> to vector<8x256xf32>
    %104 = arith.divf %95, %103 : vector<8x256xf32>
    %105 = arith.mulf %96, %96 : vector<8x256xf32>
    %cst_139 = arith.constant dense<0.000000e+00> : vector<8xf32>
    %106 = vector.multi_reduction <add>, %105, %cst_139 [1] : vector<8x256xf32> to vector<8xf32>
    %107 = vector.shape_cast %106 : vector<8xf32> to vector<8x1xf32>
    %108 = math.sqrt %107 : vector<8x1xf32>
    %cst_140 = arith.constant 9.99999996E-13 : f32
    %109 = vector.broadcast %cst_140 : f32 to vector<8x1xf32>
    %110 = arith.maximumf %108, %109 : vector<8x1xf32>
    %111 = vector.broadcast %110 : vector<8x1xf32> to vector<8x256xf32>
    %112 = arith.divf %96, %111 : vector<8x256xf32>
    %113 = vector.broadcast %94 : vector<1x256xf32> to vector<8x256xf32>
    %114 = arith.mulf %104, %113 : vector<8x256xf32>
    %cst_141 = arith.constant dense<0.000000e+00> : vector<8xf32>
    %115 = vector.multi_reduction <add>, %114, %cst_141 [1] : vector<8x256xf32> to vector<8xf32>
    %116 = vector.shape_cast %115 : vector<8xf32> to vector<8x1xf32>
    %117 = vector.broadcast %94 : vector<1x256xf32> to vector<8x256xf32>
    %118 = arith.mulf %112, %117 : vector<8x256xf32>
    %cst_142 = arith.constant dense<0.000000e+00> : vector<8xf32>
    %119 = vector.multi_reduction <add>, %118, %cst_142 [1] : vector<8x256xf32> to vector<8xf32>
    %120 = vector.shape_cast %119 : vector<8xf32> to vector<8x1xf32>
    %cst_143 = arith.constant dense<0.000000e+00> : vector<1xf32>
    %121 = vector.multi_reduction <add>, %116, %cst_143 [0] : vector<8x1xf32> to vector<1xf32>
    %122 = vector.shape_cast %121 : vector<1xf32> to vector<1x1xf32>
    %cst_144 = arith.constant 8.000000e+00 : f32
    %123 = vector.broadcast %cst_144 : f32 to vector<1x1xf32>
    %124 = arith.divf %122, %123 : vector<1x1xf32>
    %cst_145 = arith.constant 1.000000e-01 : f32
    %125 = vector.broadcast %cst_145 : f32 to vector<1x1xf32>
    %126 = arith.divf %124, %125 : vector<1x1xf32>
    %cst_146 = arith.constant 1.000000e-01 : f32
    %127 = vector.broadcast %cst_146 : f32 to vector<8x1xf32>
    %128 = arith.divf %120, %127 : vector<8x1xf32>
    %cst_147 = arith.constant dense<0xFF800000> : vector<1xf32>
    %129 = vector.multi_reduction <maximumf>, %128, %cst_147 [0] : vector<8x1xf32> to vector<1xf32>
    %130 = vector.shape_cast %129 : vector<1xf32> to vector<1x1xf32>
    %131 = arith.maximumf %126, %130 : vector<1x1xf32>
    %132 = arith.subf %126, %131 : vector<1x1xf32>
    %133 = math.exp %132 : vector<1x1xf32>
    %134 = vector.broadcast %131 : vector<1x1xf32> to vector<8x1xf32>
    %135 = arith.subf %128, %134 : vector<8x1xf32>
    %136 = math.exp %135 : vector<8x1xf32>
    %cst_148 = arith.constant dense<0.000000e+00> : vector<1xf32>
    %137 = vector.multi_reduction <add>, %136, %cst_148 [0] : vector<8x1xf32> to vector<1xf32>
    %138 = vector.shape_cast %137 : vector<1xf32> to vector<1x1xf32>
    %139 = arith.addf %133, %138 : vector<1x1xf32>
    %140 = math.log %139 : vector<1x1xf32>
    %141 = arith.addf %131, %140 : vector<1x1xf32>
    %142 = arith.subf %141, %126 : vector<1x1xf32>
    %c0_149 = arith.constant 0 : index
    %c0_150 = arith.constant 0 : index
    %143 = vector.load %arg10[%c0_149, %c0_150] : memref<1x1xf32, #tpu.memory_space<vmem>>, vector<1x1xf32>
    tpu.vector_store %arg10[%c0_149, %c0_150], %142 {strides = array<i32>} : memref<1x1xf32, #tpu.memory_space<vmem>>, vector<1x1xf32>,
    return
  }
  func.func @transform_0(%arg0: i32) -> (i32, i32, i32, i32) {
    %c0_i32 = arith.constant 0 : i32
    %c0_i32_0 = arith.constant 0 : i32
    %c0_i32_1 = arith.constant 0 : i32
    %c0_i32_2 = arith.constant 0 : i32
    %c0_i32_3 = arith.constant 0 : i32
    return %c0_i32, %c0_i32_0, %c0_i32_1, %c0_i32_2 : i32, i32, i32, i32
  }
  func.func @transform_1(%arg0: i32) -> (i32, i32) {
    %c0_i32 = arith.constant 0 : i32
    %c0_i32_0 = arith.constant 0 : i32
    %c0_i32_1 = arith.constant 0 : i32
    return %c0_i32, %c0_i32_0 : i32, i32
  }
  func.func @transform_2(%arg0: i32) -> (i32, i32) {
    %c0_i32 = arith.constant 0 : i32
    %c0_i32_0 = arith.constant 0 : i32
    %c0_i32_1 = arith.constant 0 : i32
    return %c0_i32, %c0_i32_0 : i32, i32
  }
  func.func @transform_3(%arg0: i32) -> (i32, i32) {
    %c0_i32 = arith.constant 0 : i32
    %c0_i32_0 = arith.constant 0 : i32
    %c0_i32_1 = arith.constant 0 : i32
    return %c0_i32, %c0_i32_0 : i32, i32
  }
  func.func @transform_4(%arg0: i32) -> (i32, i32) {
    %c0_i32 = arith.constant 0 : i32
    %c0_i32_0 = arith.constant 0 : i32
    %c0_i32_1 = arith.constant 0 : i32
    return %c0_i32, %c0_i32_0 : i32, i32
  }
  func.func @transform_5(%arg0: i32) -> (i32, i32) {
    %c0_i32 = arith.constant 0 : i32
    %c0_i32_0 = arith.constant 0 : i32
    %c0_i32_1 = arith.constant 0 : i32
    return %c0_i32, %c0_i32_0 : i32, i32
  }
  func.func @transform_6(%arg0: i32) -> (i32, i32) {
    %c0_i32 = arith.constant 0 : i32
    %c0_i32_0 = arith.constant 0 : i32
    %c0_i32_1 = arith.constant 0 : i32
    return %c0_i32, %c0_i32_0 : i32, i32
  }
  func.func @transform_7(%arg0: i32) -> (i32, i32) {
    %c0_i32 = arith.constant 0 : i32
    %c0_i32_0 = arith.constant 0 : i32
    %c0_i32_1 = arith.constant 0 : i32
    return %c0_i32, %c0_i32_0 : i32, i32
  }
  func.func @transform_8(%arg0: i32) -> (i32, i32) {
    %c0_i32 = arith.constant 0 : i32
    %c0_i32_0 = arith.constant 0 : i32
    %c0_i32_1 = arith.constant 0 : i32
    return %c0_i32, %c0_i32_0 : i32, i32
  }
  func.func @transform_9(%arg0: i32) -> (i32, i32) {
    %c0_i32 = arith.constant 0 : i32
    %c0_i32_0 = arith.constant 0 : i32
    %c0_i32_1 = arith.constant 0 : i32
    return %c0_i32, %c0_i32_0 : i32, i32
  }
}

</mosaic_0001>

<llo_original>
// kernel: contrastive_loss_module.1
$region0: #{contrastive_loss_module.1}
  #allocation0 [shape = 'u32[]', space=smem, size = 0x4, offset = 0x4, fixed_abs, tag = 'smem constant byte address 0x4 - core index']
  #allocation1 [shape = 'u32[144,128]{1,0:T(1,128)}', space=vmem, size = 0x12000, scoped, tag = 'internal scratch']
  #allocation2 [shape = 'bf16[2,8,8,2304]{3,2,1,0:T(8,128)(2,1)}', space=vmem, size = 0x90000, scoped, tag = 'scratch operand']
  #allocation3 [shape = 'bf16[2,8,8,288]{3,2,1,0:T(8,128)(2,1)}', space=vmem, size = 0x18000, scoped, tag = 'scratch operand']
  %s0 = inlined_call_operand.vmem [shape: bf16[2,8,8,256], index: 0, kind: input, shape index: {}]
  %s1 = inlined_call_operand.vmem [shape: bf16[2304,32], index: 1, kind: input, shape index: {}]
  %s2 = inlined_call_operand.vmem [shape: f32[1,32], index: 2, kind: input, shape index: {}]
  %s3 = inlined_call_operand.vmem [shape: f32[1,32], index: 3, kind: input, shape index: {}]
  %s4 = inlined_call_operand.vmem [shape: f32[288,256], index: 4, kind: input, shape index: {}]
  %s5 = inlined_call_operand.vmem [shape: f32[1,256], index: 5, kind: input, shape index: {}]
  %s6 = inlined_call_operand.vmem [shape: f32[1,128], index: 6, kind: input, shape index: {}]
  %s7 = inlined_call_operand.vmem [shape: f32[8,256], index: 7, kind: input, shape index: {}]
  %s8 = inlined_call_operand.vmem [shape: f32[8,256], index: 8, kind: input, shape index: {}]
  %s9 = inlined_call_operand.hbm [shape: f32[1,1], index: 9, kind: output, shape index: {}]
  %s10 = sld [smem:[#allocation0]]
  $region46: #{contrastive_loss_module.1} parent=0
    _
  %s12 = ssub.s32 1, %s10
  %s13 = scalar_select 0, %s12, %s10
  $region1: #{contrastive_loss_module.1} parent=0
    #allocation4 [shape = 'u8[512]{0}', space=vmem, size = 0x400, scoped, tag = 'output window, operand 0, single buffered']
    #allocation5 [shape = 's32[1]{0}', space=sflag, size = 0x4, scoped, tag = 'scoped memory for contrastive_loss_module.1']
    %14 = vsyncpa [#allocation5], 0
    // Predicated region
    $region2: #{contrastive_loss_module.1} parent=1 // pred_check
      _
    $region3: #{contrastive_loss_module.1} parent=1 // pred_check_branch
      %16 = sbr.rel (0) target = $region5
    $region4: #{contrastive_loss_module.1} parent=1 // pred_region
      _
    $region5: #{contrastive_loss_module.1} parent=1 // pred_fallthru
      _
    // Predicated region
    $region6: #{contrastive_loss_module.1} parent=1 // pred_check
      _
    $region7: #{contrastive_loss_module.1} parent=1 // pred_check_branch
      %18 = sbr.rel (0) target = $region9
    $region8: #{contrastive_loss_module.1} parent=1 // pred_region
      _
    $region9: #{contrastive_loss_module.1} parent=1 // pred_fallthru
      _
    // Predicated region
    $region10: #{contrastive_loss_module.1} parent=1 // pred_check
      _
    $region11: #{contrastive_loss_module.1} parent=1 // pred_check_branch
      %20 = sbr.rel (0) target = $region13
    $region12: #{contrastive_loss_module.1} parent=1 // pred_region
      _
    $region13: #{contrastive_loss_module.1} parent=1 // pred_fallthru
      _
    // Predicated region
    $region14: #{contrastive_loss_module.1} parent=1 // pred_check
      _
    $region15: #{contrastive_loss_module.1} parent=1 // pred_check_branch
      %22 = sbr.rel (0) target = $region17
    $region16: #{contrastive_loss_module.1} parent=1 // pred_region
      _
    $region17: #{contrastive_loss_module.1} parent=1 // pred_fallthru
      _
    // Predicated region
    $region18: #{contrastive_loss_module.1} parent=1 // pred_check
      _
    $region19: #{contrastive_loss_module.1} parent=1 // pred_check_branch
      %24 = sbr.rel (0) target = $region21
    $region20: #{contrastive_loss_module.1} parent=1 // pred_region
      _
    $region21: #{contrastive_loss_module.1} parent=1 // pred_fallthru
      _
    // Predicated region
    $region22: #{contrastive_loss_module.1} parent=1 // pred_check
      _
    $region23: #{contrastive_loss_module.1} parent=1 // pred_check_branch
      %26 = sbr.rel (0) target = $region25
    $region24: #{contrastive_loss_module.1} parent=1 // pred_region
      _
    $region25: #{contrastive_loss_module.1} parent=1 // pred_fallthru
      _
    // Predicated region
    $region26: #{contrastive_loss_module.1} parent=1 // pred_check
      _
    $region27: #{contrastive_loss_module.1} parent=1 // pred_check_branch
      %28 = sbr.rel (0) target = $region29
    $region28: #{contrastive_loss_module.1} parent=1 // pred_region
      _
    $region29: #{contrastive_loss_module.1} parent=1 // pred_fallthru
      _
    // Predicated region
    $region30: #{contrastive_loss_module.1} parent=1 // pred_check
      _
    $region31: #{contrastive_loss_module.1} parent=1 // pred_check_branch
      %30 = sbr.rel (0) target = $region33
    $region32: #{contrastive_loss_module.1} parent=1 // pred_region
      _
    $region33: #{contrastive_loss_module.1} parent=1 // pred_fallthru
      _
    // Predicated region
    $region34: #{contrastive_loss_module.1} parent=1 // pred_check
      _
    $region35: #{contrastive_loss_module.1} parent=1 // pred_check_branch
      %32 = sbr.rel (0) target = $region37
    $region36: #{contrastive_loss_module.1} parent=1 // pred_region
      _
    $region37: #{contrastive_loss_module.1} parent=1 // pred_fallthru
      _
    %34 = vst [vmem:[#allocation2] sm:$0xff] 0
    %35 = vst [vmem:[#allocation2 + $0x8] sm:$0xff] 0
    %36 = vst [vmem:[#allocation2 + $0x10] sm:$0xff] 0
    %37 = vst [vmem:[#allocation2 + $0x18] sm:$0xff] 0
    %38 = vst [vmem:[#allocation2 + $0x20] sm:$0xff] 0
    %39 = vst [vmem:[#allocation2 + $0x28] sm:$0xff] 0
    %40 = vst [vmem:[#allocation2 + $0x30] sm:$0xff] 0
    %41 = vst [vmem:[#allocation2 + $0x38] sm:$0xff] 0
    %42 = vst [vmem:[#allocation2 + $0x40] sm:$0xff] 0
    %43 = vst [vmem:[#allocation2 + $0x48] sm:$0xff] 0
    %44 = vst [vmem:[#allocation2 + $0x50] sm:$0xff] 0
    %45 = vst [vmem:[#allocation2 + $0x58] sm:$0xff] 0
    %46 = vst [vmem:[#allocation2 + $0x60] sm:$0xff] 0
    %47 = vst [vmem:[#allocation2 + $0x68] sm:$0xff] 0
    %48 = vst [vmem:[#allocation2 + $0x70] sm:$0xff] 0
    %49 = vst [vmem:[#allocation2 + $0x78] sm:$0xff] 0
    %50 = vst [vmem:[#allocation2 + $0x80] sm:$0xff] 0
    %51 = vst [vmem:[#allocation2 + $0x88] sm:$0xff] 0
    %52 = vst [vmem:[#allocation2 + $0x90] sm:$0xff] 0
    %53 = vst [vmem:[#allocation2 + $0x98] sm:$0xff] 0
    %54 = vst [vmem:[#allocation2 + $0xa0] sm:$0xff] 0
    %55 = vst [vmem:[#allocation2 + $0xa8] sm:$0xff] 0
    %56 = vst [vmem:[#allocation2 + $0xb0] sm:$0xff] 0
    %57 = vst [vmem:[#allocation2 + $0xb8] sm:$0xff] 0
    %58 = vst [vmem:[#allocation2 + $0xc0] sm:$0xff] 0
    %59 = vst [vmem:[#allocation2 + $0xc8] sm:$0xff] 0
    %60 = vst [vmem:[#allocation2 + $0xd0] sm:$0xff] 0
    %61 = vst [vmem:[#allocation2 + $0xd8] sm:$0xff] 0
    %62 = vst [vmem:[#allocation2 + $0xe0] sm:$0xff] 0
    %63 = vst [vmem:[#allocation2 + $0xe8] sm:$0xff] 0
    %64 = vst [vmem:[#allocation2 + $0xf0] sm:$0xff] 0
    %65 = vst [vmem:[#allocation2 + $0xf8] sm:$0xff] 0
    %66 = vst [vmem:[#allocation2 + $0x100] sm:$0xff] 0
    %67 = vst [vmem:[#allocation2 + $0x108] sm:$0xff] 0
    %68 = vst [vmem:[#allocation2 + $0x110] sm:$0xff] 0
    %69 = vst [vmem:[#allocation2 + $0x118] sm:$0xff] 0
    %70 = vst [vmem:[#allocation2 + $0x120] sm:$0xff] 0
    %71 = vst [vmem:[#allocation2 + $0x128] sm:$0xff] 0
    %72 = vst [vmem:[#allocation2 + $0x130] sm:$0xff] 0
    %73 = vst [vmem:[#allocation2 + $0x138] sm:$0xff] 0
    %74 = vst [vmem:[#allocation2 + $0x140] sm:$0xff] 0
    %75 = vst [vmem:[#allocation2 + $0x148] sm:$0xff] 0
    %76 = vst [vmem:[#allocation2 + $0x150] sm:$0xff] 0
    %77 = vst [vmem:[#allocation2 + $0x158] sm:$0xff] 0
    %78 = vst [vmem:[#allocation2 + $0x160] sm:$0xff] 0
    %79 = vst [vmem:[#allocation2 + $0x168] sm:$0xff] 0
    %80 = vst [vmem:[#allocation2 + $0x170] sm:$0xff] 0
    %81 = vst [vmem:[#allocation2 + $0x178] sm:$0xff] 0
    %82 = vst [vmem:[#allocation2 + $0x180] sm:$0xff] 0
    %83 = vst [vmem:[#allocation2 + $0x188] sm:$0xff] 0
    %84 = vst [vmem:[#allocation2 + $0x190] sm:$0xff] 0
    %85 = vst [vmem:[#allocation2 + $0x198] sm:$0xff] 0
    %86 = vst [vmem:[#allocation2 + $0x1a0] sm:$0xff] 0
    %87 = vst [vmem:[#allocation2 + $0x1a8] sm:$0xff] 0
    %88 = vst [vmem:[#allocation2 + $0x1b0] sm:$0xff] 0
    %89 = vst [vmem:[#allocation2 + $0x1b8] sm:$0xff] 0
    %90 = vst [vmem:[#allocation2 + $0x1c0] sm:$0xff] 0
    %91 = vst [vmem:[#allocation2 + $0x1c8] sm:$0xff] 0
    %92 = vst [vmem:[#allocation2 + $0x1d0] sm:$0xff] 0
    %93 = vst [vmem:[#allocation2 + $0x1d8] sm:$0xff] 0
    %94 = vst [vmem:[#allocation2 + $0x1e0] sm:$0xff] 0
    %95 = vst [vmem:[#allocation2 + $0x1e8] sm:$0xff] 0
    %96 = vst [vmem:[#allocation2 + $0x1f0] sm:$0xff] 0
    %97 = vst [vmem:[#allocation2 + $0x1f8] sm:$0xff] 0
    %98 = vst [vmem:[#allocation2 + $0x200] sm:$0xff] 0
    %99 = vst [vmem:[#allocation2 + $0x208] sm:$0xff] 0
    %100 = vst [vmem:[#allocation2 + $0x210] sm:$0xff] 0
    %101 = vst [vmem:[#allocation2 + $0x218] sm:$0xff] 0
    %102 = vst [vmem:[#allocation2 + $0x220] sm:$0xff] 0
    %103 = vst [vmem:[#allocation2 + $0x228] sm:$0xff] 0
    %104 = vst [vmem:[#allocation2 + $0x230] sm:$0xff] 0
    %105 = vst [vmem:[#allocation2 + $0x238] sm:$0xff] 0
    %106 = vst [vmem:[#allocation2 + $0x240] sm:$0xff] 0
    %107 = vst [vmem:[#allocation2 + $0x248] sm:$0xff] 0
    %108 = vst [vmem:[#allocation2 + $0x250] sm:$0xff] 0
    %109 = vst [vmem:[#allocation2 + $0x258] sm:$0xff] 0
    %110 = vst [vmem:[#allocation2 + $0x260] sm:$0xff] 0
    %111 = vst [vmem:[#allocation2 + $0x268] sm:$0xff] 0
    %112 = vst [vmem:[#allocation2 + $0x270] sm:$0xff] 0
    %113 = vst [vmem:[#allocation2 + $0x278] sm:$0xff] 0
    %114 = vst [vmem:[#allocation2 + $0x280] sm:$0xff] 0
    %115 = vst [vmem:[#allocation2 + $0x288] sm:$0xff] 0
    %116 = vst [vmem:[#allocation2 + $0x290] sm:$0xff] 0
    %117 = vst [vmem:[#allocation2 + $0x298] sm:$0xff] 0
    %118 = vst [vmem:[#allocation2 + $0x2a0] sm:$0xff] 0
    %119 = vst [vmem:[#allocation2 + $0x2a8] sm:$0xff] 0
    %120 = vst [vmem:[#allocation2 + $0x2b0] sm:$0xff] 0
    %121 = vst [vmem:[#allocation2 + $0x2b8] sm:$0xff] 0
    %122 = vst [vmem:[#allocation2 + $0x2c0] sm:$0xff] 0
    %123 = vst [vmem:[#allocation2 + $0x2c8] sm:$0xff] 0
    %124 = vst [vmem:[#allocation2 + $0x2d0] sm:$0xff] 0
    %125 = vst [vmem:[#allocation2 + $0x2d8] sm:$0xff] 0
    %126 = vst [vmem:[#allocation2 + $0x2e0] sm:$0xff] 0
    %127 = vst [vmem:[#allocation2 + $0x2e8] sm:$0xff] 0
    %128 = vst [vmem:[#allocation2 + $0x2f0] sm:$0xff] 0
    %129 = vst [vmem:[#allocation2 + $0x2f8] sm:$0xff] 0
    %130 = vst [vmem:[#allocation2 + $0x300] sm:$0xff] 0
    %131 = vst [vmem:[#allocation2 + $0x308] sm:$0xff] 0
    %132 = vst [vmem:[#allocation2 + $0x310] sm:$0xff] 0
    %133 = vst [vmem:[#allocation2 + $0x318] sm:$0xff] 0
    %134 = vst [vmem:[#allocation2 + $0x320] sm:$0xff] 0
    %135 = vst [vmem:[#allocation2 + $0x328] sm:$0xff] 0
    %136 = vst [vmem:[#allocation2 + $0x330] sm:$0xff] 0
    %137 = vst [vmem:[#allocation2 + $0x338] sm:$0xff] 0
    %138 = vst [vmem:[#allocation2 + $0x340] sm:$0xff] 0
    %139 = vst [vmem:[#allocation2 + $0x348] sm:$0xff] 0
    %140 = vst [vmem:[#allocation2 + $0x350] sm:$0xff] 0
    %141 = vst [vmem:[#allocation2 + $0x358] sm:$0xff] 0
    %142 = vst [vmem:[#allocation2 + $0x360] sm:$0xff] 0
    %143 = vst [vmem:[#allocation2 + $0x368] sm:$0xff] 0
    %144 = vst [vmem:[#allocation2 + $0x370] sm:$0xff] 0
    %145 = vst [vmem:[#allocation2 + $0x378] sm:$0xff] 0
    %146 = vst [vmem:[#allocation2 + $0x380] sm:$0xff] 0
    %147 = vst [vmem:[#allocation2 + $0x388] sm:$0xff] 0
    %148 = vst [vmem:[#allocation2 + $0x390] sm:$0xff] 0
    %149 = vst [vmem:[#allocation2 + $0x398] sm:$0xff] 0
    %150 = vst [vmem:[#allocation2 + $0x3a0] sm:$0xff] 0
    %151 = vst [vmem:[#allocation2 + $0x3a8] sm:$0xff] 0
    %152 = vst [vmem:[#allocation2 + $0x3b0] sm:$0xff] 0
    %153 = vst [vmem:[#allocation2 + $0x3b8] sm:$0xff] 0
    %154 = vst [vmem:[#allocation2 + $0x3c0] sm:$0xff] 0
    %155 = vst [vmem:[#allocation2 + $0x3c8] sm:$0xff] 0
    %156 = vst [vmem:[#allocation2 + $0x3d0] sm:$0xff] 0
    %157 = vst [vmem:[#allocation2 + $0x3d8] sm:$0xff] 0
    %158 = vst [vmem:[#allocation2 + $0x3e0] sm:$0xff] 0
    %159 = vst [vmem:[#allocation2 + $0x3e8] sm:$0xff] 0
    %160 = vst [vmem:[#allocation2 + $0x3f0] sm:$0xff] 0
    %161 = vst [vmem:[#allocation2 + $0x3f8] sm:$0xff] 0
    %162 = vst [vmem:[#allocation2 + $0x400] sm:$0xff] 0
    %163 = vst [vmem:[#allocation2 + $0x408] sm:$0xff] 0
    %164 = vst [vmem:[#allocation2 + $0x410] sm:$0xff] 0
    %165 = vst [vmem:[#allocation2 + $0x418] sm:$0xff] 0
    %166 = vst [vmem:[#allocation2 + $0x420] sm:$0xff] 0
    %167 = vst [vmem:[#allocation2 + $0x428] sm:$0xff] 0
    %168 = vst [vmem:[#allocation2 + $0x430] sm:$0xff] 0
    %169 = vst [vmem:[#allocation2 + $0x438] sm:$0xff] 0
    %170 = vst [vmem:[#allocation2 + $0x440] sm:$0xff] 0
    %171 = vst [vmem:[#allocation2 + $0x448] sm:$0xff] 0
    %172 = vst [vmem:[#allocation2 + $0x450] sm:$0xff] 0
    %173 = vst [vmem:[#allocation2 + $0x458] sm:$0xff] 0
    %174 = vst [vmem:[#allocation2 + $0x460] sm:$0xff] 0
    %175 = vst [vmem:[#allocation2 + $0x468] sm:$0xff] 0
    %176 = vst [vmem:[#allocation2 + $0x470] sm:$0xff] 0
    %177 = vst [vmem:[#allocation2 + $0x478] sm:$0xff] 0
    %v178 = vld [vmem:[%s0] sm:$0xff]
    %v179 = vld [vmem:[%s0 + $0x8] sm:$0xff]
    %v180 = vld [vmem:[%s0 + $0x10] sm:$0xff]
    %v181 = vld [vmem:[%s0 + $0x18] sm:$0xff]
    %v182 = vld [vmem:[%s0 + $0x20] sm:$0xff]
    %v183 = vld [vmem:[%s0 + $0x28] sm:$0xff]
    %v184 = vld [vmem:[%s0 + $0x30] sm:$0xff]
    %v185 = vld [vmem:[%s0 + $0x40] sm:$0xff]
    %v186 = vld [vmem:[%s0 + $0x48] sm:$0xff]
    %v187 = vld [vmem:[%s0 + $0x50] sm:$0xff]
    %v188 = vld [vmem:[%s0 + $0x58] sm:$0xff]
    %v189 = vld [vmem:[%s0 + $0x60] sm:$0xff]
    %v190 = vld [vmem:[%s0 + $0x68] sm:$0xff]
    %v191 = vld [vmem:[%s0 + $0x70] sm:$0xff]
    %v193 = vshrl.u32 %v178, 16
    %v195 = vrot.slane %v193, 7
    %v196 = vshll.u32 %v178, 16
    %v198 = vor.u32 %v195, %v196
    %v200 = vshrl.u32 %v179, 16
    %v202 = vrot.slane %v200, 7
    %v203 = vshll.u32 %v179, 16
    %v205 = vor.u32 %v202, %v203
    %v207 = vshrl.u32 %v180, 16
    %v209 = vrot.slane %v207, 7
    %v210 = vshll.u32 %v180, 16
    %v212 = vor.u32 %v209, %v210
    %v214 = vshrl.u32 %v181, 16
    %v216 = vrot.slane %v214, 7
    %v217 = vshll.u32 %v181, 16
    %v219 = vor.u32 %v216, %v217
    %v221 = vshrl.u32 %v182, 16
    %v223 = vrot.slane %v221, 7
    %v224 = vshll.u32 %v182, 16
    %v226 = vor.u32 %v223, %v224
    %v228 = vshrl.u32 %v183, 16
    %v230 = vrot.slane %v228, 7
    %v231 = vshll.u32 %v183, 16
    %v233 = vor.u32 %v230, %v231
    %v235 = vshrl.u32 %v184, 16
    %v237 = vrot.slane %v235, 7
    %v238 = vshll.u32 %v184, 16
    %v240 = vor.u32 %v237, %v238
    %v242 = vshrl.u32 %v185, 16
    %v244 = vrot.slane %v242, 7
    %v245 = vshll.u32 %v185, 16
    %v247 = vor.u32 %v244, %v245
    %v249 = vshrl.u32 %v186, 16
    %v251 = vrot.slane %v249, 7
    %v252 = vshll.u32 %v186, 16
    %v254 = vor.u32 %v251, %v252
    %v256 = vshrl.u32 %v187, 16
    %v258 = vrot.slane %v256, 7
    %v259 = vshll.u32 %v187, 16
    %v261 = vor.u32 %v258, %v259
    %v263 = vshrl.u32 %v188, 16
    %v265 = vrot.slane %v263, 7
    %v266 = vshll.u32 %v188, 16
    %v268 = vor.u32 %v265, %v266
    %v270 = vshrl.u32 %v189, 16
    %v272 = vrot.slane %v270, 7
    %v273 = vshll.u32 %v189, 16
    %v275 = vor.u32 %v272, %v273
    %v277 = vshrl.u32 %v190, 16
    %v279 = vrot.slane %v277, 7
    %v280 = vshll.u32 %v190, 16
    %v282 = vor.u32 %v279, %v280
    %v284 = vshrl.u32 %v191, 16
    %v286 = vrot.slane %v284, 7
    %v287 = vshll.u32 %v191, 16
    %v289 = vor.u32 %v286, %v287
    %s304 = scalar_lea.vmem [#allocation2], 72
    %vm305 = vcmask 1043456
    %vm306 = vsmask.f32 7938
    %vm307 = vmand %vm305, %vm306
    %vm308 = vcmask 1047556
    %vm309 = vsmask.f32 7954
    %vm310 = vmand %vm308, %vm309
    %vm311 = vmor %vm310, %vm307
    %v312 = vld [vmem:[%s304] sm:$0xff]
    %v313 = vsel %vm311, %v198, %v312
    %314 = vst [vmem:[%s304] sm:$0xff] %v313
    %v315 = vld [vmem:[%s304 + $0x48] sm:$0xff]
    %v316 = vsel %vm311, %v205, %v315
    %317 = vst [vmem:[%s304 + $0x48] sm:$0xff] %v316
    %v318 = vld [vmem:[%s304 + $0x90] sm:$0xff]
    %v319 = vsel %vm311, %v212, %v318
    %320 = vst [vmem:[%s304 + $0x90] sm:$0xff] %v319
    %v321 = vld [vmem:[%s304 + $0xd8] sm:$0xff]
    %v322 = vsel %vm311, %v219, %v321
    %323 = vst [vmem:[%s304 + $0xd8] sm:$0xff] %v322
    %v324 = vld [vmem:[%s304 + $0x120] sm:$0xff]
    %v325 = vsel %vm311, %v226, %v324
    %326 = vst [vmem:[%s304 + $0x120] sm:$0xff] %v325
    %v327 = vld [vmem:[%s304 + $0x168] sm:$0xff]
    %v328 = vsel %vm311, %v233, %v327
    %329 = vst [vmem:[%s304 + $0x168] sm:$0xff] %v328
    %v330 = vld [vmem:[%s304 + $0x1b0] sm:$0xff]
    %v331 = vsel %vm311, %v240, %v330
    %332 = vst [vmem:[%s304 + $0x1b0] sm:$0xff] %v331
    %v333 = vld [vmem:[%s304 + $0x240] sm:$0xff]
    %v334 = vsel %vm311, %v247, %v333
    %335 = vst [vmem:[%s304 + $0x240] sm:$0xff] %v334
    %v336 = vld [vmem:[%s304 + $0x288] sm:$0xff]
    %v337 = vsel %vm311, %v254, %v336
    %338 = vst [vmem:[%s304 + $0x288] sm:$0xff] %v337
    %v339 = vld [vmem:[%s304 + $0x2d0] sm:$0xff]
    %v340 = vsel %vm311, %v261, %v339
    %341 = vst [vmem:[%s304 + $0x2d0] sm:$0xff] %v340
    %v342 = vld [vmem:[%s304 + $0x318] sm:$0xff]
    %v343 = vsel %vm311, %v268, %v342
    %344 = vst [vmem:[%s304 + $0x318] sm:$0xff] %v343
    %v345 = vld [vmem:[%s304 + $0x360] sm:$0xff]
    %v346 = vsel %vm311, %v275, %v345
    %347 = vst [vmem:[%s304 + $0x360] sm:$0xff] %v346
    %v348 = vld [vmem:[%s304 + $0x3a8] sm:$0xff]
    %v349 = vsel %vm311, %v282, %v348
    %350 = vst [vmem:[%s304 + $0x3a8] sm:$0xff] %v349
    %v351 = vld [vmem:[%s304 + $0x3f0] sm:$0xff]
    %v352 = vsel %vm311, %v289, %v351
    %353 = vst [vmem:[%s304 + $0x3f0] sm:$0xff] %v352
    %v354 = vld [vmem:[%s0] sm:$0xff]
    %v355 = vld [vmem:[%s0 + $0x8] sm:$0xff]
    %v356 = vld [vmem:[%s0 + $0x10] sm:$0xff]
    %v357 = vld [vmem:[%s0 + $0x18] sm:$0xff]
    %v358 = vld [vmem:[%s0 + $0x20] sm:$0xff]
    %v359 = vld [vmem:[%s0 + $0x28] sm:$0xff]
    %v360 = vld [vmem:[%s0 + $0x30] sm:$0xff]
    %v361 = vld [vmem:[%s0 + $0x40] sm:$0xff]
    %v362 = vld [vmem:[%s0 + $0x48] sm:$0xff]
    %v363 = vld [vmem:[%s0 + $0x50] sm:$0xff]
    %v364 = vld [vmem:[%s0 + $0x58] sm:$0xff]
    %v365 = vld [vmem:[%s0 + $0x60] sm:$0xff]
    %v366 = vld [vmem:[%s0 + $0x68] sm:$0xff]
    %v367 = vld [vmem:[%s0 + $0x70] sm:$0xff]
    %368 = vst [vmem:[%s304 + $0x8] sm:$0xff] %v354
    %369 = vst [vmem:[%s304 + $0x50] sm:$0xff] %v355
    %370 = vst [vmem:[%s304 + $0x98] sm:$0xff] %v356
    %371 = vst [vmem:[%s304 + $0xe0] sm:$0xff] %v357
    %372 = vst [vmem:[%s304 + $0x128] sm:$0xff] %v358
    %373 = vst [vmem:[%s304 + $0x170] sm:$0xff] %v359
    %374 = vst [vmem:[%s304 + $0x1b8] sm:$0xff] %v360
    %375 = vst [vmem:[%s304 + $0x248] sm:$0xff] %v361
    %376 = vst [vmem:[%s304 + $0x290] sm:$0xff] %v362
    %377 = vst [vmem:[%s304 + $0x2d8] sm:$0xff] %v363
    %378 = vst [vmem:[%s304 + $0x320] sm:$0xff] %v364
    %379 = vst [vmem:[%s304 + $0x368] sm:$0xff] %v365
    %380 = vst [vmem:[%s304 + $0x3b0] sm:$0xff] %v366
    %381 = vst [vmem:[%s304 + $0x3f8] sm:$0xff] %v367
    %v382 = vld [vmem:[%s0] sm:$0xff]
    %v383 = vld [vmem:[%s0 + $0x8] sm:$0xff]
    %v384 = vld [vmem:[%s0 + $0x10] sm:$0xff]
    %v385 = vld [vmem:[%s0 + $0x18] sm:$0xff]
    %v386 = vld [vmem:[%s0 + $0x20] sm:$0xff]
    %v387 = vld [vmem:[%s0 + $0x28] sm:$0xff]
    %v388 = vld [vmem:[%s0 + $0x30] sm:$0xff]
    %v389 = vld [vmem:[%s0 + $0x40] sm:$0xff]
    %v390 = vld [vmem:[%s0 + $0x48] sm:$0xff]
    %v391 = vld [vmem:[%s0 + $0x50] sm:$0xff]
    %v392 = vld [vmem:[%s0 + $0x58] sm:$0xff]
    %v393 = vld [vmem:[%s0 + $0x60] sm:$0xff]
    %v394 = vld [vmem:[%s0 + $0x68] sm:$0xff]
    %v395 = vld [vmem:[%s0 + $0x70] sm:$0xff]
    %v397 = vshrl.u32 %v382, 16
    %v399 = vrot.slane %v397, 4
    %v400 = vshll.u32 %v382, 16
    %v402 = vrot.slane %v400, 5
    %v403 = vor.u32 %v399, %v402
    %v404 = vrot.slane %v403, 4
    %v406 = vshrl.u32 %v383, 16
    %v408 = vrot.slane %v406, 4
    %v409 = vshll.u32 %v383, 16
    %v411 = vrot.slane %v409, 5
    %v412 = vor.u32 %v408, %v411
    %v413 = vrot.slane %v412, 4
    %v415 = vshrl.u32 %v384, 16
    %v417 = vrot.slane %v415, 4
    %v418 = vshll.u32 %v384, 16
    %v420 = vrot.slane %v418, 5
    %v421 = vor.u32 %v417, %v420
    %v422 = vrot.slane %v421, 4
    %v424 = vshrl.u32 %v385, 16
    %v426 = vrot.slane %v424, 4
    %v427 = vshll.u32 %v385, 16
    %v429 = vrot.slane %v427, 5
    %v430 = vor.u32 %v426, %v429
    %v431 = vrot.slane %v430, 4
    %v433 = vshrl.u32 %v386, 16
    %v435 = vrot.slane %v433, 4
    %v436 = vshll.u32 %v386, 16
    %v438 = vrot.slane %v436, 5
    %v439 = vor.u32 %v435, %v438
    %v440 = vrot.slane %v439, 4
    %v442 = vshrl.u32 %v387, 16
    %v444 = vrot.slane %v442, 4
    %v445 = vshll.u32 %v387, 16
    %v447 = vrot.slane %v445, 5
    %v448 = vor.u32 %v444, %v447
    %v449 = vrot.slane %v448, 4
    %v451 = vshrl.u32 %v388, 16
    %v453 = vrot.slane %v451, 4
    %v454 = vshll.u32 %v388, 16
    %v456 = vrot.slane %v454, 5
    %v457 = vor.u32 %v453, %v456
    %v458 = vrot.slane %v457, 4
    %v460 = vshrl.u32 %v389, 16
    %v462 = vrot.slane %v460, 4
    %v463 = vshll.u32 %v389, 16
    %v465 = vrot.slane %v463, 5
    %v466 = vor.u32 %v462, %v465
    %v467 = vrot.slane %v466, 4
    %v469 = vshrl.u32 %v390, 16
    %v471 = vrot.slane %v469, 4
    %v472 = vshll.u32 %v390, 16
    %v474 = vrot.slane %v472, 5
    %v475 = vor.u32 %v471, %v474
    %v476 = vrot.slane %v475, 4
    %v478 = vshrl.u32 %v391, 16
    %v480 = vrot.slane %v478, 4
    %v481 = vshll.u32 %v391, 16
    %v483 = vrot.slane %v481, 5
    %v484 = vor.u32 %v480, %v483
    %v485 = vrot.slane %v484, 4
    %v487 = vshrl.u32 %v392, 16
    %v489 = vrot.slane %v487, 4
    %v490 = vshll.u32 %v392, 16
    %v492 = vrot.slane %v490, 5
    %v493 = vor.u32 %v489, %v492
    %v494 = vrot.slane %v493, 4
    %v496 = vshrl.u32 %v393, 16
    %v498 = vrot.slane %v496, 4
    %v499 = vshll.u32 %v393, 16
    %v501 = vrot.slane %v499, 5
    %v502 = vor.u32 %v498, %v501
    %v503 = vrot.slane %v502, 4
    %v505 = vshrl.u32 %v394, 16
    %v507 = vrot.slane %v505, 4
    %v508 = vshll.u32 %v394, 16
    %v510 = vrot.slane %v508, 5
    %v511 = vor.u32 %v507, %v510
    %v512 = vrot.slane %v511, 4
    %v514 = vshrl.u32 %v395, 16
    %v516 = vrot.slane %v514, 4
    %v517 = vshll.u32 %v395, 16
    %v519 = vrot.slane %v517, 5
    %v520 = vor.u32 %v516, %v519
    %v521 = vrot.slane %v520, 4
    %vm536 = vsmask.f32 3328
    %vm537 = vmand %vm305, %vm536
    %vm538 = vsmask.f32 7424
    %vm539 = vmand %vm308, %vm538
    %vm540 = vmor %vm539, %vm537
    %v541 = vld [vmem:[%s304 + $0x10] sm:$0xff]
    %v542 = vsel %vm540, %v404, %v541
    %543 = vst [vmem:[%s304 + $0x10] sm:$0xff] %v542
    %v544 = vld [vmem:[%s304 + $0x58] sm:$0xff]
    %v545 = vsel %vm540, %v413, %v544
    %546 = vst [vmem:[%s304 + $0x58] sm:$0xff] %v545
    %v547 = vld [vmem:[%s304 + $0xa0] sm:$0xff]
    %v548 = vsel %vm540, %v422, %v547
    %549 = vst [vmem:[%s304 + $0xa0] sm:$0xff] %v548
    %v550 = vld [vmem:[%s304 + $0xe8] sm:$0xff]
    %v551 = vsel %vm540, %v431, %v550
    %552 = vst [vmem:[%s304 + $0xe8] sm:$0xff] %v551
    %v553 = vld [vmem:[%s304 + $0x130] sm:$0xff]
    %v554 = vsel %vm540, %v440, %v553
    %555 = vst [vmem:[%s304 + $0x130] sm:$0xff] %v554
    %v556 = vld [vmem:[%s304 + $0x178] sm:$0xff]
    %v557 = vsel %vm540, %v449, %v556
    %558 = vst [vmem:[%s304 + $0x178] sm:$0xff] %v557
    %v559 = vld [vmem:[%s304 + $0x1c0] sm:$0xff]
    %v560 = vsel %vm540, %v458, %v559
    %561 = vst [vmem:[%s304 + $0x1c0] sm:$0xff] %v560
    %v562 = vld [vmem:[%s304 + $0x250] sm:$0xff]
    %v563 = vsel %vm540, %v467, %v562
    %564 = vst [vmem:[%s304 + $0x250] sm:$0xff] %v563
    %v565 = vld [vmem:[%s304 + $0x298] sm:$0xff]
    %v566 = vsel %vm540, %v476, %v565
    %567 = vst [vmem:[%s304 + $0x298] sm:$0xff] %v566
    %v568 = vld [vmem:[%s304 + $0x2e0] sm:$0xff]
    %v569 = vsel %vm540, %v485, %v568
    %570 = vst [vmem:[%s304 + $0x2e0] sm:$0xff] %v569
    %v571 = vld [vmem:[%s304 + $0x328] sm:$0xff]
    %v572 = vsel %vm540, %v494, %v571
    %573 = vst [vmem:[%s304 + $0x328] sm:$0xff] %v572
    %v574 = vld [vmem:[%s304 + $0x370] sm:$0xff]
    %v575 = vsel %vm540, %v503, %v574
    %576 = vst [vmem:[%s304 + $0x370] sm:$0xff] %v575
    %v577 = vld [vmem:[%s304 + $0x3b8] sm:$0xff]
    %v578 = vsel %vm540, %v512, %v577
    %579 = vst [vmem:[%s304 + $0x3b8] sm:$0xff] %v578
    %v580 = vld [vmem:[%s304 + $0x400] sm:$0xff]
    %v581 = vsel %vm540, %v521, %v580
    %582 = vst [vmem:[%s304 + $0x400] sm:$0xff] %v581
    %v583 = vld [vmem:[%s0] sm:$0xff]
    %v584 = vld [vmem:[%s0 + $0x8] sm:$0xff]
    %v585 = vld [vmem:[%s0 + $0x10] sm:$0xff]
    %v586 = vld [vmem:[%s0 + $0x18] sm:$0xff]
    %v587 = vld [vmem:[%s0 + $0x20] sm:$0xff]
    %v588 = vld [vmem:[%s0 + $0x28] sm:$0xff]
    %v589 = vld [vmem:[%s0 + $0x30] sm:$0xff]
    %v590 = vld [vmem:[%s0 + $0x38] sm:$0xff]
    %v591 = vld [vmem:[%s0 + $0x40] sm:$0xff]
    %v592 = vld [vmem:[%s0 + $0x48] sm:$0xff]
    %v593 = vld [vmem:[%s0 + $0x50] sm:$0xff]
    %v594 = vld [vmem:[%s0 + $0x58] sm:$0xff]
    %v595 = vld [vmem:[%s0 + $0x60] sm:$0xff]
    %v596 = vld [vmem:[%s0 + $0x68] sm:$0xff]
    %v597 = vld [vmem:[%s0 + $0x70] sm:$0xff]
    %v598 = vld [vmem:[%s0 + $0x78] sm:$0xff]
    %v600 = vshrl.u32 %v583, 16
    %v602 = vrot.slane %v600, 7
    %v603 = vshll.u32 %v583, 16
    %v605 = vor.u32 %v602, %v603
    %v607 = vshrl.u32 %v584, 16
    %v609 = vrot.slane %v607, 7
    %v610 = vshll.u32 %v584, 16
    %v612 = vor.u32 %v609, %v610
    %v614 = vshrl.u32 %v585, 16
    %v616 = vrot.slane %v614, 7
    %v617 = vshll.u32 %v585, 16
    %v619 = vor.u32 %v616, %v617
    %v621 = vshrl.u32 %v586, 16
    %v623 = vrot.slane %v621, 7
    %v624 = vshll.u32 %v586, 16
    %v626 = vor.u32 %v623, %v624
    %v628 = vshrl.u32 %v587, 16
    %v630 = vrot.slane %v628, 7
    %v631 = vshll.u32 %v587, 16
    %v633 = vor.u32 %v630, %v631
    %v635 = vshrl.u32 %v588, 16
    %v637 = vrot.slane %v635, 7
    %v638 = vshll.u32 %v588, 16
    %v640 = vor.u32 %v637, %v638
    %v642 = vshrl.u32 %v589, 16
    %v644 = vrot.slane %v642, 7
    %v645 = vshll.u32 %v589, 16
    %v647 = vor.u32 %v644, %v645
    %v649 = vshrl.u32 %v590, 16
    %v651 = vrot.slane %v649, 7
    %v652 = vshll.u32 %v590, 16
    %v654 = vor.u32 %v651, %v652
    %v656 = vshrl.u32 %v591, 16
    %v658 = vrot.slane %v656, 7
    %v659 = vshll.u32 %v591, 16
    %v661 = vor.u32 %v658, %v659
    %v663 = vshrl.u32 %v592, 16
    %v665 = vrot.slane %v663, 7
    %v666 = vshll.u32 %v592, 16
    %v668 = vor.u32 %v665, %v666
    %v670 = vshrl.u32 %v593, 16
    %v672 = vrot.slane %v670, 7
    %v673 = vshll.u32 %v593, 16
    %v675 = vor.u32 %v672, %v673
    %v677 = vshrl.u32 %v594, 16
    %v679 = vrot.slane %v677, 7
    %v680 = vshll.u32 %v594, 16
    %v682 = vor.u32 %v679, %v680
    %v684 = vshrl.u32 %v595, 16
    %v686 = vrot.slane %v684, 7
    %v687 = vshll.u32 %v595, 16
    %v689 = vor.u32 %v686, %v687
    %v691 = vshrl.u32 %v596, 16
    %v693 = vrot.slane %v691, 7
    %v694 = vshll.u32 %v596, 16
    %v696 = vor.u32 %v693, %v694
    %v698 = vshrl.u32 %v597, 16
    %v700 = vrot.slane %v698, 7
    %v701 = vshll.u32 %v597, 16
    %v703 = vor.u32 %v700, %v701
    %v705 = vshrl.u32 %v598, 16
    %v707 = vrot.slane %v705, 7
    %v708 = vshll.u32 %v598, 16
    %v710 = vor.u32 %v707, %v708
    %v727 = vld [vmem:[#allocation2 + $0x18] sm:$0xff]
    %v728 = vsel %vm311, %v605, %v727
    %729 = vst [vmem:[#allocation2 + $0x18] sm:$0xff] %v728
    %v730 = vld [vmem:[#allocation2 + $0x60] sm:$0xff]
    %v731 = vsel %vm311, %v612, %v730
    %732 = vst [vmem:[#allocation2 + $0x60] sm:$0xff] %v731
    %v733 = vld [vmem:[#allocation2 + $0xa8] sm:$0xff]
    %v734 = vsel %vm311, %v619, %v733
    %735 = vst [vmem:[#allocation2 + $0xa8] sm:$0xff] %v734
    %v736 = vld [vmem:[#allocation2 + $0xf0] sm:$0xff]
    %v737 = vsel %vm311, %v626, %v736
    %738 = vst [vmem:[#allocation2 + $0xf0] sm:$0xff] %v737
    %v739 = vld [vmem:[#allocation2 + $0x138] sm:$0xff]
    %v740 = vsel %vm311, %v633, %v739
    %741 = vst [vmem:[#allocation2 + $0x138] sm:$0xff] %v740
    %v742 = vld [vmem:[#allocation2 + $0x180] sm:$0xff]
    %v743 = vsel %vm311, %v640, %v742
    %744 = vst [vmem:[#allocation2 + $0x180] sm:$0xff] %v743
    %v745 = vld [vmem:[#allocation2 + $0x1c8] sm:$0xff]
    %v746 = vsel %vm311, %v647, %v745
    %747 = vst [vmem:[#allocation2 + $0x1c8] sm:$0xff] %v746
    %v748 = vld [vmem:[#allocation2 + $0x210] sm:$0xff]
    %v749 = vsel %vm311, %v654, %v748
    %750 = vst [vmem:[#allocation2 + $0x210] sm:$0xff] %v749
    %v751 = vld [vmem:[#allocation2 + $0x258] sm:$0xff]
    %v752 = vsel %vm311, %v661, %v751
    %753 = vst [vmem:[#allocation2 + $0x258] sm:$0xff] %v752
    %v754 = vld [vmem:[#allocation2 + $0x2a0] sm:$0xff]
    %v755 = vsel %vm311, %v668, %v754
    %756 = vst [vmem:[#allocation2 + $0x2a0] sm:$0xff] %v755
    %v757 = vld [vmem:[#allocation2 + $0x2e8] sm:$0xff]
    %v758 = vsel %vm311, %v675, %v757
    %759 = vst [vmem:[#allocation2 + $0x2e8] sm:$0xff] %v758
    %v760 = vld [vmem:[#allocation2 + $0x330] sm:$0xff]
    %v761 = vsel %vm311, %v682, %v760
    %762 = vst [vmem:[#allocation2 + $0x330] sm:$0xff] %v761
    %v763 = vld [vmem:[#allocation2 + $0x378] sm:$0xff]
    %v764 = vsel %vm311, %v689, %v763
    %765 = vst [vmem:[#allocation2 + $0x378] sm:$0xff] %v764
    %v766 = vld [vmem:[#allocation2 + $0x3c0] sm:$0xff]
    %v767 = vsel %vm311, %v696, %v766
    %768 = vst [vmem:[#allocation2 + $0x3c0] sm:$0xff] %v767
    %v769 = vld [vmem:[#allocation2 + $0x408] sm:$0xff]
    %v770 = vsel %vm311, %v703, %v769
    %771 = vst [vmem:[#allocation2 + $0x408] sm:$0xff] %v770
    %v772 = vld [vmem:[#allocation2 + $0x450] sm:$0xff]
    %v773 = vsel %vm311, %v710, %v772
    %774 = vst [vmem:[#allocation2 + $0x450] sm:$0xff] %v773
    %v775 = vld [vmem:[%s0] sm:$0xff]
    %v776 = vld [vmem:[%s0 + $0x8] sm:$0xff]
    %v777 = vld [vmem:[%s0 + $0x10] sm:$0xff]
    %v778 = vld [vmem:[%s0 + $0x18] sm:$0xff]
    %v779 = vld [vmem:[%s0 + $0x20] sm:$0xff]
    %v780 = vld [vmem:[%s0 + $0x28] sm:$0xff]
    %v781 = vld [vmem:[%s0 + $0x30] sm:$0xff]
    %v782 = vld [vmem:[%s0 + $0x38] sm:$0xff]
    %v783 = vld [vmem:[%s0 + $0x40] sm:$0xff]
    %v784 = vld [vmem:[%s0 + $0x48] sm:$0xff]
    %v785 = vld [vmem:[%s0 + $0x50] sm:$0xff]
    %v786 = vld [vmem:[%s0 + $0x58] sm:$0xff]
    %v787 = vld [vmem:[%s0 + $0x60] sm:$0xff]
    %v788 = vld [vmem:[%s0 + $0x68] sm:$0xff]
    %v789 = vld [vmem:[%s0 + $0x70] sm:$0xff]
    %v790 = vld [vmem:[%s0 + $0x78] sm:$0xff]
    %791 = vst [vmem:[#allocation2 + $0x20] sm:$0xff] %v775
    %792 = vst [vmem:[#allocation2 + $0x68] sm:$0xff] %v776
    %793 = vst [vmem:[#allocation2 + $0xb0] sm:$0xff] %v777
    %794 = vst [vmem:[#allocation2 + $0xf8] sm:$0xff] %v778
    %795 = vst [vmem:[#allocation2 + $0x140] sm:$0xff] %v779
    %796 = vst [vmem:[#allocation2 + $0x188] sm:$0xff] %v780
    %797 = vst [vmem:[#allocation2 + $0x1d0] sm:$0xff] %v781
    %798 = vst [vmem:[#allocation2 + $0x218] sm:$0xff] %v782
    %799 = vst [vmem:[#allocation2 + $0x260] sm:$0xff] %v783
    %800 = vst [vmem:[#allocation2 + $0x2a8] sm:$0xff] %v784
    %801 = vst [vmem:[#allocation2 + $0x2f0] sm:$0xff] %v785
    %802 = vst [vmem:[#allocation2 + $0x338] sm:$0xff] %v786
    %803 = vst [vmem:[#allocation2 + $0x380] sm:$0xff] %v787
    %804 = vst [vmem:[#allocation2 + $0x3c8] sm:$0xff] %v788
    %805 = vst [vmem:[#allocation2 + $0x410] sm:$0xff] %v789
    %806 = vst [vmem:[#allocation2 + $0x458] sm:$0xff] %v790
    %v807 = vld [vmem:[%s0] sm:$0xff]
    %v808 = vld [vmem:[%s0 + $0x8] sm:$0xff]
    %v809 = vld [vmem:[%s0 + $0x10] sm:$0xff]
    %v810 = vld [vmem:[%s0 + $0x18] sm:$0xff]
    %v811 = vld [vmem:[%s0 + $0x20] sm:$0xff]
    %v812 = vld [vmem:[%s0 + $0x28] sm:$0xff]
    %v813 = vld [vmem:[%s0 + $0x30] sm:$0xff]
    %v814 = vld [vmem:[%s0 + $0x38] sm:$0xff]
    %v815 = vld [vmem:[%s0 + $0x40] sm:$0xff]
    %v816 = vld [vmem:[%s0 + $0x48] sm:$0xff]
    %v817 = vld [vmem:[%s0 + $0x50] sm:$0xff]
    %v818 = vld [vmem:[%s0 + $0x58] sm:$0xff]
    %v819 = vld [vmem:[%s0 + $0x60] sm:$0xff]
    %v820 = vld [vmem:[%s0 + $0x68] sm:$0xff]
    %v821 = vld [vmem:[%s0 + $0x70] sm:$0xff]
    %v822 = vld [vmem:[%s0 + $0x78] sm:$0xff]
    %v824 = vshrl.u32 %v807, 16
    %v826 = vrot.slane %v824, 4
    %v827 = vshll.u32 %v807, 16
    %v829 = vrot.slane %v827, 5
    %v830 = vor.u32 %v826, %v829
    %v831 = vrot.slane %v830, 4
    %v833 = vshrl.u32 %v808, 16
    %v835 = vrot.slane %v833, 4
    %v836 = vshll.u32 %v808, 16
    %v838 = vrot.slane %v836, 5
    %v839 = vor.u32 %v835, %v838
    %v840 = vrot.slane %v839, 4
    %v842 = vshrl.u32 %v809, 16
    %v844 = vrot.slane %v842, 4
    %v845 = vshll.u32 %v809, 16
    %v847 = vrot.slane %v845, 5
    %v848 = vor.u32 %v844, %v847
    %v849 = vrot.slane %v848, 4
    %v851 = vshrl.u32 %v810, 16
    %v853 = vrot.slane %v851, 4
    %v854 = vshll.u32 %v810, 16
    %v856 = vrot.slane %v854, 5
    %v857 = vor.u32 %v853, %v856
    %v858 = vrot.slane %v857, 4
    %v860 = vshrl.u32 %v811, 16
    %v862 = vrot.slane %v860, 4
    %v863 = vshll.u32 %v811, 16
    %v865 = vrot.slane %v863, 5
    %v866 = vor.u32 %v862, %v865
    %v867 = vrot.slane %v866, 4
    %v869 = vshrl.u32 %v812, 16
    %v871 = vrot.slane %v869, 4
    %v872 = vshll.u32 %v812, 16
    %v874 = vrot.slane %v872, 5
    %v875 = vor.u32 %v871, %v874
    %v876 = vrot.slane %v875, 4
    %v878 = vshrl.u32 %v813, 16
    %v880 = vrot.slane %v878, 4
    %v881 = vshll.u32 %v813, 16
    %v883 = vrot.slane %v881, 5
    %v884 = vor.u32 %v880, %v883
    %v885 = vrot.slane %v884, 4
    %v887 = vshrl.u32 %v814, 16
    %v889 = vrot.slane %v887, 4
    %v890 = vshll.u32 %v814, 16
    %v892 = vrot.slane %v890, 5
    %v893 = vor.u32 %v889, %v892
    %v894 = vrot.slane %v893, 4
    %v896 = vshrl.u32 %v815, 16
    %v898 = vrot.slane %v896, 4
    %v899 = vshll.u32 %v815, 16
    %v901 = vrot.slane %v899, 5
    %v902 = vor.u32 %v898, %v901
    %v903 = vrot.slane %v902, 4
    %v905 = vshrl.u32 %v816, 16
    %v907 = vrot.slane %v905, 4
    %v908 = vshll.u32 %v816, 16
    %v910 = vrot.slane %v908, 5
    %v911 = vor.u32 %v907, %v910
    %v912 = vrot.slane %v911, 4
    %v914 = vshrl.u32 %v817, 16
    %v916 = vrot.slane %v914, 4
    %v917 = vshll.u32 %v817, 16
    %v919 = vrot.slane %v917, 5
    %v920 = vor.u32 %v916, %v919
    %v921 = vrot.slane %v920, 4
    %v923 = vshrl.u32 %v818, 16
    %v925 = vrot.slane %v923, 4
    %v926 = vshll.u32 %v818, 16
    %v928 = vrot.slane %v926, 5
    %v929 = vor.u32 %v925, %v928
    %v930 = vrot.slane %v929, 4
    %v932 = vshrl.u32 %v819, 16
    %v934 = vrot.slane %v932, 4
    %v935 = vshll.u32 %v819, 16
    %v937 = vrot.slane %v935, 5
    %v938 = vor.u32 %v934, %v937
    %v939 = vrot.slane %v938, 4
    %v941 = vshrl.u32 %v820, 16
    %v943 = vrot.slane %v941, 4
    %v944 = vshll.u32 %v820, 16
    %v946 = vrot.slane %v944, 5
    %v947 = vor.u32 %v943, %v946
    %v948 = vrot.slane %v947, 4
    %v950 = vshrl.u32 %v821, 16
    %v952 = vrot.slane %v950, 4
    %v953 = vshll.u32 %v821, 16
    %v955 = vrot.slane %v953, 5
    %v956 = vor.u32 %v952, %v955
    %v957 = vrot.slane %v956, 4
    %v959 = vshrl.u32 %v822, 16
    %v961 = vrot.slane %v959, 4
    %v962 = vshll.u32 %v822, 16
    %v964 = vrot.slane %v962, 5
    %v965 = vor.u32 %v961, %v964
    %v966 = vrot.slane %v965, 4
    %v983 = vld [vmem:[#allocation2 + $0x28] sm:$0xff]
    %v984 = vsel %vm540, %v831, %v983
    %985 = vst [vmem:[#allocation2 + $0x28] sm:$0xff] %v984
    %v986 = vld [vmem:[#allocation2 + $0x70] sm:$0xff]
    %v987 = vsel %vm540, %v840, %v986
    %988 = vst [vmem:[#allocation2 + $0x70] sm:$0xff] %v987
    %v989 = vld [vmem:[#allocation2 + $0xb8] sm:$0xff]
    %v990 = vsel %vm540, %v849, %v989
    %991 = vst [vmem:[#allocation2 + $0xb8] sm:$0xff] %v990
    %v992 = vld [vmem:[#allocation2 + $0x100] sm:$0xff]
    %v993 = vsel %vm540, %v858, %v992
    %994 = vst [vmem:[#allocation2 + $0x100] sm:$0xff] %v993
    %v995 = vld [vmem:[#allocation2 + $0x148] sm:$0xff]
    %v996 = vsel %vm540, %v867, %v995
    %997 = vst [vmem:[#allocation2 + $0x148] sm:$0xff] %v996
    %v998 = vld [vmem:[#allocation2 + $0x190] sm:$0xff]
    %v999 = vsel %vm540, %v876, %v998
    %1000 = vst [vmem:[#allocation2 + $0x190] sm:$0xff] %v999
    %v1001 = vld [vmem:[#allocation2 + $0x1d8] sm:$0xff]
    %v1002 = vsel %vm540, %v885, %v1001
    %1003 = vst [vmem:[#allocation2 + $0x1d8] sm:$0xff] %v1002
    %v1004 = vld [vmem:[#allocation2 + $0x220] sm:$0xff]
    %v1005 = vsel %vm540, %v894, %v1004
    %1006 = vst [vmem:[#allocation2 + $0x220] sm:$0xff] %v1005
    %v1007 = vld [vmem:[#allocation2 + $0x268] sm:$0xff]
    %v1008 = vsel %vm540, %v903, %v1007
    %1009 = vst [vmem:[#allocation2 + $0x268] sm:$0xff] %v1008
    %v1010 = vld [vmem:[#allocation2 + $0x2b0] sm:$0xff]
    %v1011 = vsel %vm540, %v912, %v1010
    %1012 = vst [vmem:[#allocation2 + $0x2b0] sm:$0xff] %v1011
    %v1013 = vld [vmem:[#allocation2 + $0x2f8] sm:$0xff]
    %v1014 = vsel %vm540, %v921, %v1013
    %1015 = vst [vmem:[#allocation2 + $0x2f8] sm:$0xff] %v1014
    %v1016 = vld [vmem:[#allocation2 + $0x340] sm:$0xff]
    %v1017 = vsel %vm540, %v930, %v1016
    %1018 = vst [vmem:[#allocation2 + $0x340] sm:$0xff] %v1017
    %v1019 = vld [vmem:[#allocation2 + $0x388] sm:$0xff]
    %v1020 = vsel %vm540, %v939, %v1019
    %1021 = vst [vmem:[#allocation2 + $0x388] sm:$0xff] %v1020
    %v1022 = vld [vmem:[#allocation2 + $0x3d0] sm:$0xff]
    %v1023 = vsel %vm540, %v948, %v1022
    %1024 = vst [vmem:[#allocation2 + $0x3d0] sm:$0xff] %v1023
    %v1025 = vld [vmem:[#allocation2 + $0x418] sm:$0xff]
    %v1026 = vsel %vm540, %v957, %v1025
    %1027 = vst [vmem:[#allocation2 + $0x418] sm:$0xff] %v1026
    %v1028 = vld [vmem:[#allocation2 + $0x460] sm:$0xff]
    %v1029 = vsel %vm540, %v966, %v1028
    %1030 = vst [vmem:[#allocation2 + $0x460] sm:$0xff] %v1029
    %s1031 = scalar_lea.vmem %s0, 8
    %v1032 = vld [vmem:[%s1031] sm:$0xff]
    %v1033 = vld [vmem:[%s1031 + $0x8] sm:$0xff]
    %v1034 = vld [vmem:[%s1031 + $0x10] sm:$0xff]
    %v1035 = vld [vmem:[%s1031 + $0x18] sm:$0xff]
    %v1036 = vld [vmem:[%s1031 + $0x20] sm:$0xff]
    %v1037 = vld [vmem:[%s1031 + $0x28] sm:$0xff]
    %v1038 = vld [vmem:[%s1031 + $0x30] sm:$0xff]
    %v1039 = vld [vmem:[%s1031 + $0x40] sm:$0xff]
    %v1040 = vld [vmem:[%s1031 + $0x48] sm:$0xff]
    %v1041 = vld [vmem:[%s1031 + $0x50] sm:$0xff]
    %v1042 = vld [vmem:[%s1031 + $0x58] sm:$0xff]
    %v1043 = vld [vmem:[%s1031 + $0x60] sm:$0xff]
    %v1044 = vld [vmem:[%s1031 + $0x68] sm:$0xff]
    %v1045 = vld [vmem:[%s1031 + $0x70] sm:$0xff]
    %v1047 = vshrl.u32 %v1032, 16
    %v1049 = vrot.slane %v1047, 7
    %v1050 = vshll.u32 %v1032, 16
    %v1052 = vor.u32 %v1049, %v1050
    %v1054 = vshrl.u32 %v1033, 16
    %v1056 = vrot.slane %v1054, 7
    %v1057 = vshll.u32 %v1033, 16
    %v1059 = vor.u32 %v1056, %v1057
    %v1061 = vshrl.u32 %v1034, 16
    %v1063 = vrot.slane %v1061, 7
    %v1064 = vshll.u32 %v1034, 16
    %v1066 = vor.u32 %v1063, %v1064
    %v1068 = vshrl.u32 %v1035, 16
    %v1070 = vrot.slane %v1068, 7
    %v1071 = vshll.u32 %v1035, 16
    %v1073 = vor.u32 %v1070, %v1071
    %v1075 = vshrl.u32 %v1036, 16
    %v1077 = vrot.slane %v1075, 7
    %v1078 = vshll.u32 %v1036, 16
    %v1080 = vor.u32 %v1077, %v1078
    %v1082 = vshrl.u32 %v1037, 16
    %v1084 = vrot.slane %v1082, 7
    %v1085 = vshll.u32 %v1037, 16
    %v1087 = vor.u32 %v1084, %v1085
    %v1089 = vshrl.u32 %v1038, 16
    %v1091 = vrot.slane %v1089, 7
    %v1092 = vshll.u32 %v1038, 16
    %v1094 = vor.u32 %v1091, %v1092
    %v1096 = vshrl.u32 %v1039, 16
    %v1098 = vrot.slane %v1096, 7
    %v1099 = vshll.u32 %v1039, 16
    %v1101 = vor.u32 %v1098, %v1099
    %v1103 = vshrl.u32 %v1040, 16
    %v1105 = vrot.slane %v1103, 7
    %v1106 = vshll.u32 %v1040, 16
    %v1108 = vor.u32 %v1105, %v1106
    %v1110 = vshrl.u32 %v1041, 16
    %v1112 = vrot.slane %v1110, 7
    %v1113 = vshll.u32 %v1041, 16
    %v1115 = vor.u32 %v1112, %v1113
    %v1117 = vshrl.u32 %v1042, 16
    %v1119 = vrot.slane %v1117, 7
    %v1120 = vshll.u32 %v1042, 16
    %v1122 = vor.u32 %v1119, %v1120
    %v1124 = vshrl.u32 %v1043, 16
    %v1126 = vrot.slane %v1124, 7
    %v1127 = vshll.u32 %v1043, 16
    %v1129 = vor.u32 %v1126, %v1127
    %v1131 = vshrl.u32 %v1044, 16
    %v1133 = vrot.slane %v1131, 7
    %v1134 = vshll.u32 %v1044, 16
    %v1136 = vor.u32 %v1133, %v1134
    %v1138 = vshrl.u32 %v1045, 16
    %v1140 = vrot.slane %v1138, 7
    %v1141 = vshll.u32 %v1045, 16
    %v1143 = vor.u32 %v1140, %v1141
    %v1158 = vld [vmem:[#allocation2 + $0x30] sm:$0xff]
    %v1159 = vsel %vm311, %v1052, %v1158
    %1160 = vst [vmem:[#allocation2 + $0x30] sm:$0xff] %v1159
    %v1161 = vld [vmem:[#allocation2 + $0x78] sm:$0xff]
    %v1162 = vsel %vm311, %v1059, %v1161
    %1163 = vst [vmem:[#allocation2 + $0x78] sm:$0xff] %v1162
    %v1164 = vld [vmem:[#allocation2 + $0xc0] sm:$0xff]
    %v1165 = vsel %vm311, %v1066, %v1164
    %1166 = vst [vmem:[#allocation2 + $0xc0] sm:$0xff] %v1165
    %v1167 = vld [vmem:[#allocation2 + $0x108] sm:$0xff]
    %v1168 = vsel %vm311, %v1073, %v1167
    %1169 = vst [vmem:[#allocation2 + $0x108] sm:$0xff] %v1168
    %v1170 = vld [vmem:[#allocation2 + $0x150] sm:$0xff]
    %v1171 = vsel %vm311, %v1080, %v1170
    %1172 = vst [vmem:[#allocation2 + $0x150] sm:$0xff] %v1171
    %v1173 = vld [vmem:[#allocation2 + $0x198] sm:$0xff]
    %v1174 = vsel %vm311, %v1087, %v1173
    %1175 = vst [vmem:[#allocation2 + $0x198] sm:$0xff] %v1174
    %v1176 = vld [vmem:[#allocation2 + $0x1e0] sm:$0xff]
    %v1177 = vsel %vm311, %v1094, %v1176
    %1178 = vst [vmem:[#allocation2 + $0x1e0] sm:$0xff] %v1177
    %v1179 = vld [vmem:[#allocation2 + $0x270] sm:$0xff]
    %v1180 = vsel %vm311, %v1101, %v1179
    %1181 = vst [vmem:[#allocation2 + $0x270] sm:$0xff] %v1180
    %v1182 = vld [vmem:[#allocation2 + $0x2b8] sm:$0xff]
    %v1183 = vsel %vm311, %v1108, %v1182
    %1184 = vst [vmem:[#allocation2 + $0x2b8] sm:$0xff] %v1183
    %v1185 = vld [vmem:[#allocation2 + $0x300] sm:$0xff]
    %v1186 = vsel %vm311, %v1115, %v1185
    %1187 = vst [vmem:[#allocation2 + $0x300] sm:$0xff] %v1186
    %v1188 = vld [vmem:[#allocation2 + $0x348] sm:$0xff]
    %v1189 = vsel %vm311, %v1122, %v1188
    %1190 = vst [vmem:[#allocation2 + $0x348] sm:$0xff] %v1189
    %v1191 = vld [vmem:[#allocation2 + $0x390] sm:$0xff]
    %v1192 = vsel %vm311, %v1129, %v1191
    %1193 = vst [vmem:[#allocation2 + $0x390] sm:$0xff] %v1192
    %v1194 = vld [vmem:[#allocation2 + $0x3d8] sm:$0xff]
    %v1195 = vsel %vm311, %v1136, %v1194
    %1196 = vst [vmem:[#allocation2 + $0x3d8] sm:$0xff] %v1195
    %v1197 = vld [vmem:[#allocation2 + $0x420] sm:$0xff]
    %v1198 = vsel %vm311, %v1143, %v1197
    %1199 = vst [vmem:[#allocation2 + $0x420] sm:$0xff] %v1198
    %v1200 = vld [vmem:[%s1031] sm:$0xff]
    %v1201 = vld [vmem:[%s1031 + $0x8] sm:$0xff]
    %v1202 = vld [vmem:[%s1031 + $0x10] sm:$0xff]
    %v1203 = vld [vmem:[%s1031 + $0x18] sm:$0xff]
    %v1204 = vld [vmem:[%s1031 + $0x20] sm:$0xff]
    %v1205 = vld [vmem:[%s1031 + $0x28] sm:$0xff]
    %v1206 = vld [vmem:[%s1031 + $0x30] sm:$0xff]
    %v1207 = vld [vmem:[%s1031 + $0x40] sm:$0xff]
    %v1208 = vld [vmem:[%s1031 + $0x48] sm:$0xff]
    %v1209 = vld [vmem:[%s1031 + $0x50] sm:$0xff]
    %v1210 = vld [vmem:[%s1031 + $0x58] sm:$0xff]
    %v1211 = vld [vmem:[%s1031 + $0x60] sm:$0xff]
    %v1212 = vld [vmem:[%s1031 + $0x68] sm:$0xff]
    %v1213 = vld [vmem:[%s1031 + $0x70] sm:$0xff]
    %1214 = vst [vmem:[#allocation2 + $0x38] sm:$0xff] %v1200
    %1215 = vst [vmem:[#allocation2 + $0x80] sm:$0xff] %v1201
    %1216 = vst [vmem:[#allocation2 + $0xc8] sm:$0xff] %v1202
    %1217 = vst [vmem:[#allocation2 + $0x110] sm:$0xff] %v1203
    %1218 = vst [vmem:[#allocation2 + $0x158] sm:$0xff] %v1204
    %1219 = vst [vmem:[#allocation2 + $0x1a0] sm:$0xff] %v1205
    %1220 = vst [vmem:[#allocation2 + $0x1e8] sm:$0xff] %v1206
    %1221 = vst [vmem:[#allocation2 + $0x278] sm:$0xff] %v1207
    %1222 = vst [vmem:[#allocation2 + $0x2c0] sm:$0xff] %v1208
    %1223 = vst [vmem:[#allocation2 + $0x308] sm:$0xff] %v1209
    %1224 = vst [vmem:[#allocation2 + $0x350] sm:$0xff] %v1210
    %1225 = vst [vmem:[#allocation2 + $0x398] sm:$0xff] %v1211
    %1226 = vst [vmem:[#allocation2 + $0x3e0] sm:$0xff] %v1212
    %1227 = vst [vmem:[#allocation2 + $0x428] sm:$0xff] %v1213
    %v1228 = vld [vmem:[%s1031] sm:$0xff]
    %v1229 = vld [vmem:[%s1031 + $0x8] sm:$0xff]
    %v1230 = vld [vmem:[%s1031 + $0x10] sm:$0xff]
    %v1231 = vld [vmem:[%s1031 + $0x18] sm:$0xff]
    %v1232 = vld [vmem:[%s1031 + $0x20] sm:$0xff]
    %v1233 = vld [vmem:[%s1031 + $0x28] sm:$0xff]
    %v1234 = vld [vmem:[%s1031 + $0x30] sm:$0xff]
    %v1235 = vld [vmem:[%s1031 + $0x40] sm:$0xff]
    %v1236 = vld [vmem:[%s1031 + $0x48] sm:$0xff]
    %v1237 = vld [vmem:[%s1031 + $0x50] sm:$0xff]
    %v1238 = vld [vmem:[%s1031 + $0x58] sm:$0xff]
    %v1239 = vld [vmem:[%s1031 + $0x60] sm:$0xff]
    %v1240 = vld [vmem:[%s1031 + $0x68] sm:$0xff]
    %v1241 = vld [vmem:[%s1031 + $0x70] sm:$0xff]
    %v1243 = vshrl.u32 %v1228, 16
    %v1245 = vrot.slane %v1243, 4
    %v1246 = vshll.u32 %v1228, 16
    %v1248 = vrot.slane %v1246, 5
    %v1249 = vor.u32 %v1245, %v1248
    %v1250 = vrot.slane %v1249, 4
    %v1252 = vshrl.u32 %v1229, 16
    %v1254 = vrot.slane %v1252, 4
    %v1255 = vshll.u32 %v1229, 16
    %v1257 = vrot.slane %v1255, 5
    %v1258 = vor.u32 %v1254, %v1257
    %v1259 = vrot.slane %v1258, 4
    %v1261 = vshrl.u32 %v1230, 16
    %v1263 = vrot.slane %v1261, 4
    %v1264 = vshll.u32 %v1230, 16
    %v1266 = vrot.slane %v1264, 5
    %v1267 = vor.u32 %v1263, %v1266
    %v1268 = vrot.slane %v1267, 4
    %v1270 = vshrl.u32 %v1231, 16
    %v1272 = vrot.slane %v1270, 4
    %v1273 = vshll.u32 %v1231, 16
    %v1275 = vrot.slane %v1273, 5
    %v1276 = vor.u32 %v1272, %v1275
    %v1277 = vrot.slane %v1276, 4
    %v1279 = vshrl.u32 %v1232, 16
    %v1281 = vrot.slane %v1279, 4
    %v1282 = vshll.u32 %v1232, 16
    %v1284 = vrot.slane %v1282, 5
    %v1285 = vor.u32 %v1281, %v1284
    %v1286 = vrot.slane %v1285, 4
    %v1288 = vshrl.u32 %v1233, 16
    %v1290 = vrot.slane %v1288, 4
    %v1291 = vshll.u32 %v1233, 16
    %v1293 = vrot.slane %v1291, 5
    %v1294 = vor.u32 %v1290, %v1293
    %v1295 = vrot.slane %v1294, 4
    %v1297 = vshrl.u32 %v1234, 16
    %v1299 = vrot.slane %v1297, 4
    %v1300 = vshll.u32 %v1234, 16
    %v1302 = vrot.slane %v1300, 5
    %v1303 = vor.u32 %v1299, %v1302
    %v1304 = vrot.slane %v1303, 4
    %v1306 = vshrl.u32 %v1235, 16
    %v1308 = vrot.slane %v1306, 4
    %v1309 = vshll.u32 %v1235, 16
    %v1311 = vrot.slane %v1309, 5
    %v1312 = vor.u32 %v1308, %v1311
    %v1313 = vrot.slane %v1312, 4
    %v1315 = vshrl.u32 %v1236, 16
    %v1317 = vrot.slane %v1315, 4
    %v1318 = vshll.u32 %v1236, 16
    %v1320 = vrot.slane %v1318, 5
    %v1321 = vor.u32 %v1317, %v1320
    %v1322 = vrot.slane %v1321, 4
    %v1324 = vshrl.u32 %v1237, 16
    %v1326 = vrot.slane %v1324, 4
    %v1327 = vshll.u32 %v1237, 16
    %v1329 = vrot.slane %v1327, 5
    %v1330 = vor.u32 %v1326, %v1329
    %v1331 = vrot.slane %v1330, 4
    %v1333 = vshrl.u32 %v1238, 16
    %v1335 = vrot.slane %v1333, 4
    %v1336 = vshll.u32 %v1238, 16
    %v1338 = vrot.slane %v1336, 5
    %v1339 = vor.u32 %v1335, %v1338
    %v1340 = vrot.slane %v1339, 4
    %v1342 = vshrl.u32 %v1239, 16
    %v1344 = vrot.slane %v1342, 4
    %v1345 = vshll.u32 %v1239, 16
    %v1347 = vrot.slane %v1345, 5
    %v1348 = vor.u32 %v1344, %v1347
    %v1349 = vrot.slane %v1348, 4
    %v1351 = vshrl.u32 %v1240, 16
    %v1353 = vrot.slane %v1351, 4
    %v1354 = vshll.u32 %v1240, 16
    %v1356 = vrot.slane %v1354, 5
    %v1357 = vor.u32 %v1353, %v1356
    %v1358 = vrot.slane %v1357, 4
    %v1360 = vshrl.u32 %v1241, 16
    %v1362 = vrot.slane %v1360, 4
    %v1363 = vshll.u32 %v1241, 16
    %v1365 = vrot.slane %v1363, 5
    %v1366 = vor.u32 %v1362, %v1365
    %v1367 = vrot.slane %v1366, 4
    %v1382 = vld [vmem:[#allocation2 + $0x40] sm:$0xff]
    %v1383 = vsel %vm540, %v1250, %v1382
    %1384 = vst [vmem:[#allocation2 + $0x40] sm:$0xff] %v1383
    %v1385 = vld [vmem:[#allocation2 + $0x88] sm:$0xff]
    %v1386 = vsel %vm540, %v1259, %v1385
    %1387 = vst [vmem:[#allocation2 + $0x88] sm:$0xff] %v1386
    %v1388 = vld [vmem:[#allocation2 + $0xd0] sm:$0xff]
    %v1389 = vsel %vm540, %v1268, %v1388
    %1390 = vst [vmem:[#allocation2 + $0xd0] sm:$0xff] %v1389
    %v1391 = vld [vmem:[#allocation2 + $0x118] sm:$0xff]
    %v1392 = vsel %vm540, %v1277, %v1391
    %1393 = vst [vmem:[#allocation2 + $0x118] sm:$0xff] %v1392
    %v1394 = vld [vmem:[#allocation2 + $0x160] sm:$0xff]
    %v1395 = vsel %vm540, %v1286, %v1394
    %1396 = vst [vmem:[#allocation2 + $0x160] sm:$0xff] %v1395
    %v1397 = vld [vmem:[#allocation2 + $0x1a8] sm:$0xff]
    %v1398 = vsel %vm540, %v1295, %v1397
    %1399 = vst [vmem:[#allocation2 + $0x1a8] sm:$0xff] %v1398
    %v1400 = vld [vmem:[#allocation2 + $0x1f0] sm:$0xff]
    %v1401 = vsel %vm540, %v1304, %v1400
    %1402 = vst [vmem:[#allocation2 + $0x1f0] sm:$0xff] %v1401
    %v1403 = vld [vmem:[#allocation2 + $0x280] sm:$0xff]
    %v1404 = vsel %vm540, %v1313, %v1403
    %1405 = vst [vmem:[#allocation2 + $0x280] sm:$0xff] %v1404
    %v1406 = vld [vmem:[#allocation2 + $0x2c8] sm:$0xff]
    %v1407 = vsel %vm540, %v1322, %v1406
    %1408 = vst [vmem:[#allocation2 + $0x2c8] sm:$0xff] %v1407
    %v1409 = vld [vmem:[#allocation2 + $0x310] sm:$0xff]
    %v1410 = vsel %vm540, %v1331, %v1409
    %1411 = vst [vmem:[#allocation2 + $0x310] sm:$0xff] %v1410
    %v1412 = vld [vmem:[#allocation2 + $0x358] sm:$0xff]
    %v1413 = vsel %vm540, %v1340, %v1412
    %1414 = vst [vmem:[#allocation2 + $0x358] sm:$0xff] %v1413
    %v1415 = vld [vmem:[#allocation2 + $0x3a0] sm:$0xff]
    %v1416 = vsel %vm540, %v1349, %v1415
    %1417 = vst [vmem:[#allocation2 + $0x3a0] sm:$0xff] %v1416
    %v1418 = vld [vmem:[#allocation2 + $0x3e8] sm:$0xff]
    %v1419 = vsel %vm540, %v1358, %v1418
    %1420 = vst [vmem:[#allocation2 + $0x3e8] sm:$0xff] %v1419
    %v1421 = vld [vmem:[#allocation2 + $0x430] sm:$0xff]
    %v1422 = vsel %vm540, %v1367, %v1421
    %1423 = vst [vmem:[#allocation2 + $0x430] sm:$0xff] %v1422
    %v1424 = vld [vmem:[#allocation2] sm:$0xff]
    %v1425 = vld [vmem:[#allocation2 + $0x8] sm:$0xff]
    %v1426 = vld [vmem:[#allocation2 + $0x10] sm:$0xff]
    %v1427 = vld [vmem:[#allocation2 + $0x18] sm:$0xff]
    %v1428 = vld [vmem:[#allocation2 + $0x20] sm:$0xff]
    %v1429 = vld [vmem:[#allocation2 + $0x28] sm:$0xff]
    %v1430 = vld [vmem:[#allocation2 + $0x30] sm:$0xff]
    %v1431 = vld [vmem:[#allocation2 + $0x38] sm:$0xff]
    %v1432 = vld [vmem:[#allocation2 + $0x40] sm:$0xff]
    %v1433 = vld [vmem:[#allocation2 + $0x48] sm:$0xff]
    %v1434 = vld [vmem:[#allocation2 + $0x50] sm:$0xff]
    %v1435 = vld [vmem:[#allocation2 + $0x58] sm:$0xff]
    %v1436 = vld [vmem:[#allocation2 + $0x60] sm:$0xff]
    %v1437 = vld [vmem:[#allocation2 + $0x68] sm:$0xff]
    %v1438 = vld [vmem:[#allocation2 + $0x70] sm:$0xff]
    %v1439 = vld [vmem:[#allocation2 + $0x78] sm:$0xff]
    %v1440 = vld [vmem:[#allocation2 + $0x80] sm:$0xff]
    %v1441 = vld [vmem:[#allocation2 + $0x88] sm:$0xff]
    %v1442 = vld [vmem:[#allocation2 + $0x90] sm:$0xff]
    %v1443 = vld [vmem:[#allocation2 + $0x98] sm:$0xff]
    %v1444 = vld [vmem:[#allocation2 + $0xa0] sm:$0xff]
    %v1445 = vld [vmem:[#allocation2 + $0xa8] sm:$0xff]
    %v1446 = vld [vmem:[#allocation2 + $0xb0] sm:$0xff]
    %v1447 = vld [vmem:[#allocation2 + $0xb8] sm:$0xff]
    %v1448 = vld [vmem:[#allocation2 + $0xc0] sm:$0xff]
    %v1449 = vld [vmem:[#allocation2 + $0xc8] sm:$0xff]
    %v1450 = vld [vmem:[#allocation2 + $0xd0] sm:$0xff]
    %v1451 = vld [vmem:[#allocation2 + $0xd8] sm:$0xff]
    %v1452 = vld [vmem:[#allocation2 + $0xe0] sm:$0xff]
    %v1453 = vld [vmem:[#allocation2 + $0xe8] sm:$0xff]
    %v1454 = vld [vmem:[#allocation2 + $0xf0] sm:$0xff]
    %v1455 = vld [vmem:[#allocation2 + $0xf8] sm:$0xff]
    %v1456 = vld [vmem:[#allocation2 + $0x100] sm:$0xff]
    %v1457 = vld [vmem:[#allocation2 + $0x108] sm:$0xff]
    %v1458 = vld [vmem:[#allocation2 + $0x110] sm:$0xff]
    %v1459 = vld [vmem:[#allocation2 + $0x118] sm:$0xff]
    %v1460 = vld [vmem:[#allocation2 + $0x120] sm:$0xff]
    %v1461 = vld [vmem:[#allocation2 + $0x128] sm:$0xff]
    %v1462 = vld [vmem:[#allocation2 + $0x130] sm:$0xff]
    %v1463 = vld [vmem:[#allocation2 + $0x138] sm:$0xff]
    %v1464 = vld [vmem:[#allocation2 + $0x140] sm:$0xff]
    %v1465 = vld [vmem:[#allocation2 + $0x148] sm:$0xff]
    %v1466 = vld [vmem:[#allocation2 + $0x150] sm:$0xff]
    %v1467 = vld [vmem:[#allocation2 + $0x158] sm:$0xff]
    %v1468 = vld [vmem:[#allocation2 + $0x160] sm:$0xff]
    %v1469 = vld [vmem:[#allocation2 + $0x168] sm:$0xff]
    %v1470 = vld [vmem:[#allocation2 + $0x170] sm:$0xff]
    %v1471 = vld [vmem:[#allocation2 + $0x178] sm:$0xff]
    %v1472 = vld [vmem:[#allocation2 + $0x180] sm:$0xff]
    %v1473 = vld [vmem:[#allocation2 + $0x188] sm:$0xff]
    %v1474 = vld [vmem:[#allocation2 + $0x190] sm:$0xff]
    %v1475 = vld [vmem:[#allocation2 + $0x198] sm:$0xff]
    %v1476 = vld [vmem:[#allocation2 + $0x1a0] sm:$0xff]
    %v1477 = vld [vmem:[#allocation2 + $0x1a8] sm:$0xff]
    %v1478 = vld [vmem:[#allocation2 + $0x1b0] sm:$0xff]
    %v1479 = vld [vmem:[#allocation2 + $0x1b8] sm:$0xff]
    %v1480 = vld [vmem:[#allocation2 + $0x1c0] sm:$0xff]
    %v1481 = vld [vmem:[#allocation2 + $0x1c8] sm:$0xff]
    %v1482 = vld [vmem:[#allocation2 + $0x1d0] sm:$0xff]
    %v1483 = vld [vmem:[#allocation2 + $0x1d8] sm:$0xff]
    %v1484 = vld [vmem:[#allocation2 + $0x1e0] sm:$0xff]
    %v1485 = vld [vmem:[#allocation2 + $0x1e8] sm:$0xff]
    %v1486 = vld [vmem:[#allocation2 + $0x1f0] sm:$0xff]
    %v1487 = vld [vmem:[#allocation2 + $0x1f8] sm:$0xff]
    %v1488 = vld [vmem:[#allocation2 + $0x200] sm:$0xff]
    %v1489 = vld [vmem:[#allocation2 + $0x208] sm:$0xff]
    %v1490 = vld [vmem:[#allocation2 + $0x210] sm:$0xff]
    %v1491 = vld [vmem:[#allocation2 + $0x218] sm:$0xff]
    %v1492 = vld [vmem:[#allocation2 + $0x220] sm:$0xff]
    %v1493 = vld [vmem:[#allocation2 + $0x228] sm:$0xff]
    %v1494 = vld [vmem:[#allocation2 + $0x230] sm:$0xff]
    %v1495 = vld [vmem:[#allocation2 + $0x238] sm:$0xff]
    %v1496 = vld [vmem:[#allocation2 + $0x240] sm:$0xff]
    %v1497 = vld [vmem:[#allocation2 + $0x248] sm:$0xff]
    %v1498 = vld [vmem:[#allocation2 + $0x250] sm:$0xff]
    %v1499 = vld [vmem:[#allocation2 + $0x258] sm:$0xff]
    %v1500 = vld [vmem:[#allocation2 + $0x260] sm:$0xff]
    %v1501 = vld [vmem:[#allocation2 + $0x268] sm:$0xff]
    %v1502 = vld [vmem:[#allocation2 + $0x270] sm:$0xff]
    %v1503 = vld [vmem:[#allocation2 + $0x278] sm:$0xff]
    %v1504 = vld [vmem:[#allocation2 + $0x280] sm:$0xff]
    %v1505 = vld [vmem:[#allocation2 + $0x288] sm:$0xff]
    %v1506 = vld [vmem:[#allocation2 + $0x290] sm:$0xff]
    %v1507 = vld [vmem:[#allocation2 + $0x298] sm:$0xff]
    %v1508 = vld [vmem:[#allocation2 + $0x2a0] sm:$0xff]
    %v1509 = vld [vmem:[#allocation2 + $0x2a8] sm:$0xff]
    %v1510 = vld [vmem:[#allocation2 + $0x2b0] sm:$0xff]
    %v1511 = vld [vmem:[#allocation2 + $0x2b8] sm:$0xff]
    %v1512 = vld [vmem:[#allocation2 + $0x2c0] sm:$0xff]
    %v1513 = vld [vmem:[#allocation2 + $0x2c8] sm:$0xff]
    %v1514 = vld [vmem:[#allocation2 + $0x2d0] sm:$0xff]
    %v1515 = vld [vmem:[#allocation2 + $0x2d8] sm:$0xff]
    %v1516 = vld [vmem:[#allocation2 + $0x2e0] sm:$0xff]
    %v1517 = vld [vmem:[#allocation2 + $0x2e8] sm:$0xff]
    %v1518 = vld [vmem:[#allocation2 + $0x2f0] sm:$0xff]
    %v1519 = vld [vmem:[#allocation2 + $0x2f8] sm:$0xff]
    %v1520 = vld [vmem:[#allocation2 + $0x300] sm:$0xff]
    %v1521 = vld [vmem:[#allocation2 + $0x308] sm:$0xff]
    %v1522 = vld [vmem:[#allocation2 + $0x310] sm:$0xff]
    %v1523 = vld [vmem:[#allocation2 + $0x318] sm:$0xff]
    %v1524 = vld [vmem:[#allocation2 + $0x320] sm:$0xff]
    %v1525 = vld [vmem:[#allocation2 + $0x328] sm:$0xff]
    %v1526 = vld [vmem:[#allocation2 + $0x330] sm:$0xff]
    %v1527 = vld [vmem:[#allocation2 + $0x338] sm:$0xff]
    %v1528 = vld [vmem:[#allocation2 + $0x340] sm:$0xff]
    %v1529 = vld [vmem:[#allocation2 + $0x348] sm:$0xff]
    %v1530 = vld [vmem:[#allocation2 + $0x350] sm:$0xff]
    %v1531 = vld [vmem:[#allocation2 + $0x358] sm:$0xff]
    %v1532 = vld [vmem:[#allocation2 + $0x360] sm:$0xff]
    %v1533 = vld [vmem:[#allocation2 + $0x368] sm:$0xff]
    %v1534 = vld [vmem:[#allocation2 + $0x370] sm:$0xff]
    %v1535 = vld [vmem:[#allocation2 + $0x378] sm:$0xff]
    %v1536 = vld [vmem:[#allocation2 + $0x380] sm:$0xff]
    %v1537 = vld [vmem:[#allocation2 + $0x388] sm:$0xff]
    %v1538 = vld [vmem:[#allocation2 + $0x390] sm:$0xff]
    %v1539 = vld [vmem:[#allocation2 + $0x398] sm:$0xff]
    %v1540 = vld [vmem:[#allocation2 + $0x3a0] sm:$0xff]
    %v1541 = vld [vmem:[#allocation2 + $0x3a8] sm:$0xff]
    %v1542 = vld [vmem:[#allocation2 + $0x3b0] sm:$0xff]
    %v1543 = vld [vmem:[#allocation2 + $0x3b8] sm:$0xff]
    %v1544 = vld [vmem:[#allocation2 + $0x3c0] sm:$0xff]
    %v1545 = vld [vmem:[#allocation2 + $0x3c8] sm:$0xff]
    %v1546 = vld [vmem:[#allocation2 + $0x3d0] sm:$0xff]
    %v1547 = vld [vmem:[#allocation2 + $0x3d8] sm:$0xff]
    %v1548 = vld [vmem:[#allocation2 + $0x3e0] sm:$0xff]
    %v1549 = vld [vmem:[#allocation2 + $0x3e8] sm:$0xff]
    %v1550 = vld [vmem:[#allocation2 + $0x3f0] sm:$0xff]
    %v1551 = vld [vmem:[#allocation2 + $0x3f8] sm:$0xff]
    %v1552 = vld [vmem:[#allocation2 + $0x400] sm:$0xff]
    %v1553 = vld [vmem:[#allocation2 + $0x408] sm:$0xff]
    %v1554 = vld [vmem:[#allocation2 + $0x410] sm:$0xff]
    %v1555 = vld [vmem:[#allocation2 + $0x418] sm:$0xff]
    %v1556 = vld [vmem:[#allocation2 + $0x420] sm:$0xff]
    %v1557 = vld [vmem:[#allocation2 + $0x428] sm:$0xff]
    %v1558 = vld [vmem:[#allocation2 + $0x430] sm:$0xff]
    %v1559 = vld [vmem:[#allocation2 + $0x438] sm:$0xff]
    %v1560 = vld [vmem:[#allocation2 + $0x440] sm:$0xff]
    %v1561 = vld [vmem:[#allocation2 + $0x448] sm:$0xff]
    %v1562 = vld [vmem:[#allocation2 + $0x450] sm:$0xff]
    %v1563 = vld [vmem:[#allocation2 + $0x458] sm:$0xff]
    %v1564 = vld [vmem:[#allocation2 + $0x460] sm:$0xff]
    %v1565 = vld [vmem:[#allocation2 + $0x468] sm:$0xff]
    %v1566 = vld [vmem:[#allocation2 + $0x470] sm:$0xff]
    %v1567 = vld [vmem:[#allocation2 + $0x478] sm:$0xff]
    %v1568 = vld [vmem:[%s1] sm:$0xf]
    %v1569 = vld [vmem:[%s1 + $0x4] sm:$0xf]
    %v1570 = vld [vmem:[%s1 + $0x8] sm:$0xf]
    %v1571 = vld [vmem:[%s1 + $0xc] sm:$0xf]
    %v1572 = vld [vmem:[%s1 + $0x10] sm:$0xf]
    %v1573 = vld [vmem:[%s1 + $0x14] sm:$0xf]
    %v1574 = vld [vmem:[%s1 + $0x18] sm:$0xf]
    %v1575 = vld [vmem:[%s1 + $0x1c] sm:$0xf]
    %v1576 = vld [vmem:[%s1 + $0x20] sm:$0xf]
    %v1577 = vld [vmem:[%s1 + $0x24] sm:$0xf]
    %v1578 = vld [vmem:[%s1 + $0x28] sm:$0xf]
    %v1579 = vld [vmem:[%s1 + $0x2c] sm:$0xf]
    %v1580 = vld [vmem:[%s1 + $0x30] sm:$0xf]
    %v1581 = vld [vmem:[%s1 + $0x34] sm:$0xf]
    %v1582 = vld [vmem:[%s1 + $0x38] sm:$0xf]
    %v1583 = vld [vmem:[%s1 + $0x3c] sm:$0xf]
    %v1584 = vld [vmem:[%s1 + $0x40] sm:$0xf]
    %v1585 = vld [vmem:[%s1 + $0x44] sm:$0xf]
    %v1586 = vld [vmem:[%s1 + $0x48] sm:$0xf]
    %v1587 = vld [vmem:[%s1 + $0x4c] sm:$0xf]
    %v1588 = vld [vmem:[%s1 + $0x50] sm:$0xf]
    %v1589 = vld [vmem:[%s1 + $0x54] sm:$0xf]
    %v1590 = vld [vmem:[%s1 + $0x58] sm:$0xf]
    %v1591 = vld [vmem:[%s1 + $0x5c] sm:$0xf]
    %v1592 = vld [vmem:[%s1 + $0x60] sm:$0xf]
    %v1593 = vld [vmem:[%s1 + $0x64] sm:$0xf]
    %v1594 = vld [vmem:[%s1 + $0x68] sm:$0xf]
    %v1595 = vld [vmem:[%s1 + $0x6c] sm:$0xf]
    %v1596 = vld [vmem:[%s1 + $0x70] sm:$0xf]
    %v1597 = vld [vmem:[%s1 + $0x74] sm:$0xf]
    %v1598 = vld [vmem:[%s1 + $0x78] sm:$0xf]
    %v1599 = vld [vmem:[%s1 + $0x7c] sm:$0xf]
    %v1600 = vld [vmem:[%s1 + $0x80] sm:$0xf]
    %v1601 = vld [vmem:[%s1 + $0x84] sm:$0xf]
    %v1602 = vld [vmem:[%s1 + $0x88] sm:$0xf]
    %v1603 = vld [vmem:[%s1 + $0x8c] sm:$0xf]
    %v1604 = vld [vmem:[%s1 + $0x90] sm:$0xf]
    %v1605 = vld [vmem:[%s1 + $0x94] sm:$0xf]
    %v1606 = vld [vmem:[%s1 + $0x98] sm:$0xf]
    %v1607 = vld [vmem:[%s1 + $0x9c] sm:$0xf]
    %v1608 = vld [vmem:[%s1 + $0xa0] sm:$0xf]
    %v1609 = vld [vmem:[%s1 + $0xa4] sm:$0xf]
    %v1610 = vld [vmem:[%s1 + $0xa8] sm:$0xf]
    %v1611 = vld [vmem:[%s1 + $0xac] sm:$0xf]
    %v1612 = vld [vmem:[%s1 + $0xb0] sm:$0xf]
    %v1613 = vld [vmem:[%s1 + $0xb4] sm:$0xf]
    %v1614 = vld [vmem:[%s1 + $0xb8] sm:$0xf]
    %v1615 = vld [vmem:[%s1 + $0xbc] sm:$0xf]
    %v1616 = vld [vmem:[%s1 + $0xc0] sm:$0xf]
    %v1617 = vld [vmem:[%s1 + $0xc4] sm:$0xf]
    %v1618 = vld [vmem:[%s1 + $0xc8] sm:$0xf]
    %v1619 = vld [vmem:[%s1 + $0xcc] sm:$0xf]
    %v1620 = vld [vmem:[%s1 + $0xd0] sm:$0xf]
    %v1621 = vld [vmem:[%s1 + $0xd4] sm:$0xf]
    %v1622 = vld [vmem:[%s1 + $0xd8] sm:$0xf]
    %v1623 = vld [vmem:[%s1 + $0xdc] sm:$0xf]
    %v1624 = vld [vmem:[%s1 + $0xe0] sm:$0xf]
    %v1625 = vld [vmem:[%s1 + $0xe4] sm:$0xf]
    %v1626 = vld [vmem:[%s1 + $0xe8] sm:$0xf]
    %v1627 = vld [vmem:[%s1 + $0xec] sm:$0xf]
    %v1628 = vld [vmem:[%s1 + $0xf0] sm:$0xf]
    %v1629 = vld [vmem:[%s1 + $0xf4] sm:$0xf]
    %v1630 = vld [vmem:[%s1 + $0xf8] sm:$0xf]
    %v1631 = vld [vmem:[%s1 + $0xfc] sm:$0xf]
    %v1632 = vld [vmem:[%s1 + $0x100] sm:$0xf]
    %v1633 = vld [vmem:[%s1 + $0x104] sm:$0xf]
    %v1634 = vld [vmem:[%s1 + $0x108] sm:$0xf]
    %v1635 = vld [vmem:[%s1 + $0x10c] sm:$0xf]
    %v1636 = vld [vmem:[%s1 + $0x110] sm:$0xf]
    %v1637 = vld [vmem:[%s1 + $0x114] sm:$0xf]
    %v1638 = vld [vmem:[%s1 + $0x118] sm:$0xf]
    %v1639 = vld [vmem:[%s1 + $0x11c] sm:$0xf]
    %v1640 = vld [vmem:[%s1 + $0x120] sm:$0xf]
    %v1641 = vld [vmem:[%s1 + $0x124] sm:$0xf]
    %v1642 = vld [vmem:[%s1 + $0x128] sm:$0xf]
    %v1643 = vld [vmem:[%s1 + $0x12c] sm:$0xf]
    %v1644 = vld [vmem:[%s1 + $0x130] sm:$0xf]
    %v1645 = vld [vmem:[%s1 + $0x134] sm:$0xf]
    %v1646 = vld [vmem:[%s1 + $0x138] sm:$0xf]
    %v1647 = vld [vmem:[%s1 + $0x13c] sm:$0xf]
    %v1648 = vld [vmem:[%s1 + $0x140] sm:$0xf]
    %v1649 = vld [vmem:[%s1 + $0x144] sm:$0xf]
    %v1650 = vld [vmem:[%s1 + $0x148] sm:$0xf]
    %v1651 = vld [vmem:[%s1 + $0x14c] sm:$0xf]
    %v1652 = vld [vmem:[%s1 + $0x150] sm:$0xf]
    %v1653 = vld [vmem:[%s1 + $0x154] sm:$0xf]
    %v1654 = vld [vmem:[%s1 + $0x158] sm:$0xf]
    %v1655 = vld [vmem:[%s1 + $0x15c] sm:$0xf]
    %v1656 = vld [vmem:[%s1 + $0x160] sm:$0xf]
    %v1657 = vld [vmem:[%s1 + $0x164] sm:$0xf]
    %v1658 = vld [vmem:[%s1 + $0x168] sm:$0xf]
    %v1659 = vld [vmem:[%s1 + $0x16c] sm:$0xf]
    %v1660 = vld [vmem:[%s1 + $0x170] sm:$0xf]
    %v1661 = vld [vmem:[%s1 + $0x174] sm:$0xf]
    %v1662 = vld [vmem:[%s1 + $0x178] sm:$0xf]
    %v1663 = vld [vmem:[%s1 + $0x17c] sm:$0xf]
    %v1664 = vld [vmem:[%s1 + $0x180] sm:$0xf]
    %v1665 = vld [vmem:[%s1 + $0x184] sm:$0xf]
    %v1666 = vld [vmem:[%s1 + $0x188] sm:$0xf]
    %v1667 = vld [vmem:[%s1 + $0x18c] sm:$0xf]
    %v1668 = vld [vmem:[%s1 + $0x190] sm:$0xf]
    %v1669 = vld [vmem:[%s1 + $0x194] sm:$0xf]
    %v1670 = vld [vmem:[%s1 + $0x198] sm:$0xf]
    %v1671 = vld [vmem:[%s1 + $0x19c] sm:$0xf]
    %v1672 = vld [vmem:[%s1 + $0x1a0] sm:$0xf]
    %v1673 = vld [vmem:[%s1 + $0x1a4] sm:$0xf]
    %v1674 = vld [vmem:[%s1 + $0x1a8] sm:$0xf]
    %v1675 = vld [vmem:[%s1 + $0x1ac] sm:$0xf]
    %v1676 = vld [vmem:[%s1 + $0x1b0] sm:$0xf]
    %v1677 = vld [vmem:[%s1 + $0x1b4] sm:$0xf]
    %v1678 = vld [vmem:[%s1 + $0x1b8] sm:$0xf]
    %v1679 = vld [vmem:[%s1 + $0x1bc] sm:$0xf]
    %v1680 = vld [vmem:[%s1 + $0x1c0] sm:$0xf]
    %v1681 = vld [vmem:[%s1 + $0x1c4] sm:$0xf]
    %v1682 = vld [vmem:[%s1 + $0x1c8] sm:$0xf]
    %v1683 = vld [vmem:[%s1 + $0x1cc] sm:$0xf]
    %v1684 = vld [vmem:[%s1 + $0x1d0] sm:$0xf]
    %v1685 = vld [vmem:[%s1 + $0x1d4] sm:$0xf]
    %v1686 = vld [vmem:[%s1 + $0x1d8] sm:$0xf]
    %v1687 = vld [vmem:[%s1 + $0x1dc] sm:$0xf]
    %v1688 = vld [vmem:[%s1 + $0x1e0] sm:$0xf]
    %v1689 = vld [vmem:[%s1 + $0x1e4] sm:$0xf]
    %v1690 = vld [vmem:[%s1 + $0x1e8] sm:$0xf]
    %v1691 = vld [vmem:[%s1 + $0x1ec] sm:$0xf]
    %v1692 = vld [vmem:[%s1 + $0x1f0] sm:$0xf]
    %v1693 = vld [vmem:[%s1 + $0x1f4] sm:$0xf]
    %v1694 = vld [vmem:[%s1 + $0x1f8] sm:$0xf]
    %v1695 = vld [vmem:[%s1 + $0x1fc] sm:$0xf]
    %v1696 = vld [vmem:[%s1 + $0x200] sm:$0xf]
    %v1697 = vld [vmem:[%s1 + $0x204] sm:$0xf]
    %v1698 = vld [vmem:[%s1 + $0x208] sm:$0xf]
    %v1699 = vld [vmem:[%s1 + $0x20c] sm:$0xf]
    %v1700 = vld [vmem:[%s1 + $0x210] sm:$0xf]
    %v1701 = vld [vmem:[%s1 + $0x214] sm:$0xf]
    %v1702 = vld [vmem:[%s1 + $0x218] sm:$0xf]
    %v1703 = vld [vmem:[%s1 + $0x21c] sm:$0xf]
    %v1704 = vld [vmem:[%s1 + $0x220] sm:$0xf]
    %v1705 = vld [vmem:[%s1 + $0x224] sm:$0xf]
    %v1706 = vld [vmem:[%s1 + $0x228] sm:$0xf]
    %v1707 = vld [vmem:[%s1 + $0x22c] sm:$0xf]
    %v1708 = vld [vmem:[%s1 + $0x230] sm:$0xf]
    %v1709 = vld [vmem:[%s1 + $0x234] sm:$0xf]
    %v1710 = vld [vmem:[%s1 + $0x238] sm:$0xf]
    %v1711 = vld [vmem:[%s1 + $0x23c] sm:$0xf]
    %v1712 = vld [vmem:[%s1 + $0x240] sm:$0xf]
    %v1713 = vld [vmem:[%s1 + $0x244] sm:$0xf]
    %v1714 = vld [vmem:[%s1 + $0x248] sm:$0xf]
    %v1715 = vld [vmem:[%s1 + $0x24c] sm:$0xf]
    %v1716 = vld [vmem:[%s1 + $0x250] sm:$0xf]
    %v1717 = vld [vmem:[%s1 + $0x254] sm:$0xf]
    %v1718 = vld [vmem:[%s1 + $0x258] sm:$0xf]
    %v1719 = vld [vmem:[%s1 + $0x25c] sm:$0xf]
    %v1720 = vld [vmem:[%s1 + $0x260] sm:$0xf]
    %v1721 = vld [vmem:[%s1 + $0x264] sm:$0xf]
    %v1722 = vld [vmem:[%s1 + $0x268] sm:$0xf]
    %v1723 = vld [vmem:[%s1 + $0x26c] sm:$0xf]
    %v1724 = vld [vmem:[%s1 + $0x270] sm:$0xf]
    %v1725 = vld [vmem:[%s1 + $0x274] sm:$0xf]
    %v1726 = vld [vmem:[%s1 + $0x278] sm:$0xf]
    %v1727 = vld [vmem:[%s1 + $0x27c] sm:$0xf]
    %v1728 = vld [vmem:[%s1 + $0x280] sm:$0xf]
    %v1729 = vld [vmem:[%s1 + $0x284] sm:$0xf]
    %v1730 = vld [vmem:[%s1 + $0x288] sm:$0xf]
    %v1731 = vld [vmem:[%s1 + $0x28c] sm:$0xf]
    %v1732 = vld [vmem:[%s1 + $0x290] sm:$0xf]
    %v1733 = vld [vmem:[%s1 + $0x294] sm:$0xf]
    %v1734 = vld [vmem:[%s1 + $0x298] sm:$0xf]
    %v1735 = vld [vmem:[%s1 + $0x29c] sm:$0xf]
    %v1736 = vld [vmem:[%s1 + $0x2a0] sm:$0xf]
    %v1737 = vld [vmem:[%s1 + $0x2a4] sm:$0xf]
    %v1738 = vld [vmem:[%s1 + $0x2a8] sm:$0xf]
    %v1739 = vld [vmem:[%s1 + $0x2ac] sm:$0xf]
    %v1740 = vld [vmem:[%s1 + $0x2b0] sm:$0xf]
    %v1741 = vld [vmem:[%s1 + $0x2b4] sm:$0xf]
    %v1742 = vld [vmem:[%s1 + $0x2b8] sm:$0xf]
    %v1743 = vld [vmem:[%s1 + $0x2bc] sm:$0xf]
    %v1744 = vld [vmem:[%s1 + $0x2c0] sm:$0xf]
    %v1745 = vld [vmem:[%s1 + $0x2c4] sm:$0xf]
    %v1746 = vld [vmem:[%s1 + $0x2c8] sm:$0xf]
    %v1747 = vld [vmem:[%s1 + $0x2cc] sm:$0xf]
    %v1748 = vld [vmem:[%s1 + $0x2d0] sm:$0xf]
    %v1749 = vld [vmem:[%s1 + $0x2d4] sm:$0xf]
    %v1750 = vld [vmem:[%s1 + $0x2d8] sm:$0xf]
    %v1751 = vld [vmem:[%s1 + $0x2dc] sm:$0xf]
    %v1752 = vld [vmem:[%s1 + $0x2e0] sm:$0xf]
    %v1753 = vld [vmem:[%s1 + $0x2e4] sm:$0xf]
    %v1754 = vld [vmem:[%s1 + $0x2e8] sm:$0xf]
    %v1755 = vld [vmem:[%s1 + $0x2ec] sm:$0xf]
    %v1756 = vld [vmem:[%s1 + $0x2f0] sm:$0xf]
    %v1757 = vld [vmem:[%s1 + $0x2f4] sm:$0xf]
    %v1758 = vld [vmem:[%s1 + $0x2f8] sm:$0xf]
    %v1759 = vld [vmem:[%s1 + $0x2fc] sm:$0xf]
    %v1760 = vld [vmem:[%s1 + $0x300] sm:$0xf]
    %v1761 = vld [vmem:[%s1 + $0x304] sm:$0xf]
    %v1762 = vld [vmem:[%s1 + $0x308] sm:$0xf]
    %v1763 = vld [vmem:[%s1 + $0x30c] sm:$0xf]
    %v1764 = vld [vmem:[%s1 + $0x310] sm:$0xf]
    %v1765 = vld [vmem:[%s1 + $0x314] sm:$0xf]
    %v1766 = vld [vmem:[%s1 + $0x318] sm:$0xf]
    %v1767 = vld [vmem:[%s1 + $0x31c] sm:$0xf]
    %v1768 = vld [vmem:[%s1 + $0x320] sm:$0xf]
    %v1769 = vld [vmem:[%s1 + $0x324] sm:$0xf]
    %v1770 = vld [vmem:[%s1 + $0x328] sm:$0xf]
    %v1771 = vld [vmem:[%s1 + $0x32c] sm:$0xf]
    %v1772 = vld [vmem:[%s1 + $0x330] sm:$0xf]
    %v1773 = vld [vmem:[%s1 + $0x334] sm:$0xf]
    %v1774 = vld [vmem:[%s1 + $0x338] sm:$0xf]
    %v1775 = vld [vmem:[%s1 + $0x33c] sm:$0xf]
    %v1776 = vld [vmem:[%s1 + $0x340] sm:$0xf]
    %v1777 = vld [vmem:[%s1 + $0x344] sm:$0xf]
    %v1778 = vld [vmem:[%s1 + $0x348] sm:$0xf]
    %v1779 = vld [vmem:[%s1 + $0x34c] sm:$0xf]
    %v1780 = vld [vmem:[%s1 + $0x350] sm:$0xf]
    %v1781 = vld [vmem:[%s1 + $0x354] sm:$0xf]
    %v1782 = vld [vmem:[%s1 + $0x358] sm:$0xf]
    %v1783 = vld [vmem:[%s1 + $0x35c] sm:$0xf]
    %v1784 = vld [vmem:[%s1 + $0x360] sm:$0xf]
    %v1785 = vld [vmem:[%s1 + $0x364] sm:$0xf]
    %v1786 = vld [vmem:[%s1 + $0x368] sm:$0xf]
    %v1787 = vld [vmem:[%s1 + $0x36c] sm:$0xf]
    %v1788 = vld [vmem:[%s1 + $0x370] sm:$0xf]
    %v1789 = vld [vmem:[%s1 + $0x374] sm:$0xf]
    %v1790 = vld [vmem:[%s1 + $0x378] sm:$0xf]
    %v1791 = vld [vmem:[%s1 + $0x37c] sm:$0xf]
    %v1792 = vld [vmem:[%s1 + $0x380] sm:$0xf]
    %v1793 = vld [vmem:[%s1 + $0x384] sm:$0xf]
    %v1794 = vld [vmem:[%s1 + $0x388] sm:$0xf]
    %v1795 = vld [vmem:[%s1 + $0x38c] sm:$0xf]
    %v1796 = vld [vmem:[%s1 + $0x390] sm:$0xf]
    %v1797 = vld [vmem:[%s1 + $0x394] sm:$0xf]
    %v1798 = vld [vmem:[%s1 + $0x398] sm:$0xf]
    %v1799 = vld [vmem:[%s1 + $0x39c] sm:$0xf]
    %v1800 = vld [vmem:[%s1 + $0x3a0] sm:$0xf]
    %v1801 = vld [vmem:[%s1 + $0x3a4] sm:$0xf]
    %v1802 = vld [vmem:[%s1 + $0x3a8] sm:$0xf]
    %v1803 = vld [vmem:[%s1 + $0x3ac] sm:$0xf]
    %v1804 = vld [vmem:[%s1 + $0x3b0] sm:$0xf]
    %v1805 = vld [vmem:[%s1 + $0x3b4] sm:$0xf]
    %v1806 = vld [vmem:[%s1 + $0x3b8] sm:$0xf]
    %v1807 = vld [vmem:[%s1 + $0x3bc] sm:$0xf]
    %v1808 = vld [vmem:[%s1 + $0x3c0] sm:$0xf]
    %v1809 = vld [vmem:[%s1 + $0x3c4] sm:$0xf]
    %v1810 = vld [vmem:[%s1 + $0x3c8] sm:$0xf]
    %v1811 = vld [vmem:[%s1 + $0x3cc] sm:$0xf]
    %v1812 = vld [vmem:[%s1 + $0x3d0] sm:$0xf]
    %v1813 = vld [vmem:[%s1 + $0x3d4] sm:$0xf]
    %v1814 = vld [vmem:[%s1 + $0x3d8] sm:$0xf]
    %v1815 = vld [vmem:[%s1 + $0x3dc] sm:$0xf]
    %v1816 = vld [vmem:[%s1 + $0x3e0] sm:$0xf]
    %v1817 = vld [vmem:[%s1 + $0x3e4] sm:$0xf]
    %v1818 = vld [vmem:[%s1 + $0x3e8] sm:$0xf]
    %v1819 = vld [vmem:[%s1 + $0x3ec] sm:$0xf]
    %v1820 = vld [vmem:[%s1 + $0x3f0] sm:$0xf]
    %v1821 = vld [vmem:[%s1 + $0x3f4] sm:$0xf]
    %v1822 = vld [vmem:[%s1 + $0x3f8] sm:$0xf]
    %v1823 = vld [vmem:[%s1 + $0x3fc] sm:$0xf]
    %v1824 = vld [vmem:[%s1 + $0x400] sm:$0xf]
    %v1825 = vld [vmem:[%s1 + $0x404] sm:$0xf]
    %v1826 = vld [vmem:[%s1 + $0x408] sm:$0xf]
    %v1827 = vld [vmem:[%s1 + $0x40c] sm:$0xf]
    %v1828 = vld [vmem:[%s1 + $0x410] sm:$0xf]
    %v1829 = vld [vmem:[%s1 + $0x414] sm:$0xf]
    %v1830 = vld [vmem:[%s1 + $0x418] sm:$0xf]
    %v1831 = vld [vmem:[%s1 + $0x41c] sm:$0xf]
    %v1832 = vld [vmem:[%s1 + $0x420] sm:$0xf]
    %v1833 = vld [vmem:[%s1 + $0x424] sm:$0xf]
    %v1834 = vld [vmem:[%s1 + $0x428] sm:$0xf]
    %v1835 = vld [vmem:[%s1 + $0x42c] sm:$0xf]
    %v1836 = vld [vmem:[%s1 + $0x430] sm:$0xf]
    %v1837 = vld [vmem:[%s1 + $0x434] sm:$0xf]
    %v1838 = vld [vmem:[%s1 + $0x438] sm:$0xf]
    %v1839 = vld [vmem:[%s1 + $0x43c] sm:$0xf]
    %v1840 = vld [vmem:[%s1 + $0x440] sm:$0xf]
    %v1841 = vld [vmem:[%s1 + $0x444] sm:$0xf]
    %v1842 = vld [vmem:[%s1 + $0x448] sm:$0xf]
    %v1843 = vld [vmem:[%s1 + $0x44c] sm:$0xf]
    %v1844 = vld [vmem:[%s1 + $0x450] sm:$0xf]
    %v1845 = vld [vmem:[%s1 + $0x454] sm:$0xf]
    %v1846 = vld [vmem:[%s1 + $0x458] sm:$0xf]
    %v1847 = vld [vmem:[%s1 + $0x45c] sm:$0xf]
    %v1848 = vld [vmem:[%s1 + $0x460] sm:$0xf]
    %v1849 = vld [vmem:[%s1 + $0x464] sm:$0xf]
    %v1850 = vld [vmem:[%s1 + $0x468] sm:$0xf]
    %v1851 = vld [vmem:[%s1 + $0x46c] sm:$0xf]
    %v1852 = vld [vmem:[%s1 + $0x470] sm:$0xf]
    %v1853 = vld [vmem:[%s1 + $0x474] sm:$0xf]
    %v1854 = vld [vmem:[%s1 + $0x478] sm:$0xf]
    %v1855 = vld [vmem:[%s1 + $0x47c] sm:$0xf]
    %v2000 = vunpack.c.l.b16 %v1424
    %v2001 = vunpack.c.h.b16 %v1424
    %v2002 = vunpack.c.l.b16 %v1425
    %v2003 = vunpack.c.h.b16 %v1425
    %v2004 = vunpack.c.l.b16 %v1426
    %v2005 = vunpack.c.h.b16 %v1426
    %v2006 = vunpack.c.l.b16 %v1427
    %v2007 = vunpack.c.h.b16 %v1427
    %v2008 = vunpack.c.l.b16 %v1428
    %v2009 = vunpack.c.h.b16 %v1428
    %v2010 = vunpack.c.l.b16 %v1429
    %v2011 = vunpack.c.h.b16 %v1429
    %v2012 = vunpack.c.l.b16 %v1430
    %v2013 = vunpack.c.h.b16 %v1430
    %v2014 = vunpack.c.l.b16 %v1431
    %v2015 = vunpack.c.h.b16 %v1431
    %v2016 = vunpack.c.l.b16 %v1432
    %v2017 = vunpack.c.h.b16 %v1432
    %v2018 = vunpack.c.l.b16 %v1433
    %v2019 = vunpack.c.h.b16 %v1433
    %v2020 = vunpack.c.l.b16 %v1434
    %v2021 = vunpack.c.h.b16 %v1434
    %v2022 = vunpack.c.l.b16 %v1435
    %v2023 = vunpack.c.h.b16 %v1435
    %v2024 = vunpack.c.l.b16 %v1436
    %v2025 = vunpack.c.h.b16 %v1436
    %v2026 = vunpack.c.l.b16 %v1437
    %v2027 = vunpack.c.h.b16 %v1437
    %v2028 = vunpack.c.l.b16 %v1438
    %v2029 = vunpack.c.h.b16 %v1438
    %v2030 = vunpack.c.l.b16 %v1439
    %v2031 = vunpack.c.h.b16 %v1439
    %v2032 = vunpack.c.l.b16 %v1440
    %v2033 = vunpack.c.h.b16 %v1440
    %v2034 = vunpack.c.l.b16 %v1441
    %v2035 = vunpack.c.h.b16 %v1441
    %v2036 = vunpack.c.l.b16 %v1442
    %v2037 = vunpack.c.h.b16 %v1442
    %v2038 = vunpack.c.l.b16 %v1443
    %v2039 = vunpack.c.h.b16 %v1443
    %v2040 = vunpack.c.l.b16 %v1444
    %v2041 = vunpack.c.h.b16 %v1444
    %v2042 = vunpack.c.l.b16 %v1445
    %v2043 = vunpack.c.h.b16 %v1445
    %v2044 = vunpack.c.l.b16 %v1446
    %v2045 = vunpack.c.h.b16 %v1446
    %v2046 = vunpack.c.l.b16 %v1447
    %v2047 = vunpack.c.h.b16 %v1447
    %v2048 = vunpack.c.l.b16 %v1448
    %v2049 = vunpack.c.h.b16 %v1448
    %v2050 = vunpack.c.l.b16 %v1449
    %v2051 = vunpack.c.h.b16 %v1449
    %v2052 = vunpack.c.l.b16 %v1450
    %v2053 = vunpack.c.h.b16 %v1450
    %v2054 = vunpack.c.l.b16 %v1451
    %v2055 = vunpack.c.h.b16 %v1451
    %v2056 = vunpack.c.l.b16 %v1452
    %v2057 = vunpack.c.h.b16 %v1452
    %v2058 = vunpack.c.l.b16 %v1453
    %v2059 = vunpack.c.h.b16 %v1453
    %v2060 = vunpack.c.l.b16 %v1454
    %v2061 = vunpack.c.h.b16 %v1454
    %v2062 = vunpack.c.l.b16 %v1455
    %v2063 = vunpack.c.h.b16 %v1455
    %v2064 = vunpack.c.l.b16 %v1456
    %v2065 = vunpack.c.h.b16 %v1456
    %v2066 = vunpack.c.l.b16 %v1457
    %v2067 = vunpack.c.h.b16 %v1457
    %v2068 = vunpack.c.l.b16 %v1458
    %v2069 = vunpack.c.h.b16 %v1458
    %v2070 = vunpack.c.l.b16 %v1459
    %v2071 = vunpack.c.h.b16 %v1459
    %v2072 = vunpack.c.l.b16 %v1460
    %v2073 = vunpack.c.h.b16 %v1460
    %v2074 = vunpack.c.l.b16 %v1461
    %v2075 = vunpack.c.h.b16 %v1461
    %v2076 = vunpack.c.l.b16 %v1462
    %v2077 = vunpack.c.h.b16 %v1462
    %v2078 = vunpack.c.l.b16 %v1463
    %v2079 = vunpack.c.h.b16 %v1463
    %v2080 = vunpack.c.l.b16 %v1464
    %v2081 = vunpack.c.h.b16 %v1464
    %v2082 = vunpack.c.l.b16 %v1465
    %v2083 = vunpack.c.h.b16 %v1465
    %v2084 = vunpack.c.l.b16 %v1466
    %v2085 = vunpack.c.h.b16 %v1466
    %v2086 = vunpack.c.l.b16 %v1467
    %v2087 = vunpack.c.h.b16 %v1467
    %v2088 = vunpack.c.l.b16 %v1468
    %v2089 = vunpack.c.h.b16 %v1468
    %v2090 = vunpack.c.l.b16 %v1469
    %v2091 = vunpack.c.h.b16 %v1469
    %v2092 = vunpack.c.l.b16 %v1470
    %v2093 = vunpack.c.h.b16 %v1470
    %v2094 = vunpack.c.l.b16 %v1471
    %v2095 = vunpack.c.h.b16 %v1471
    %v2096 = vunpack.c.l.b16 %v1472
    %v2097 = vunpack.c.h.b16 %v1472
    %v2098 = vunpack.c.l.b16 %v1473
    %v2099 = vunpack.c.h.b16 %v1473
    %v2100 = vunpack.c.l.b16 %v1474
    %v2101 = vunpack.c.h.b16 %v1474
    %v2102 = vunpack.c.l.b16 %v1475
    %v2103 = vunpack.c.h.b16 %v1475
    %v2104 = vunpack.c.l.b16 %v1476
    %v2105 = vunpack.c.h.b16 %v1476
    %v2106 = vunpack.c.l.b16 %v1477
    %v2107 = vunpack.c.h.b16 %v1477
    %v2108 = vunpack.c.l.b16 %v1478
    %v2109 = vunpack.c.h.b16 %v1478
    %v2110 = vunpack.c.l.b16 %v1479
    %v2111 = vunpack.c.h.b16 %v1479
    %v2112 = vunpack.c.l.b16 %v1480
    %v2113 = vunpack.c.h.b16 %v1480
    %v2114 = vunpack.c.l.b16 %v1481
    %v2115 = vunpack.c.h.b16 %v1481
    %v2116 = vunpack.c.l.b16 %v1482
    %v2117 = vunpack.c.h.b16 %v1482
    %v2118 = vunpack.c.l.b16 %v1483
    %v2119 = vunpack.c.h.b16 %v1483
    %v2120 = vunpack.c.l.b16 %v1484
    %v2121 = vunpack.c.h.b16 %v1484
    %v2122 = vunpack.c.l.b16 %v1485
    %v2123 = vunpack.c.h.b16 %v1485
    %v2124 = vunpack.c.l.b16 %v1486
    %v2125 = vunpack.c.h.b16 %v1486
    %v2126 = vunpack.c.l.b16 %v1487
    %v2127 = vunpack.c.h.b16 %v1487
    %v2128 = vunpack.c.l.b16 %v1488
    %v2129 = vunpack.c.h.b16 %v1488
    %v2130 = vunpack.c.l.b16 %v1489
    %v2131 = vunpack.c.h.b16 %v1489
    %v2132 = vunpack.c.l.b16 %v1490
    %v2133 = vunpack.c.h.b16 %v1490
    %v2134 = vunpack.c.l.b16 %v1491
    %v2135 = vunpack.c.h.b16 %v1491
    %v2136 = vunpack.c.l.b16 %v1492
    %v2137 = vunpack.c.h.b16 %v1492
    %v2138 = vunpack.c.l.b16 %v1493
    %v2139 = vunpack.c.h.b16 %v1493
    %v2140 = vunpack.c.l.b16 %v1494
    %v2141 = vunpack.c.h.b16 %v1494
    %v2142 = vunpack.c.l.b16 %v1495
    %v2143 = vunpack.c.h.b16 %v1495
    %v2144 = vunpack.c.l.b16 %v1496
    %v2145 = vunpack.c.h.b16 %v1496
    %v2146 = vunpack.c.l.b16 %v1497
    %v2147 = vunpack.c.h.b16 %v1497
    %v2148 = vunpack.c.l.b16 %v1498
    %v2149 = vunpack.c.h.b16 %v1498
    %v2150 = vunpack.c.l.b16 %v1499
    %v2151 = vunpack.c.h.b16 %v1499
    %v2152 = vunpack.c.l.b16 %v1500
    %v2153 = vunpack.c.h.b16 %v1500
    %v2154 = vunpack.c.l.b16 %v1501
    %v2155 = vunpack.c.h.b16 %v1501
    %v2156 = vunpack.c.l.b16 %v1502
    %v2157 = vunpack.c.h.b16 %v1502
    %v2158 = vunpack.c.l.b16 %v1503
    %v2159 = vunpack.c.h.b16 %v1503
    %v2160 = vunpack.c.l.b16 %v1504
    %v2161 = vunpack.c.h.b16 %v1504
    %v2162 = vunpack.c.l.b16 %v1505
    %v2163 = vunpack.c.h.b16 %v1505
    %v2164 = vunpack.c.l.b16 %v1506
    %v2165 = vunpack.c.h.b16 %v1506
    %v2166 = vunpack.c.l.b16 %v1507
    %v2167 = vunpack.c.h.b16 %v1507
    %v2168 = vunpack.c.l.b16 %v1508
    %v2169 = vunpack.c.h.b16 %v1508
    %v2170 = vunpack.c.l.b16 %v1509
    %v2171 = vunpack.c.h.b16 %v1509
    %v2172 = vunpack.c.l.b16 %v1510
    %v2173 = vunpack.c.h.b16 %v1510
    %v2174 = vunpack.c.l.b16 %v1511
    %v2175 = vunpack.c.h.b16 %v1511
    %v2176 = vunpack.c.l.b16 %v1512
    %v2177 = vunpack.c.h.b16 %v1512
    %v2178 = vunpack.c.l.b16 %v1513
    %v2179 = vunpack.c.h.b16 %v1513
    %v2180 = vunpack.c.l.b16 %v1514
    %v2181 = vunpack.c.h.b16 %v1514
    %v2182 = vunpack.c.l.b16 %v1515
    %v2183 = vunpack.c.h.b16 %v1515
    %v2184 = vunpack.c.l.b16 %v1516
    %v2185 = vunpack.c.h.b16 %v1516
    %v2186 = vunpack.c.l.b16 %v1517
    %v2187 = vunpack.c.h.b16 %v1517
    %v2188 = vunpack.c.l.b16 %v1518
    %v2189 = vunpack.c.h.b16 %v1518
    %v2190 = vunpack.c.l.b16 %v1519
    %v2191 = vunpack.c.h.b16 %v1519
    %v2192 = vunpack.c.l.b16 %v1520
    %v2193 = vunpack.c.h.b16 %v1520
    %v2194 = vunpack.c.l.b16 %v1521
    %v2195 = vunpack.c.h.b16 %v1521
    %v2196 = vunpack.c.l.b16 %v1522
    %v2197 = vunpack.c.h.b16 %v1522
    %v2198 = vunpack.c.l.b16 %v1523
    %v2199 = vunpack.c.h.b16 %v1523
    %v2200 = vunpack.c.l.b16 %v1524
    %v2201 = vunpack.c.h.b16 %v1524
    %v2202 = vunpack.c.l.b16 %v1525
    %v2203 = vunpack.c.h.b16 %v1525
    %v2204 = vunpack.c.l.b16 %v1526
    %v2205 = vunpack.c.h.b16 %v1526
    %v2206 = vunpack.c.l.b16 %v1527
    %v2207 = vunpack.c.h.b16 %v1527
    %v2208 = vunpack.c.l.b16 %v1528
    %v2209 = vunpack.c.h.b16 %v1528
    %v2210 = vunpack.c.l.b16 %v1529
    %v2211 = vunpack.c.h.b16 %v1529
    %v2212 = vunpack.c.l.b16 %v1530
    %v2213 = vunpack.c.h.b16 %v1530
    %v2214 = vunpack.c.l.b16 %v1531
    %v2215 = vunpack.c.h.b16 %v1531
    %v2216 = vunpack.c.l.b16 %v1532
    %v2217 = vunpack.c.h.b16 %v1532
    %v2218 = vunpack.c.l.b16 %v1533
    %v2219 = vunpack.c.h.b16 %v1533
    %v2220 = vunpack.c.l.b16 %v1534
    %v2221 = vunpack.c.h.b16 %v1534
    %v2222 = vunpack.c.l.b16 %v1535
    %v2223 = vunpack.c.h.b16 %v1535
    %v2224 = vunpack.c.l.b16 %v1536
    %v2225 = vunpack.c.h.b16 %v1536
    %v2226 = vunpack.c.l.b16 %v1537
    %v2227 = vunpack.c.h.b16 %v1537
    %v2228 = vunpack.c.l.b16 %v1538
    %v2229 = vunpack.c.h.b16 %v1538
    %v2230 = vunpack.c.l.b16 %v1539
    %v2231 = vunpack.c.h.b16 %v1539
    %v2232 = vunpack.c.l.b16 %v1540
    %v2233 = vunpack.c.h.b16 %v1540
    %v2234 = vunpack.c.l.b16 %v1541
    %v2235 = vunpack.c.h.b16 %v1541
    %v2236 = vunpack.c.l.b16 %v1542
    %v2237 = vunpack.c.h.b16 %v1542
    %v2238 = vunpack.c.l.b16 %v1543
    %v2239 = vunpack.c.h.b16 %v1543
    %v2240 = vunpack.c.l.b16 %v1544
    %v2241 = vunpack.c.h.b16 %v1544
    %v2242 = vunpack.c.l.b16 %v1545
    %v2243 = vunpack.c.h.b16 %v1545
    %v2244 = vunpack.c.l.b16 %v1546
    %v2245 = vunpack.c.h.b16 %v1546
    %v2246 = vunpack.c.l.b16 %v1547
    %v2247 = vunpack.c.h.b16 %v1547
    %v2248 = vunpack.c.l.b16 %v1548
    %v2249 = vunpack.c.h.b16 %v1548
    %v2250 = vunpack.c.l.b16 %v1549
    %v2251 = vunpack.c.h.b16 %v1549
    %v2252 = vunpack.c.l.b16 %v1550
    %v2253 = vunpack.c.h.b16 %v1550
    %v2254 = vunpack.c.l.b16 %v1551
    %v2255 = vunpack.c.h.b16 %v1551
    %v2256 = vunpack.c.l.b16 %v1552
    %v2257 = vunpack.c.h.b16 %v1552
    %v2258 = vunpack.c.l.b16 %v1553
    %v2259 = vunpack.c.h.b16 %v1553
    %v2260 = vunpack.c.l.b16 %v1554
    %v2261 = vunpack.c.h.b16 %v1554
    %v2262 = vunpack.c.l.b16 %v1555
    %v2263 = vunpack.c.h.b16 %v1555
    %v2264 = vunpack.c.l.b16 %v1556
    %v2265 = vunpack.c.h.b16 %v1556
    %v2266 = vunpack.c.l.b16 %v1557
    %v2267 = vunpack.c.h.b16 %v1557
    %v2268 = vunpack.c.l.b16 %v1558
    %v2269 = vunpack.c.h.b16 %v1558
    %v2270 = vunpack.c.l.b16 %v1559
    %v2271 = vunpack.c.h.b16 %v1559
    %v2272 = vunpack.c.l.b16 %v1560
    %v2273 = vunpack.c.h.b16 %v1560
    %v2274 = vunpack.c.l.b16 %v1561
    %v2275 = vunpack.c.h.b16 %v1561
    %v2276 = vunpack.c.l.b16 %v1562
    %v2277 = vunpack.c.h.b16 %v1562
    %v2278 = vunpack.c.l.b16 %v1563
    %v2279 = vunpack.c.h.b16 %v1563
    %v2280 = vunpack.c.l.b16 %v1564
    %v2281 = vunpack.c.h.b16 %v1564
    %v2282 = vunpack.c.l.b16 %v1565
    %v2283 = vunpack.c.h.b16 %v1565
    %v2284 = vunpack.c.l.b16 %v1566
    %v2285 = vunpack.c.h.b16 %v1566
    %v2286 = vunpack.c.l.b16 %v1567
    %v2287 = vunpack.c.h.b16 %v1567
    %v2288 = vpack.c.b16 %v2018, %v2000
    %v2289 = vpack.c.b16 %v2019, %v2001
    %v2290 = vpack.c.b16 %v2020, %v2002
    %v2291 = vpack.c.b16 %v2021, %v2003
    %v2292 = vpack.c.b16 %v2022, %v2004
    %v2293 = vpack.c.b16 %v2023, %v2005
    %v2294 = vpack.c.b16 %v2024, %v2006
    %v2295 = vpack.c.b16 %v2025, %v2007
    %v2296 = vpack.c.b16 %v2026, %v2008
    %v2297 = vpack.c.b16 %v2027, %v2009
    %v2298 = vpack.c.b16 %v2028, %v2010
    %v2299 = vpack.c.b16 %v2029, %v2011
    %v2300 = vpack.c.b16 %v2030, %v2012
    %v2301 = vpack.c.b16 %v2031, %v2013
    %v2302 = vpack.c.b16 %v2032, %v2014
    %v2303 = vpack.c.b16 %v2033, %v2015
    %v2304 = vpack.c.b16 %v2034, %v2016
    %v2305 = vpack.c.b16 %v2035, %v2017
    %v2306 = vpack.c.b16 %v2054, %v2036
    %v2307 = vpack.c.b16 %v2055, %v2037
    %v2308 = vpack.c.b16 %v2056, %v2038
    %v2309 = vpack.c.b16 %v2057, %v2039
    %v2310 = vpack.c.b16 %v2058, %v2040
    %v2311 = vpack.c.b16 %v2059, %v2041
    %v2312 = vpack.c.b16 %v2060, %v2042
    %v2313 = vpack.c.b16 %v2061, %v2043
    %v2314 = vpack.c.b16 %v2062, %v2044
    %v2315 = vpack.c.b16 %v2063, %v2045
    %v2316 = vpack.c.b16 %v2064, %v2046
    %v2317 = vpack.c.b16 %v2065, %v2047
    %v2318 = vpack.c.b16 %v2066, %v2048
    %v2319 = vpack.c.b16 %v2067, %v2049
    %v2320 = vpack.c.b16 %v2068, %v2050
    %v2321 = vpack.c.b16 %v2069, %v2051
    %v2322 = vpack.c.b16 %v2070, %v2052
    %v2323 = vpack.c.b16 %v2071, %v2053
    %v2324 = vpack.c.b16 %v2090, %v2072
    %v2325 = vpack.c.b16 %v2091, %v2073
    %v2326 = vpack.c.b16 %v2092, %v2074
    %v2327 = vpack.c.b16 %v2093, %v2075
    %v2328 = vpack.c.b16 %v2094, %v2076
    %v2329 = vpack.c.b16 %v2095, %v2077
    %v2330 = vpack.c.b16 %v2096, %v2078
    %v2331 = vpack.c.b16 %v2097, %v2079
    %v2332 = vpack.c.b16 %v2098, %v2080
    %v2333 = vpack.c.b16 %v2099, %v2081
    %v2334 = vpack.c.b16 %v2100, %v2082
    %v2335 = vpack.c.b16 %v2101, %v2083
    %v2336 = vpack.c.b16 %v2102, %v2084
    %v2337 = vpack.c.b16 %v2103, %v2085
    %v2338 = vpack.c.b16 %v2104, %v2086
    %v2339 = vpack.c.b16 %v2105, %v2087
    %v2340 = vpack.c.b16 %v2106, %v2088
    %v2341 = vpack.c.b16 %v2107, %v2089
    %v2342 = vpack.c.b16 %v2126, %v2108
    %v2343 = vpack.c.b16 %v2127, %v2109
    %v2344 = vpack.c.b16 %v2128, %v2110
    %v2345 = vpack.c.b16 %v2129, %v2111
    %v2346 = vpack.c.b16 %v2130, %v2112
    %v2347 = vpack.c.b16 %v2131, %v2113
    %v2348 = vpack.c.b16 %v2132, %v2114
    %v2349 = vpack.c.b16 %v2133, %v2115
    %v2350 = vpack.c.b16 %v2134, %v2116
    %v2351 = vpack.c.b16 %v2135, %v2117
    %v2352 = vpack.c.b16 %v2136, %v2118
    %v2353 = vpack.c.b16 %v2137, %v2119
    %v2354 = vpack.c.b16 %v2138, %v2120
    %v2355 = vpack.c.b16 %v2139, %v2121
    %v2356 = vpack.c.b16 %v2140, %v2122
    %v2357 = vpack.c.b16 %v2141, %v2123
    %v2358 = vpack.c.b16 %v2142, %v2124
    %v2359 = vpack.c.b16 %v2143, %v2125
    %v2360 = vpack.c.b16 %v2162, %v2144
    %v2361 = vpack.c.b16 %v2163, %v2145
    %v2362 = vpack.c.b16 %v2164, %v2146
    %v2363 = vpack.c.b16 %v2165, %v2147
    %v2364 = vpack.c.b16 %v2166, %v2148
    %v2365 = vpack.c.b16 %v2167, %v2149
    %v2366 = vpack.c.b16 %v2168, %v2150
    %v2367 = vpack.c.b16 %v2169, %v2151
    %v2368 = vpack.c.b16 %v2170, %v2152
    %v2369 = vpack.c.b16 %v2171, %v2153
    %v2370 = vpack.c.b16 %v2172, %v2154
    %v2371 = vpack.c.b16 %v2173, %v2155
    %v2372 = vpack.c.b16 %v2174, %v2156
    %v2373 = vpack.c.b16 %v2175, %v2157
    %v2374 = vpack.c.b16 %v2176, %v2158
    %v2375 = vpack.c.b16 %v2177, %v2159
    %v2376 = vpack.c.b16 %v2178, %v2160
    %v2377 = vpack.c.b16 %v2179, %v2161
    %v2378 = vpack.c.b16 %v2198, %v2180
    %v2379 = vpack.c.b16 %v2199, %v2181
    %v2380 = vpack.c.b16 %v2200, %v2182
    %v2381 = vpack.c.b16 %v2201, %v2183
    %v2382 = vpack.c.b16 %v2202, %v2184
    %v2383 = vpack.c.b16 %v2203, %v2185
    %v2384 = vpack.c.b16 %v2204, %v2186
    %v2385 = vpack.c.b16 %v2205, %v2187
    %v2386 = vpack.c.b16 %v2206, %v2188
    %v2387 = vpack.c.b16 %v2207, %v2189
    %v2388 = vpack.c.b16 %v2208, %v2190
    %v2389 = vpack.c.b16 %v2209, %v2191
    %v2390 = vpack.c.b16 %v2210, %v2192
    %v2391 = vpack.c.b16 %v2211, %v2193
    %v2392 = vpack.c.b16 %v2212, %v2194
    %v2393 = vpack.c.b16 %v2213, %v2195
    %v2394 = vpack.c.b16 %v2214, %v2196
    %v2395 = vpack.c.b16 %v2215, %v2197
    %v2396 = vpack.c.b16 %v2234, %v2216
    %v2397 = vpack.c.b16 %v2235, %v2217
    %v2398 = vpack.c.b16 %v2236, %v2218
    %v2399 = vpack.c.b16 %v2237, %v2219
    %v2400 = vpack.c.b16 %v2238, %v2220
    %v2401 = vpack.c.b16 %v2239, %v2221
    %v2402 = vpack.c.b16 %v2240, %v2222
    %v2403 = vpack.c.b16 %v2241, %v2223
    %v2404 = vpack.c.b16 %v2242, %v2224
    %v2405 = vpack.c.b16 %v2243, %v2225
    %v2406 = vpack.c.b16 %v2244, %v2226
    %v2407 = vpack.c.b16 %v2245, %v2227
    %v2408 = vpack.c.b16 %v2246, %v2228
    %v2409 = vpack.c.b16 %v2247, %v2229
    %v2410 = vpack.c.b16 %v2248, %v2230
    %v2411 = vpack.c.b16 %v2249, %v2231
    %v2412 = vpack.c.b16 %v2250, %v2232
    %v2413 = vpack.c.b16 %v2251, %v2233
    %v2414 = vpack.c.b16 %v2270, %v2252
    %v2415 = vpack.c.b16 %v2271, %v2253
    %v2416 = vpack.c.b16 %v2272, %v2254
    %v2417 = vpack.c.b16 %v2273, %v2255
    %v2418 = vpack.c.b16 %v2274, %v2256
    %v2419 = vpack.c.b16 %v2275, %v2257
    %v2420 = vpack.c.b16 %v2276, %v2258
    %v2421 = vpack.c.b16 %v2277, %v2259
    %v2422 = vpack.c.b16 %v2278, %v2260
    %v2423 = vpack.c.b16 %v2279, %v2261
    %v2424 = vpack.c.b16 %v2280, %v2262
    %v2425 = vpack.c.b16 %v2281, %v2263
    %v2426 = vpack.c.b16 %v2282, %v2264
    %v2427 = vpack.c.b16 %v2283, %v2265
    %v2428 = vpack.c.b16 %v2284, %v2266
    %v2429 = vpack.c.b16 %v2285, %v2267
    %v2430 = vpack.c.b16 %v2286, %v2268
    %v2431 = vpack.c.b16 %v2287, %v2269
    %v2864 = vunpack.c.l.b16 %v1568
    %v2865 = vunpack.c.l.b16 %v1569
    %v2866 = vunpack.c.l.b16 %v1570
    %v2867 = vunpack.c.l.b16 %v1571
    %v2868 = vunpack.c.l.b16 %v1572
    %v2869 = vunpack.c.l.b16 %v1573
    %v2870 = vunpack.c.l.b16 %v1574
    %v2871 = vunpack.c.l.b16 %v1575
    %v2872 = vunpack.c.l.b16 %v1576
    %v2873 = vunpack.c.l.b16 %v1577
    %v2874 = vunpack.c.l.b16 %v1578
    %v2875 = vunpack.c.l.b16 %v1579
    %v2876 = vunpack.c.l.b16 %v1580
    %v2877 = vunpack.c.l.b16 %v1581
    %v2878 = vunpack.c.l.b16 %v1582
    %v2879 = vunpack.c.l.b16 %v1583
    %v2880 = vunpack.c.l.b16 %v1584
    %v2881 = vunpack.c.l.b16 %v1585
    %v2882 = vunpack.c.l.b16 %v1586
    %v2883 = vunpack.c.l.b16 %v1587
    %v2884 = vunpack.c.l.b16 %v1588
    %v2885 = vunpack.c.l.b16 %v1589
    %v2886 = vunpack.c.l.b16 %v1590
    %v2887 = vunpack.c.l.b16 %v1591
    %v2888 = vunpack.c.l.b16 %v1592
    %v2889 = vunpack.c.l.b16 %v1593
    %v2890 = vunpack.c.l.b16 %v1594
    %v2891 = vunpack.c.l.b16 %v1595
    %v2892 = vunpack.c.l.b16 %v1596
    %v2893 = vunpack.c.l.b16 %v1597
    %v2894 = vunpack.c.l.b16 %v1598
    %v2895 = vunpack.c.l.b16 %v1599
    %v2896 = vunpack.c.l.b16 %v1600
    %v2897 = vunpack.c.l.b16 %v1601
    %v2898 = vunpack.c.l.b16 %v1602
    %v2899 = vunpack.c.l.b16 %v1603
    %v2900 = vunpack.c.l.b16 %v1604
    %v2901 = vunpack.c.l.b16 %v1605
    %v2902 = vunpack.c.l.b16 %v1606
    %v2903 = vunpack.c.l.b16 %v1607
    %v2904 = vunpack.c.l.b16 %v1608
    %v2905 = vunpack.c.l.b16 %v1609
    %v2906 = vunpack.c.l.b16 %v1610
    %v2907 = vunpack.c.l.b16 %v1611
    %v2908 = vunpack.c.l.b16 %v1612
    %v2909 = vunpack.c.l.b16 %v1613
    %v2910 = vunpack.c.l.b16 %v1614
    %v2911 = vunpack.c.l.b16 %v1615
    %v2912 = vunpack.c.l.b16 %v1616
    %v2913 = vunpack.c.l.b16 %v1617
    %v2914 = vunpack.c.l.b16 %v1618
    %v2915 = vunpack.c.l.b16 %v1619
    %v2916 = vunpack.c.l.b16 %v1620
    %v2917 = vunpack.c.l.b16 %v1621
    %v2918 = vunpack.c.l.b16 %v1622
    %v2919 = vunpack.c.l.b16 %v1623
    %v2920 = vunpack.c.l.b16 %v1624
    %v2921 = vunpack.c.l.b16 %v1625
    %v2922 = vunpack.c.l.b16 %v1626
    %v2923 = vunpack.c.l.b16 %v1627
    %v2924 = vunpack.c.l.b16 %v1628
    %v2925 = vunpack.c.l.b16 %v1629
    %v2926 = vunpack.c.l.b16 %v1630
    %v2927 = vunpack.c.l.b16 %v1631
    %v2928 = vunpack.c.l.b16 %v1632
    %v2929 = vunpack.c.l.b16 %v1633
    %v2930 = vunpack.c.l.b16 %v1634
    %v2931 = vunpack.c.l.b16 %v1635
    %v2932 = vunpack.c.l.b16 %v1636
    %v2933 = vunpack.c.l.b16 %v1637
    %v2934 = vunpack.c.l.b16 %v1638
    %v2935 = vunpack.c.l.b16 %v1639
    %v2936 = vunpack.c.l.b16 %v1640
    %v2937 = vunpack.c.l.b16 %v1641
    %v2938 = vunpack.c.l.b16 %v1642
    %v2939 = vunpack.c.l.b16 %v1643
    %v2940 = vunpack.c.l.b16 %v1644
    %v2941 = vunpack.c.l.b16 %v1645
    %v2942 = vunpack.c.l.b16 %v1646
    %v2943 = vunpack.c.l.b16 %v1647
    %v2944 = vunpack.c.l.b16 %v1648
    %v2945 = vunpack.c.l.b16 %v1649
    %v2946 = vunpack.c.l.b16 %v1650
    %v2947 = vunpack.c.l.b16 %v1651
    %v2948 = vunpack.c.l.b16 %v1652
    %v2949 = vunpack.c.l.b16 %v1653
    %v2950 = vunpack.c.l.b16 %v1654
    %v2951 = vunpack.c.l.b16 %v1655
    %v2952 = vunpack.c.l.b16 %v1656
    %v2953 = vunpack.c.l.b16 %v1657
    %v2954 = vunpack.c.l.b16 %v1658
    %v2955 = vunpack.c.l.b16 %v1659
    %v2956 = vunpack.c.l.b16 %v1660
    %v2957 = vunpack.c.l.b16 %v1661
    %v2958 = vunpack.c.l.b16 %v1662
    %v2959 = vunpack.c.l.b16 %v1663
    %v2960 = vunpack.c.l.b16 %v1664
    %v2961 = vunpack.c.l.b16 %v1665
    %v2962 = vunpack.c.l.b16 %v1666
    %v2963 = vunpack.c.l.b16 %v1667
    %v2964 = vunpack.c.l.b16 %v1668
    %v2965 = vunpack.c.l.b16 %v1669
    %v2966 = vunpack.c.l.b16 %v1670
    %v2967 = vunpack.c.l.b16 %v1671
    %v2968 = vunpack.c.l.b16 %v1672
    %v2969 = vunpack.c.l.b16 %v1673
    %v2970 = vunpack.c.l.b16 %v1674
    %v2971 = vunpack.c.l.b16 %v1675
    %v2972 = vunpack.c.l.b16 %v1676
    %v2973 = vunpack.c.l.b16 %v1677
    %v2974 = vunpack.c.l.b16 %v1678
    %v2975 = vunpack.c.l.b16 %v1679
    %v2976 = vunpack.c.l.b16 %v1680
    %v2977 = vunpack.c.l.b16 %v1681
    %v2978 = vunpack.c.l.b16 %v1682
    %v2979 = vunpack.c.l.b16 %v1683
    %v2980 = vunpack.c.l.b16 %v1684
    %v2981 = vunpack.c.l.b16 %v1685
    %v2982 = vunpack.c.l.b16 %v1686
    %v2983 = vunpack.c.l.b16 %v1687
    %v2984 = vunpack.c.l.b16 %v1688
    %v2985 = vunpack.c.l.b16 %v1689
    %v2986 = vunpack.c.l.b16 %v1690
    %v2987 = vunpack.c.l.b16 %v1691
    %v2988 = vunpack.c.l.b16 %v1692
    %v2989 = vunpack.c.l.b16 %v1693
    %v2990 = vunpack.c.l.b16 %v1694
    %v2991 = vunpack.c.l.b16 %v1695
    %v2992 = vunpack.c.l.b16 %v1696
    %v2993 = vunpack.c.l.b16 %v1697
    %v2994 = vunpack.c.l.b16 %v1698
    %v2995 = vunpack.c.l.b16 %v1699
    %v2996 = vunpack.c.l.b16 %v1700
    %v2997 = vunpack.c.l.b16 %v1701
    %v2998 = vunpack.c.l.b16 %v1702
    %v2999 = vunpack.c.l.b16 %v1703
    %v3000 = vunpack.c.l.b16 %v1704
    %v3001 = vunpack.c.l.b16 %v1705
    %v3002 = vunpack.c.l.b16 %v1706
    %v3003 = vunpack.c.l.b16 %v1707
    %v3004 = vunpack.c.l.b16 %v1708
    %v3005 = vunpack.c.l.b16 %v1709
    %v3006 = vunpack.c.l.b16 %v1710
    %v3007 = vunpack.c.l.b16 %v1711
    %v3008 = vunpack.c.l.b16 %v1712
    %v3009 = vunpack.c.l.b16 %v1713
    %v3010 = vunpack.c.l.b16 %v1714
    %v3011 = vunpack.c.l.b16 %v1715
    %v3012 = vunpack.c.l.b16 %v1716
    %v3013 = vunpack.c.l.b16 %v1717
    %v3014 = vunpack.c.l.b16 %v1718
    %v3015 = vunpack.c.l.b16 %v1719
    %v3016 = vunpack.c.l.b16 %v1720
    %v3017 = vunpack.c.l.b16 %v1721
    %v3018 = vunpack.c.l.b16 %v1722
    %v3019 = vunpack.c.l.b16 %v1723
    %v3020 = vunpack.c.l.b16 %v1724
    %v3021 = vunpack.c.l.b16 %v1725
    %v3022 = vunpack.c.l.b16 %v1726
    %v3023 = vunpack.c.l.b16 %v1727
    %v3024 = vunpack.c.l.b16 %v1728
    %v3025 = vunpack.c.l.b16 %v1729
    %v3026 = vunpack.c.l.b16 %v1730
    %v3027 = vunpack.c.l.b16 %v1731
    %v3028 = vunpack.c.l.b16 %v1732
    %v3029 = vunpack.c.l.b16 %v1733
    %v3030 = vunpack.c.l.b16 %v1734
    %v3031 = vunpack.c.l.b16 %v1735
    %v3032 = vunpack.c.l.b16 %v1736
    %v3033 = vunpack.c.l.b16 %v1737
    %v3034 = vunpack.c.l.b16 %v1738
    %v3035 = vunpack.c.l.b16 %v1739
    %v3036 = vunpack.c.l.b16 %v1740
    %v3037 = vunpack.c.l.b16 %v1741
    %v3038 = vunpack.c.l.b16 %v1742
    %v3039 = vunpack.c.l.b16 %v1743
    %v3040 = vunpack.c.l.b16 %v1744
    %v3041 = vunpack.c.l.b16 %v1745
    %v3042 = vunpack.c.l.b16 %v1746
    %v3043 = vunpack.c.l.b16 %v1747
    %v3044 = vunpack.c.l.b16 %v1748
    %v3045 = vunpack.c.l.b16 %v1749
    %v3046 = vunpack.c.l.b16 %v1750
    %v3047 = vunpack.c.l.b16 %v1751
    %v3048 = vunpack.c.l.b16 %v1752
    %v3049 = vunpack.c.l.b16 %v1753
    %v3050 = vunpack.c.l.b16 %v1754
    %v3051 = vunpack.c.l.b16 %v1755
    %v3052 = vunpack.c.l.b16 %v1756
    %v3053 = vunpack.c.l.b16 %v1757
    %v3054 = vunpack.c.l.b16 %v1758
    %v3055 = vunpack.c.l.b16 %v1759
    %v3056 = vunpack.c.l.b16 %v1760
    %v3057 = vunpack.c.l.b16 %v1761
    %v3058 = vunpack.c.l.b16 %v1762
    %v3059 = vunpack.c.l.b16 %v1763
    %v3060 = vunpack.c.l.b16 %v1764
    %v3061 = vunpack.c.l.b16 %v1765
    %v3062 = vunpack.c.l.b16 %v1766
    %v3063 = vunpack.c.l.b16 %v1767
    %v3064 = vunpack.c.l.b16 %v1768
    %v3065 = vunpack.c.l.b16 %v1769
    %v3066 = vunpack.c.l.b16 %v1770
    %v3067 = vunpack.c.l.b16 %v1771
    %v3068 = vunpack.c.l.b16 %v1772
    %v3069 = vunpack.c.l.b16 %v1773
    %v3070 = vunpack.c.l.b16 %v1774
    %v3071 = vunpack.c.l.b16 %v1775
    %v3072 = vunpack.c.l.b16 %v1776
    %v3073 = vunpack.c.l.b16 %v1777
    %v3074 = vunpack.c.l.b16 %v1778
    %v3075 = vunpack.c.l.b16 %v1779
    %v3076 = vunpack.c.l.b16 %v1780
    %v3077 = vunpack.c.l.b16 %v1781
    %v3078 = vunpack.c.l.b16 %v1782
    %v3079 = vunpack.c.l.b16 %v1783
    %v3080 = vunpack.c.l.b16 %v1784
    %v3081 = vunpack.c.l.b16 %v1785
    %v3082 = vunpack.c.l.b16 %v1786
    %v3083 = vunpack.c.l.b16 %v1787
    %v3084 = vunpack.c.l.b16 %v1788
    %v3085 = vunpack.c.l.b16 %v1789
    %v3086 = vunpack.c.l.b16 %v1790
    %v3087 = vunpack.c.l.b16 %v1791
    %v3088 = vunpack.c.l.b16 %v1792
    %v3089 = vunpack.c.l.b16 %v1793
    %v3090 = vunpack.c.l.b16 %v1794
    %v3091 = vunpack.c.l.b16 %v1795
    %v3092 = vunpack.c.l.b16 %v1796
    %v3093 = vunpack.c.l.b16 %v1797
    %v3094 = vunpack.c.l.b16 %v1798
    %v3095 = vunpack.c.l.b16 %v1799
    %v3096 = vunpack.c.l.b16 %v1800
    %v3097 = vunpack.c.l.b16 %v1801
    %v3098 = vunpack.c.l.b16 %v1802
    %v3099 = vunpack.c.l.b16 %v1803
    %v3100 = vunpack.c.l.b16 %v1804
    %v3101 = vunpack.c.l.b16 %v1805
    %v3102 = vunpack.c.l.b16 %v1806
    %v3103 = vunpack.c.l.b16 %v1807
    %v3104 = vunpack.c.l.b16 %v1808
    %v3105 = vunpack.c.l.b16 %v1809
    %v3106 = vunpack.c.l.b16 %v1810
    %v3107 = vunpack.c.l.b16 %v1811
    %v3108 = vunpack.c.l.b16 %v1812
    %v3109 = vunpack.c.l.b16 %v1813
    %v3110 = vunpack.c.l.b16 %v1814
    %v3111 = vunpack.c.l.b16 %v1815
    %v3112 = vunpack.c.l.b16 %v1816
    %v3113 = vunpack.c.l.b16 %v1817
    %v3114 = vunpack.c.l.b16 %v1818
    %v3115 = vunpack.c.l.b16 %v1819
    %v3116 = vunpack.c.l.b16 %v1820
    %v3117 = vunpack.c.l.b16 %v1821
    %v3118 = vunpack.c.l.b16 %v1822
    %v3119 = vunpack.c.l.b16 %v1823
    %v3120 = vunpack.c.l.b16 %v1824
    %v3121 = vunpack.c.l.b16 %v1825
    %v3122 = vunpack.c.l.b16 %v1826
    %v3123 = vunpack.c.l.b16 %v1827
    %v3124 = vunpack.c.l.b16 %v1828
    %v3125 = vunpack.c.l.b16 %v1829
    %v3126 = vunpack.c.l.b16 %v1830
    %v3127 = vunpack.c.l.b16 %v1831
    %v3128 = vunpack.c.l.b16 %v1832
    %v3129 = vunpack.c.l.b16 %v1833
    %v3130 = vunpack.c.l.b16 %v1834
    %v3131 = vunpack.c.l.b16 %v1835
    %v3132 = vunpack.c.l.b16 %v1836
    %v3133 = vunpack.c.l.b16 %v1837
    %v3134 = vunpack.c.l.b16 %v1838
    %v3135 = vunpack.c.l.b16 %v1839
    %v3136 = vunpack.c.l.b16 %v1840
    %v3137 = vunpack.c.l.b16 %v1841
    %v3138 = vunpack.c.l.b16 %v1842
    %v3139 = vunpack.c.l.b16 %v1843
    %v3140 = vunpack.c.l.b16 %v1844
    %v3141 = vunpack.c.l.b16 %v1845
    %v3142 = vunpack.c.l.b16 %v1846
    %v3143 = vunpack.c.l.b16 %v1847
    %v3144 = vunpack.c.l.b16 %v1848
    %v3145 = vunpack.c.l.b16 %v1849
    %v3146 = vunpack.c.l.b16 %v1850
    %v3147 = vunpack.c.l.b16 %v1851
    %v3148 = vunpack.c.l.b16 %v1852
    %v3149 = vunpack.c.l.b16 %v1853
    %v3150 = vunpack.c.l.b16 %v1854
    %v3151 = vunpack.c.l.b16 %v1855
    %v3152 = vpack.c.b16 %v2865, %v2864
    %v3153 = vpack.c.b16 %v2867, %v2866
    %v3154 = vpack.c.b16 %v2869, %v2868
    %v3155 = vpack.c.b16 %v2871, %v2870
    %v3156 = vpack.c.b16 %v2873, %v2872
    %v3157 = vpack.c.b16 %v2875, %v2874
    %v3158 = vpack.c.b16 %v2877, %v2876
    %v3159 = vpack.c.b16 %v2879, %v2878
    %v3160 = vpack.c.b16 %v2881, %v2880
    %v3161 = vpack.c.b16 %v2883, %v2882
    %v3162 = vpack.c.b16 %v2885, %v2884
    %v3163 = vpack.c.b16 %v2887, %v2886
    %v3164 = vpack.c.b16 %v2889, %v2888
    %v3165 = vpack.c.b16 %v2891, %v2890
    %v3166 = vpack.c.b16 %v2893, %v2892
    %v3167 = vpack.c.b16 %v2895, %v2894
    %v3168 = vpack.c.b16 %v2897, %v2896
    %v3169 = vpack.c.b16 %v2899, %v2898
    %v3170 = vpack.c.b16 %v2901, %v2900
    %v3171 = vpack.c.b16 %v2903, %v2902
    %v3172 = vpack.c.b16 %v2905, %v2904
    %v3173 = vpack.c.b16 %v2907, %v2906
    %v3174 = vpack.c.b16 %v2909, %v2908
    %v3175 = vpack.c.b16 %v2911, %v2910
    %v3176 = vpack.c.b16 %v2913, %v2912
    %v3177 = vpack.c.b16 %v2915, %v2914
    %v3178 = vpack.c.b16 %v2917, %v2916
    %v3179 = vpack.c.b16 %v2919, %v2918
    %v3180 = vpack.c.b16 %v2921, %v2920
    %v3181 = vpack.c.b16 %v2923, %v2922
    %v3182 = vpack.c.b16 %v2925, %v2924
    %v3183 = vpack.c.b16 %v2927, %v2926
    %v3184 = vpack.c.b16 %v2929, %v2928
    %v3185 = vpack.c.b16 %v2931, %v2930
    %v3186 = vpack.c.b16 %v2933, %v2932
    %v3187 = vpack.c.b16 %v2935, %v2934
    %v3188 = vpack.c.b16 %v2937, %v2936
    %v3189 = vpack.c.b16 %v2939, %v2938
    %v3190 = vpack.c.b16 %v2941, %v2940
    %v3191 = vpack.c.b16 %v2943, %v2942
    %v3192 = vpack.c.b16 %v2945, %v2944
    %v3193 = vpack.c.b16 %v2947, %v2946
    %v3194 = vpack.c.b16 %v2949, %v2948
    %v3195 = vpack.c.b16 %v2951, %v2950
    %v3196 = vpack.c.b16 %v2953, %v2952
    %v3197 = vpack.c.b16 %v2955, %v2954
    %v3198 = vpack.c.b16 %v2957, %v2956
    %v3199 = vpack.c.b16 %v2959, %v2958
    %v3200 = vpack.c.b16 %v2961, %v2960
    %v3201 = vpack.c.b16 %v2963, %v2962
    %v3202 = vpack.c.b16 %v2965, %v2964
    %v3203 = vpack.c.b16 %v2967, %v2966
    %v3204 = vpack.c.b16 %v2969, %v2968
    %v3205 = vpack.c.b16 %v2971, %v2970
    %v3206 = vpack.c.b16 %v2973, %v2972
    %v3207 = vpack.c.b16 %v2975, %v2974
    %v3208 = vpack.c.b16 %v2977, %v2976
    %v3209 = vpack.c.b16 %v2979, %v2978
    %v3210 = vpack.c.b16 %v2981, %v2980
    %v3211 = vpack.c.b16 %v2983, %v2982
    %v3212 = vpack.c.b16 %v2985, %v2984
    %v3213 = vpack.c.b16 %v2987, %v2986
    %v3214 = vpack.c.b16 %v2989, %v2988
    %v3215 = vpack.c.b16 %v2991, %v2990
    %v3216 = vpack.c.b16 %v2993, %v2992
    %v3217 = vpack.c.b16 %v2995, %v2994
    %v3218 = vpack.c.b16 %v2997, %v2996
    %v3219 = vpack.c.b16 %v2999, %v2998
    %v3220 = vpack.c.b16 %v3001, %v3000
    %v3221 = vpack.c.b16 %v3003, %v3002
    %v3222 = vpack.c.b16 %v3005, %v3004
    %v3223 = vpack.c.b16 %v3007, %v3006
    %v3224 = vpack.c.b16 %v3009, %v3008
    %v3225 = vpack.c.b16 %v3011, %v3010
    %v3226 = vpack.c.b16 %v3013, %v3012
    %v3227 = vpack.c.b16 %v3015, %v3014
    %v3228 = vpack.c.b16 %v3017, %v3016
    %v3229 = vpack.c.b16 %v3019, %v3018
    %v3230 = vpack.c.b16 %v3021, %v3020
    %v3231 = vpack.c.b16 %v3023, %v3022
    %v3232 = vpack.c.b16 %v3025, %v3024
    %v3233 = vpack.c.b16 %v3027, %v3026
    %v3234 = vpack.c.b16 %v3029, %v3028
    %v3235 = vpack.c.b16 %v3031, %v3030
    %v3236 = vpack.c.b16 %v3033, %v3032
    %v3237 = vpack.c.b16 %v3035, %v3034
    %v3238 = vpack.c.b16 %v3037, %v3036
    %v3239 = vpack.c.b16 %v3039, %v3038
    %v3240 = vpack.c.b16 %v3041, %v3040
    %v3241 = vpack.c.b16 %v3043, %v3042
    %v3242 = vpack.c.b16 %v3045, %v3044
    %v3243 = vpack.c.b16 %v3047, %v3046
    %v3244 = vpack.c.b16 %v3049, %v3048
    %v3245 = vpack.c.b16 %v3051, %v3050
    %v3246 = vpack.c.b16 %v3053, %v3052
    %v3247 = vpack.c.b16 %v3055, %v3054
    %v3248 = vpack.c.b16 %v3057, %v3056
    %v3249 = vpack.c.b16 %v3059, %v3058
    %v3250 = vpack.c.b16 %v3061, %v3060
    %v3251 = vpack.c.b16 %v3063, %v3062
    %v3252 = vpack.c.b16 %v3065, %v3064
    %v3253 = vpack.c.b16 %v3067, %v3066
    %v3254 = vpack.c.b16 %v3069, %v3068
    %v3255 = vpack.c.b16 %v3071, %v3070
    %v3256 = vpack.c.b16 %v3073, %v3072
    %v3257 = vpack.c.b16 %v3075, %v3074
    %v3258 = vpack.c.b16 %v3077, %v3076
    %v3259 = vpack.c.b16 %v3079, %v3078
    %v3260 = vpack.c.b16 %v3081, %v3080
    %v3261 = vpack.c.b16 %v3083, %v3082
    %v3262 = vpack.c.b16 %v3085, %v3084
    %v3263 = vpack.c.b16 %v3087, %v3086
    %v3264 = vpack.c.b16 %v3089, %v3088
    %v3265 = vpack.c.b16 %v3091, %v3090
    %v3266 = vpack.c.b16 %v3093, %v3092
    %v3267 = vpack.c.b16 %v3095, %v3094
    %v3268 = vpack.c.b16 %v3097, %v3096
    %v3269 = vpack.c.b16 %v3099, %v3098
    %v3270 = vpack.c.b16 %v3101, %v3100
    %v3271 = vpack.c.b16 %v3103, %v3102
    %v3272 = vpack.c.b16 %v3105, %v3104
    %v3273 = vpack.c.b16 %v3107, %v3106
    %v3274 = vpack.c.b16 %v3109, %v3108
    %v3275 = vpack.c.b16 %v3111, %v3110
    %v3276 = vpack.c.b16 %v3113, %v3112
    %v3277 = vpack.c.b16 %v3115, %v3114
    %v3278 = vpack.c.b16 %v3117, %v3116
    %v3279 = vpack.c.b16 %v3119, %v3118
    %v3280 = vpack.c.b16 %v3121, %v3120
    %v3281 = vpack.c.b16 %v3123, %v3122
    %v3282 = vpack.c.b16 %v3125, %v3124
    %v3283 = vpack.c.b16 %v3127, %v3126
    %v3284 = vpack.c.b16 %v3129, %v3128
    %v3285 = vpack.c.b16 %v3131, %v3130
    %v3286 = vpack.c.b16 %v3133, %v3132
    %v3287 = vpack.c.b16 %v3135, %v3134
    %v3288 = vpack.c.b16 %v3137, %v3136
    %v3289 = vpack.c.b16 %v3139, %v3138
    %v3290 = vpack.c.b16 %v3141, %v3140
    %v3291 = vpack.c.b16 %v3143, %v3142
    %v3292 = vpack.c.b16 %v3145, %v3144
    %v3293 = vpack.c.b16 %v3147, %v3146
    %v3294 = vpack.c.b16 %v3149, %v3148
    %v3295 = vpack.c.b16 %v3151, %v3150
    %3440 = vmatprep.subr.bf16.mxu0 0
    %3441 = vmatpush1.bf16.msra.mxu0 %v3152
    %3442 = vmatprep.subr.bf16.mxu0 0
    %3443 = vmatpush1.bf16.msra.mxu0 %v3153
    %3444 = vmatprep.subr.bf16.mxu0 0
    %3445 = vmatpush1.bf16.msra.mxu0 %v3154
    %3446 = vmatprep.subr.bf16.mxu0 0
    %3447 = vmatpush1.bf16.msra.mxu0 %v3155
    %3448 = vmatprep.subr.bf16.mxu0 0
    %3449 = vmatpush1.bf16.msra.mxu0 %v3156
    %3450 = vmatprep.subr.bf16.mxu0 0
    %3451 = vmatpush1.bf16.msra.mxu0 %v3157
    %3452 = vmatprep.subr.bf16.mxu0 0
    %3453 = vmatpush1.bf16.msra.mxu0 %v3158
    %3454 = vmatprep.subr.bf16.mxu0 0
    %3455 = vmatpush1.bf16.msra.mxu0 %v3159
    %3456 = vmatprep.subr.bf16.mxu0 0
    %3457 = vmatpush1.bf16.msra.mxu0 %v3160
    %3458 = vmatprep.subr.bf16.mxu0 0
    %3459 = vmatpush1.bf16.msra.mxu0 %v3161
    %3460 = vmatprep.subr.bf16.mxu0 0
    %3461 = vmatpush1.bf16.msra.mxu0 %v3162
    %3462 = vmatprep.subr.bf16.mxu0 0
    %3463 = vmatpush1.bf16.msra.mxu0 %v3163
    %3464 = vmatprep.subr.bf16.mxu0 0
    %3465 = vmatpush1.bf16.msra.mxu0 %v3164
    %3466 = vmatprep.subr.bf16.mxu0 0
    %3467 = vmatpush1.bf16.msra.mxu0 %v3165
    %3468 = vmatprep.subr.bf16.mxu0 0
    %3469 = vmatpush1.bf16.msra.mxu0 %v3166
    %3470 = vmatprep.subr.bf16.mxu0 0
    %3471 = vmatpush1.bf16.msra.mxu0 %v3167
    %3472 = vmatprep.mubr.bf16.mxu0 %v2289
    %3473 = vmatmul.mubr.bf16.gmra.mrb[0].mxu0 %v2288
    %v3474 = vpop.f32.mrb[0].mxu0
    %v3475 = vadd.f32 0.0, %v3474
    %v3476 = vpop.f32.mrb[0].mxu0
    %v3477 = vpop.f32.mrb[0].mxu0
    %v3478 = vadd.f32 0.0, %v3477
    %v3479 = vpop.f32.mrb[0].mxu0
    %3480 = vmatprep.mubr.bf16.mxu0 %v2307
    %3481 = vmatmul.mubr.bf16.gmra.mrb[0].mxu0 %v2306
    %v3482 = vpop.f32.mrb[0].mxu0
    %v3483 = vadd.f32 0.0, %v3482
    %v3484 = vpop.f32.mrb[0].mxu0
    %v3485 = vpop.f32.mrb[0].mxu0
    %v3486 = vadd.f32 0.0, %v3485
    %v3487 = vpop.f32.mrb[0].mxu0
    %3488 = vmatprep.mubr.bf16.mxu0 %v2325
    %3489 = vmatmul.mubr.bf16.gmra.mrb[0].mxu0 %v2324
    %v3490 = vpop.f32.mrb[0].mxu0
    %v3491 = vadd.f32 0.0, %v3490
    %v3492 = vpop.f32.mrb[0].mxu0
    %v3493 = vpop.f32.mrb[0].mxu0
    %v3494 = vadd.f32 0.0, %v3493
    %v3495 = vpop.f32.mrb[0].mxu0
    %3496 = vmatprep.mubr.bf16.mxu0 %v2343
    %3497 = vmatmul.mubr.bf16.gmra.mrb[0].mxu0 %v2342
    %v3498 = vpop.f32.mrb[0].mxu0
    %v3499 = vadd.f32 0.0, %v3498
    %v3500 = vpop.f32.mrb[0].mxu0
    %v3501 = vpop.f32.mrb[0].mxu0
    %v3502 = vadd.f32 0.0, %v3501
    %v3503 = vpop.f32.mrb[0].mxu0
    %3504 = vmatprep.mubr.bf16.mxu0 %v2361
    %3505 = vmatmul.mubr.bf16.gmra.mrb[0].mxu0 %v2360
    %v3506 = vpop.f32.mrb[0].mxu0
    %v3507 = vadd.f32 0.0, %v3506
    %v3508 = vpop.f32.mrb[0].mxu0
    %v3509 = vpop.f32.mrb[0].mxu0
    %v3510 = vadd.f32 0.0, %v3509
    %v3511 = vpop.f32.mrb[0].mxu0
    %3512 = vmatprep.mubr.bf16.mxu0 %v2379
    %3513 = vmatmul.mubr.bf16.gmra.mrb[0].mxu0 %v2378
    %v3514 = vpop.f32.mrb[0].mxu0
    %v3515 = vadd.f32 0.0, %v3514
    %v3516 = vpop.f32.mrb[0].mxu0
    %v3517 = vpop.f32.mrb[0].mxu0
    %v3518 = vadd.f32 0.0, %v3517
    %v3519 = vpop.f32.mrb[0].mxu0
    %3520 = vmatprep.mubr.bf16.mxu0 %v2397
    %3521 = vmatmul.mubr.bf16.gmra.mrb[0].mxu0 %v2396
    %v3522 = vpop.f32.mrb[0].mxu0
    %v3523 = vadd.f32 0.0, %v3522
    %v3524 = vpop.f32.mrb[0].mxu0
    %v3525 = vpop.f32.mrb[0].mxu0
    %v3526 = vadd.f32 0.0, %v3525
    %v3527 = vpop.f32.mrb[0].mxu0
    %3528 = vmatprep.mubr.bf16.mxu0 %v2415
    %3529 = vmatmul.mubr.bf16.gmra.mrb[0].mxu0 %v2414
    %v3530 = vpop.f32.mrb[0].mxu0
    %v3531 = vadd.f32 0.0, %v3530
    %v3532 = vpop.f32.mrb[0].mxu0
    %v3533 = vpop.f32.mrb[0].mxu0
    %v3534 = vadd.f32 0.0, %v3533
    %v3535 = vpop.f32.mrb[0].mxu0
    %3536 = vdwg.mxu0
    %3537 = vmatprep.subr.bf16.mxu0 0
    %3538 = vmatpush1.bf16.msra.mxu0 %v3168
    %3539 = vmatprep.subr.bf16.mxu0 0
    %3540 = vmatpush1.bf16.msra.mxu0 %v3169
    %3541 = vmatprep.subr.bf16.mxu0 0
    %3542 = vmatpush1.bf16.msra.mxu0 %v3170
    %3543 = vmatprep.subr.bf16.mxu0 0
    %3544 = vmatpush1.bf16.msra.mxu0 %v3171
    %3545 = vmatprep.subr.bf16.mxu0 0
    %3546 = vmatpush1.bf16.msra.mxu0 %v3172
    %3547 = vmatprep.subr.bf16.mxu0 0
    %3548 = vmatpush1.bf16.msra.mxu0 %v3173
    %3549 = vmatprep.subr.bf16.mxu0 0
    %3550 = vmatpush1.bf16.msra.mxu0 %v3174
    %3551 = vmatprep.subr.bf16.mxu0 0
    %3552 = vmatpush1.bf16.msra.mxu0 %v3175
    %3553 = vmatprep.subr.bf16.mxu0 0
    %3554 = vmatpush1.bf16.msra.mxu0 %v3176
    %3555 = vmatprep.subr.bf16.mxu0 0
    %3556 = vmatpush1.bf16.msra.mxu0 %v3177
    %3557 = vmatprep.subr.bf16.mxu0 0
    %3558 = vmatpush1.bf16.msra.mxu0 %v3178
    %3559 = vmatprep.subr.bf16.mxu0 0
    %3560 = vmatpush1.bf16.msra.mxu0 %v3179
    %3561 = vmatprep.subr.bf16.mxu0 0
    %3562 = vmatpush1.bf16.msra.mxu0 %v3180
    %3563 = vmatprep.subr.bf16.mxu0 0
    %3564 = vmatpush1.bf16.msra.mxu0 %v3181
    %3565 = vmatprep.subr.bf16.mxu0 0
    %3566 = vmatpush1.bf16.msra.mxu0 %v3182
    %3567 = vmatprep.subr.bf16.mxu0 0
    %3568 = vmatpush1.bf16.msra.mxu0 %v3183
    %3569 = vmatprep.mubr.bf16.mxu0 %v2291
    %3570 = vmatmul.mubr.bf16.gmra.mrb[0].mxu0 %v2290
    %v3571 = vpop.f32.mrb[0].mxu0
    %v3572 = vadd.f32 %v3475, %v3571
    %v3573 = vpop.f32.mrb[0].mxu0
    %v3574 = vpop.f32.mrb[0].mxu0
    %v3575 = vadd.f32 %v3478, %v3574
    %v3576 = vpop.f32.mrb[0].mxu0
    %3577 = vmatprep.mubr.bf16.mxu0 %v2309
    %3578 = vmatmul.mubr.bf16.gmra.mrb[0].mxu0 %v2308
    %v3579 = vpop.f32.mrb[0].mxu0
    %v3580 = vadd.f32 %v3483, %v3579
    %v3581 = vpop.f32.mrb[0].mxu0
    %v3582 = vpop.f32.mrb[0].mxu0
    %v3583 = vadd.f32 %v3486, %v3582
    %v3584 = vpop.f32.mrb[0].mxu0
    %3585 = vmatprep.mubr.bf16.mxu0 %v2327
    %3586 = vmatmul.mubr.bf16.gmra.mrb[0].mxu0 %v2326
    %v3587 = vpop.f32.mrb[0].mxu0
    %v3588 = vadd.f32 %v3491, %v3587
    %v3589 = vpop.f32.mrb[0].mxu0
    %v3590 = vpop.f32.mrb[0].mxu0
    %v3591 = vadd.f32 %v3494, %v3590
    %v3592 = vpop.f32.mrb[0].mxu0
    %3593 = vmatprep.mubr.bf16.mxu0 %v2345
    %3594 = vmatmul.mubr.bf16.gmra.mrb[0].mxu0 %v2344
    %v3595 = vpop.f32.mrb[0].mxu0
    %v3596 = vadd.f32 %v3499, %v3595
    %v3597 = vpop.f32.mrb[0].mxu0
    %v3598 = vpop.f32.mrb[0].mxu0
    %v3599 = vadd.f32 %v3502, %v3598
    %v3600 = vpop.f32.mrb[0].mxu0
    %3601 = vmatprep.mubr.bf16.mxu0 %v2363
    %3602 = vmatmul.mubr.bf16.gmra.mrb[0].mxu0 %v2362
    %v3603 = vpop.f32.mrb[0].mxu0
    %v3604 = vadd.f32 %v3507, %v3603
    %v3605 = vpop.f32.mrb[0].mxu0
    %v3606 = vpop.f32.mrb[0].mxu0
    %v3607 = vadd.f32 %v3510, %v3606
    %v3608 = vpop.f32.mrb[0].mxu0
    %3609 = vmatprep.mubr.bf16.mxu0 %v2381
    %3610 = vmatmul.mubr.bf16.gmra.mrb[0].mxu0 %v2380
    %v3611 = vpop.f32.mrb[0].mxu0
    %v3612 = vadd.f32 %v3515, %v3611
    %v3613 = vpop.f32.mrb[0].mxu0
    %v3614 = vpop.f32.mrb[0].mxu0
    %v3615 = vadd.f32 %v3518, %v3614
    %v3616 = vpop.f32.mrb[0].mxu0
    %3617 = vmatprep.mubr.bf16.mxu0 %v2399
    %3618 = vmatmul.mubr.bf16.gmra.mrb[0].mxu0 %v2398
    %v3619 = vpop.f32.mrb[0].mxu0
    %v3620 = vadd.f32 %v3523, %v3619
    %v3621 = vpop.f32.mrb[0].mxu0
    %v3622 = vpop.f32.mrb[0].mxu0
    %v3623 = vadd.f32 %v3526, %v3622
    %v3624 = vpop.f32.mrb[0].mxu0
    %3625 = vmatprep.mubr.bf16.mxu0 %v2417
    %3626 = vmatmul.mubr.bf16.gmra.mrb[0].mxu0 %v2416
    %v3627 = vpop.f32.mrb[0].mxu0
    %v3628 = vadd.f32 %v3531, %v3627
    %v3629 = vpop.f32.mrb[0].mxu0
    %v3630 = vpop.f32.mrb[0].mxu0
    %v3631 = vadd.f32 %v3534, %v3630
    %v3632 = vpop.f32.mrb[0].mxu0
    %3633 = vdwg.mxu0
    %3634 = vmatprep.subr.bf16.mxu0 0
    %3635 = vmatpush1.bf16.msra.mxu0 %v3184
    %3636 = vmatprep.subr.bf16.mxu0 0
    %3637 = vmatpush1.bf16.msra.mxu0 %v3185
    %3638 = vmatprep.subr.bf16.mxu0 0
    %3639 = vmatpush1.bf16.msra.mxu0 %v3186
    %3640 = vmatprep.subr.bf16.mxu0 0
    %3641 = vmatpush1.bf16.msra.mxu0 %v3187
    %3642 = vmatprep.subr.bf16.mxu0 0
    %3643 = vmatpush1.bf16.msra.mxu0 %v3188
    %3644 = vmatprep.subr.bf16.mxu0 0
    %3645 = vmatpush1.bf16.msra.mxu0 %v3189
    %3646 = vmatprep.subr.bf16.mxu0 0
    %3647 = vmatpush1.bf16.msra.mxu0 %v3190
    %3648 = vmatprep.subr.bf16.mxu0 0
    %3649 = vmatpush1.bf16.msra.mxu0 %v3191
    %3650 = vmatprep.subr.bf16.mxu0 0
    %3651 = vmatpush1.bf16.msra.mxu0 %v3192
    %3652 = vmatprep.subr.bf16.mxu0 0
    %3653 = vmatpush1.bf16.msra.mxu0 %v3193
    %3654 = vmatprep.subr.bf16.mxu0 0
    %3655 = vmatpush1.bf16.msra.mxu0 %v3194
    %3656 = vmatprep.subr.bf16.mxu0 0
    %3657 = vmatpush1.bf16.msra.mxu0 %v3195
    %3658 = vmatprep.subr.bf16.mxu0 0
    %3659 = vmatpush1.bf16.msra.mxu0 %v3196
    %3660 = vmatprep.subr.bf16.mxu0 0
    %3661 = vmatpush1.bf16.msra.mxu0 %v3197
    %3662 = vmatprep.subr.bf16.mxu0 0
    %3663 = vmatpush1.bf16.msra.mxu0 %v3198
    %3664 = vmatprep.subr.bf16.mxu0 0
    %3665 = vmatpush1.bf16.msra.mxu0 %v3199
    %3666 = vmatprep.mubr.bf16.mxu0 %v2293
    %3667 = vmatmul.mubr.bf16.gmra.mrb[0].mxu0 %v2292
    %v3668 = vpop.f32.mrb[0].mxu0
    %v3669 = vadd.f32 %v3572, %v3668
    %v3670 = vpop.f32.mrb[0].mxu0
    %v3671 = vpop.f32.mrb[0].mxu0
    %v3672 = vadd.f32 %v3575, %v3671
    %v3673 = vpop.f32.mrb[0].mxu0
    %3674 = vmatprep.mubr.bf16.mxu0 %v2311
    %3675 = vmatmul.mubr.bf16.gmra.mrb[0].mxu0 %v2310
    %v3676 = vpop.f32.mrb[0].mxu0
    %v3677 = vadd.f32 %v3580, %v3676
    %v3678 = vpop.f32.mrb[0].mxu0
    %v3679 = vpop.f32.mrb[0].mxu0
    %v3680 = vadd.f32 %v3583, %v3679
    %v3681 = vpop.f32.mrb[0].mxu0
    %3682 = vmatprep.mubr.bf16.mxu0 %v2329
    %3683 = vmatmul.mubr.bf16.gmra.mrb[0].mxu0 %v2328
    %v3684 = vpop.f32.mrb[0].mxu0
    %v3685 = vadd.f32 %v3588, %v3684
    %v3686 = vpop.f32.mrb[0].mxu0
    %v3687 = vpop.f32.mrb[0].mxu0
    %v3688 = vadd.f32 %v3591, %v3687
    %v3689 = vpop.f32.mrb[0].mxu0
    %3690 = vmatprep.mubr.bf16.mxu0 %v2347
    %3691 = vmatmul.mubr.bf16.gmra.mrb[0].mxu0 %v2346
    %v3692 = vpop.f32.mrb[0].mxu0
    %v3693 = vadd.f32 %v3596, %v3692
    %v3694 = vpop.f32.mrb[0].mxu0
    %v3695 = vpop.f32.mrb[0].mxu0
    %v3696 = vadd.f32 %v3599, %v3695
    %v3697 = vpop.f32.mrb[0].mxu0
    %3698 = vmatprep.mubr.bf16.mxu0 %v2365
    %3699 = vmatmul.mubr.bf16.gmra.mrb[0].mxu0 %v2364
    %v3700 = vpop.f32.mrb[0].mxu0
    %v3701 = vadd.f32 %v3604, %v3700
    %v3702 = vpop.f32.mrb[0].mxu0
    %v3703 = vpop.f32.mrb[0].mxu0
    %v3704 = vadd.f32 %v3607, %v3703
    %v3705 = vpop.f32.mrb[0].mxu0
    %3706 = vmatprep.mubr.bf16.mxu0 %v2383
    %3707 = vmatmul.mubr.bf16.gmra.mrb[0].mxu0 %v2382
    %v3708 = vpop.f32.mrb[0].mxu0
    %v3709 = vadd.f32 %v3612, %v3708
    %v3710 = vpop.f32.mrb[0].mxu0
    %v3711 = vpop.f32.mrb[0].mxu0
    %v3712 = vadd.f32 %v3615, %v3711
    %v3713 = vpop.f32.mrb[0].mxu0
    %3714 = vmatprep.mubr.bf16.mxu0 %v2401
    %3715 = vmatmul.mubr.bf16.gmra.mrb[0].mxu0 %v2400
    %v3716 = vpop.f32.mrb[0].mxu0
    %v3717 = vadd.f32 %v3620, %v3716
    %v3718 = vpop.f32.mrb[0].mxu0
    %v3719 = vpop.f32.mrb[0].mxu0
    %v3720 = vadd.f32 %v3623, %v3719
    %v3721 = vpop.f32.mrb[0].mxu0
    %3722 = vmatprep.mubr.bf16.mxu0 %v2419
    %3723 = vmatmul.mubr.bf16.gmra.mrb[0].mxu0 %v2418
    %v3724 = vpop.f32.mrb[0].mxu0
    %v3725 = vadd.f32 %v3628, %v3724
    %v3726 = vpop.f32.mrb[0].mxu0
    %v3727 = vpop.f32.mrb[0].mxu0
    %v3728 = vadd.f32 %v3631, %v3727
    %v3729 = vpop.f32.mrb[0].mxu0
    %3730 = vdwg.mxu0
    %3731 = vmatprep.subr.bf16.mxu0 0
    %3732 = vmatpush1.bf16.msra.mxu0 %v3200
    %3733 = vmatprep.subr.bf16.mxu0 0
    %3734 = vmatpush1.bf16.msra.mxu0 %v3201
    %3735 = vmatprep.subr.bf16.mxu0 0
    %3736 = vmatpush1.bf16.msra.mxu0 %v3202
    %3737 = vmatprep.subr.bf16.mxu0 0
    %3738 = vmatpush1.bf16.msra.mxu0 %v3203
    %3739 = vmatprep.subr.bf16.mxu0 0
    %3740 = vmatpush1.bf16.msra.mxu0 %v3204
    %3741 = vmatprep.subr.bf16.mxu0 0
    %3742 = vmatpush1.bf16.msra.mxu0 %v3205
    %3743 = vmatprep.subr.bf16.mxu0 0
    %3744 = vmatpush1.bf16.msra.mxu0 %v3206
    %3745 = vmatprep.subr.bf16.mxu0 0
    %3746 = vmatpush1.bf16.msra.mxu0 %v3207
    %3747 = vmatprep.subr.bf16.mxu0 0
    %3748 = vmatpush1.bf16.msra.mxu0 %v3208
    %3749 = vmatprep.subr.bf16.mxu0 0
    %3750 = vmatpush1.bf16.msra.mxu0 %v3209
    %3751 = vmatprep.subr.bf16.mxu0 0
    %3752 = vmatpush1.bf16.msra.mxu0 %v3210
    %3753 = vmatprep.subr.bf16.mxu0 0
    %3754 = vmatpush1.bf16.msra.mxu0 %v3211
    %3755 = vmatprep.subr.bf16.mxu0 0
    %3756 = vmatpush1.bf16.msra.mxu0 %v3212
    %3757 = vmatprep.subr.bf16.mxu0 0
    %3758 = vmatpush1.bf16.msra.mxu0 %v3213
    %3759 = vmatprep.subr.bf16.mxu0 0
    %3760 = vmatpush1.bf16.msra.mxu0 %v3214
    %3761 = vmatprep.subr.bf16.mxu0 0
    %3762 = vmatpush1.bf16.msra.mxu0 %v3215
    %3763 = vmatprep.mubr.bf16.mxu0 %v2295
    %3764 = vmatmul.mubr.bf16.gmra.mrb[0].mxu0 %v2294
    %v3765 = vpop.f32.mrb[0].mxu0
    %v3766 = vadd.f32 %v3669, %v3765
    %v3767 = vpop.f32.mrb[0].mxu0
    %v3768 = vpop.f32.mrb[0].mxu0
    %v3769 = vadd.f32 %v3672, %v3768
    %v3770 = vpop.f32.mrb[0].mxu0
    %3771 = vmatprep.mubr.bf16.mxu0 %v2313
    %3772 = vmatmul.mubr.bf16.gmra.mrb[0].mxu0 %v2312
    %v3773 = vpop.f32.mrb[0].mxu0
    %v3774 = vadd.f32 %v3677, %v3773
    %v3775 = vpop.f32.mrb[0].mxu0
    %v3776 = vpop.f32.mrb[0].mxu0
    %v3777 = vadd.f32 %v3680, %v3776
    %v3778 = vpop.f32.mrb[0].mxu0
    %3779 = vmatprep.mubr.bf16.mxu0 %v2331
    %3780 = vmatmul.mubr.bf16.gmra.mrb[0].mxu0 %v2330
    %v3781 = vpop.f32.mrb[0].mxu0
    %v3782 = vadd.f32 %v3685, %v3781
    %v3783 = vpop.f32.mrb[0].mxu0
    %v3784 = vpop.f32.mrb[0].mxu0
    %v3785 = vadd.f32 %v3688, %v3784
    %v3786 = vpop.f32.mrb[0].mxu0
    %3787 = vmatprep.mubr.bf16.mxu0 %v2349
    %3788 = vmatmul.mubr.bf16.gmra.mrb[0].mxu0 %v2348
    %v3789 = vpop.f32.mrb[0].mxu0
    %v3790 = vadd.f32 %v3693, %v3789
    %v3791 = vpop.f32.mrb[0].mxu0
    %v3792 = vpop.f32.mrb[0].mxu0
    %v3793 = vadd.f32 %v3696, %v3792
    %v3794 = vpop.f32.mrb[0].mxu0
    %3795 = vmatprep.mubr.bf16.mxu0 %v2367
    %3796 = vmatmul.mubr.bf16.gmra.mrb[0].mxu0 %v2366
    %v3797 = vpop.f32.mrb[0].mxu0
    %v3798 = vadd.f32 %v3701, %v3797
    %v3799 = vpop.f32.mrb[0].mxu0
    %v3800 = vpop.f32.mrb[0].mxu0
    %v3801 = vadd.f32 %v3704, %v3800
    %v3802 = vpop.f32.mrb[0].mxu0
    %3803 = vmatprep.mubr.bf16.mxu0 %v2385
    %3804 = vmatmul.mubr.bf16.gmra.mrb[0].mxu0 %v2384
    %v3805 = vpop.f32.mrb[0].mxu0
    %v3806 = vadd.f32 %v3709, %v3805
    %v3807 = vpop.f32.mrb[0].mxu0
    %v3808 = vpop.f32.mrb[0].mxu0
    %v3809 = vadd.f32 %v3712, %v3808
    %v3810 = vpop.f32.mrb[0].mxu0
    %3811 = vmatprep.mubr.bf16.mxu0 %v2403
    %3812 = vmatmul.mubr.bf16.gmra.mrb[0].mxu0 %v2402
    %v3813 = vpop.f32.mrb[0].mxu0
    %v3814 = vadd.f32 %v3717, %v3813
    %v3815 = vpop.f32.mrb[0].mxu0
    %v3816 = vpop.f32.mrb[0].mxu0
    %v3817 = vadd.f32 %v3720, %v3816
    %v3818 = vpop.f32.mrb[0].mxu0
    %3819 = vmatprep.mubr.bf16.mxu0 %v2421
    %3820 = vmatmul.mubr.bf16.gmra.mrb[0].mxu0 %v2420
    %v3821 = vpop.f32.mrb[0].mxu0
    %v3822 = vadd.f32 %v3725, %v3821
    %v3823 = vpop.f32.mrb[0].mxu0
    %v3824 = vpop.f32.mrb[0].mxu0
    %v3825 = vadd.f32 %v3728, %v3824
    %v3826 = vpop.f32.mrb[0].mxu0
    %3827 = vdwg.mxu0
    %3828 = vmatprep.subr.bf16.mxu0 0
    %3829 = vmatpush1.bf16.msra.mxu0 %v3216
    %3830 = vmatprep.subr.bf16.mxu0 0
    %3831 = vmatpush1.bf16.msra.mxu0 %v3217
    %3832 = vmatprep.subr.bf16.mxu0 0
    %3833 = vmatpush1.bf16.msra.mxu0 %v3218
    %3834 = vmatprep.subr.bf16.mxu0 0
    %3835 = vmatpush1.bf16.msra.mxu0 %v3219
    %3836 = vmatprep.subr.bf16.mxu0 0
    %3837 = vmatpush1.bf16.msra.mxu0 %v3220
    %3838 = vmatprep.subr.bf16.mxu0 0
    %3839 = vmatpush1.bf16.msra.mxu0 %v3221
    %3840 = vmatprep.subr.bf16.mxu0 0
    %3841 = vmatpush1.bf16.msra.mxu0 %v3222
    %3842 = vmatprep.subr.bf16.mxu0 0
    %3843 = vmatpush1.bf16.msra.mxu0 %v3223
    %3844 = vmatprep.subr.bf16.mxu0 0
    %3845 = vmatpush1.bf16.msra.mxu0 %v3224
    %3846 = vmatprep.subr.bf16.mxu0 0
    %3847 = vmatpush1.bf16.msra.mxu0 %v3225
    %3848 = vmatprep.subr.bf16.mxu0 0
    %3849 = vmatpush1.bf16.msra.mxu0 %v3226
    %3850 = vmatprep.subr.bf16.mxu0 0
    %3851 = vmatpush1.bf16.msra.mxu0 %v3227
    %3852 = vmatprep.subr.bf16.mxu0 0
    %3853 = vmatpush1.bf16.msra.mxu0 %v3228
    %3854 = vmatprep.subr.bf16.mxu0 0
    %3855 = vmatpush1.bf16.msra.mxu0 %v3229
    %3856 = vmatprep.subr.bf16.mxu0 0
    %3857 = vmatpush1.bf16.msra.mxu0 %v3230
    %3858 = vmatprep.subr.bf16.mxu0 0
    %3859 = vmatpush1.bf16.msra.mxu0 %v3231
    %3860 = vmatprep.mubr.bf16.mxu0 %v2297
    %3861 = vmatmul.mubr.bf16.gmra.mrb[0].mxu0 %v2296
    %v3862 = vpop.f32.mrb[0].mxu0
    %v3863 = vadd.f32 %v3766, %v3862
    %v3864 = vpop.f32.mrb[0].mxu0
    %v3865 = vpop.f32.mrb[0].mxu0
    %v3866 = vadd.f32 %v3769, %v3865
    %v3867 = vpop.f32.mrb[0].mxu0
    %3868 = vmatprep.mubr.bf16.mxu0 %v2315
    %3869 = vmatmul.mubr.bf16.gmra.mrb[0].mxu0 %v2314
    %v3870 = vpop.f32.mrb[0].mxu0
    %v3871 = vadd.f32 %v3774, %v3870
    %v3872 = vpop.f32.mrb[0].mxu0
    %v3873 = vpop.f32.mrb[0].mxu0
    %v3874 = vadd.f32 %v3777, %v3873
    %v3875 = vpop.f32.mrb[0].mxu0
    %3876 = vmatprep.mubr.bf16.mxu0 %v2333
    %3877 = vmatmul.mubr.bf16.gmra.mrb[0].mxu0 %v2332
    %v3878 = vpop.f32.mrb[0].mxu0
    %v3879 = vadd.f32 %v3782, %v3878
    %v3880 = vpop.f32.mrb[0].mxu0
    %v3881 = vpop.f32.mrb[0].mxu0
    %v3882 = vadd.f32 %v3785, %v3881
    %v3883 = vpop.f32.mrb[0].mxu0
    %3884 = vmatprep.mubr.bf16.mxu0 %v2351
    %3885 = vmatmul.mubr.bf16.gmra.mrb[0].mxu0 %v2350
    %v3886 = vpop.f32.mrb[0].mxu0
    %v3887 = vadd.f32 %v3790, %v3886
    %v3888 = vpop.f32.mrb[0].mxu0
    %v3889 = vpop.f32.mrb[0].mxu0
    %v3890 = vadd.f32 %v3793, %v3889
    %v3891 = vpop.f32.mrb[0].mxu0
    %3892 = vmatprep.mubr.bf16.mxu0 %v2369
    %3893 = vmatmul.mubr.bf16.gmra.mrb[0].mxu0 %v2368
    %v3894 = vpop.f32.mrb[0].mxu0
    %v3895 = vadd.f32 %v3798, %v3894
    %v3896 = vpop.f32.mrb[0].mxu0
    %v3897 = vpop.f32.mrb[0].mxu0
    %v3898 = vadd.f32 %v3801, %v3897
    %v3899 = vpop.f32.mrb[0].mxu0
    %3900 = vmatprep.mubr.bf16.mxu0 %v2387
    %3901 = vmatmul.mubr.bf16.gmra.mrb[0].mxu0 %v2386
    %v3902 = vpop.f32.mrb[0].mxu0
    %v3903 = vadd.f32 %v3806, %v3902
    %v3904 = vpop.f32.mrb[0].mxu0
    %v3905 = vpop.f32.mrb[0].mxu0
    %v3906 = vadd.f32 %v3809, %v3905
    %v3907 = vpop.f32.mrb[0].mxu0
    %3908 = vmatprep.mubr.bf16.mxu0 %v2405
    %3909 = vmatmul.mubr.bf16.gmra.mrb[0].mxu0 %v2404
    %v3910 = vpop.f32.mrb[0].mxu0
    %v3911 = vadd.f32 %v3814, %v3910
    %v3912 = vpop.f32.mrb[0].mxu0
    %v3913 = vpop.f32.mrb[0].mxu0
    %v3914 = vadd.f32 %v3817, %v3913
    %v3915 = vpop.f32.mrb[0].mxu0
    %3916 = vmatprep.mubr.bf16.mxu0 %v2423
    %3917 = vmatmul.mubr.bf16.gmra.mrb[0].mxu0 %v2422
    %v3918 = vpop.f32.mrb[0].mxu0
    %v3919 = vadd.f32 %v3822, %v3918
    %v3920 = vpop.f32.mrb[0].mxu0
    %v3921 = vpop.f32.mrb[0].mxu0
    %v3922 = vadd.f32 %v3825, %v3921
    %v3923 = vpop.f32.mrb[0].mxu0
    %3924 = vdwg.mxu0
    %3925 = vmatprep.subr.bf16.mxu0 0
    %3926 = vmatpush1.bf16.msra.mxu0 %v3232
    %3927 = vmatprep.subr.bf16.mxu0 0
    %3928 = vmatpush1.bf16.msra.mxu0 %v3233
    %3929 = vmatprep.subr.bf16.mxu0 0
    %3930 = vmatpush1.bf16.msra.mxu0 %v3234
    %3931 = vmatprep.subr.bf16.mxu0 0
    %3932 = vmatpush1.bf16.msra.mxu0 %v3235
    %3933 = vmatprep.subr.bf16.mxu0 0
    %3934 = vmatpush1.bf16.msra.mxu0 %v3236
    %3935 = vmatprep.subr.bf16.mxu0 0
    %3936 = vmatpush1.bf16.msra.mxu0 %v3237
    %3937 = vmatprep.subr.bf16.mxu0 0
    %3938 = vmatpush1.bf16.msra.mxu0 %v3238
    %3939 = vmatprep.subr.bf16.mxu0 0
    %3940 = vmatpush1.bf16.msra.mxu0 %v3239
    %3941 = vmatprep.subr.bf16.mxu0 0
    %3942 = vmatpush1.bf16.msra.mxu0 %v3240
    %3943 = vmatprep.subr.bf16.mxu0 0
    %3944 = vmatpush1.bf16.msra.mxu0 %v3241
    %3945 = vmatprep.subr.bf16.mxu0 0
    %3946 = vmatpush1.bf16.msra.mxu0 %v3242
    %3947 = vmatprep.subr.bf16.mxu0 0
    %3948 = vmatpush1.bf16.msra.mxu0 %v3243
    %3949 = vmatprep.subr.bf16.mxu0 0
    %3950 = vmatpush1.bf16.msra.mxu0 %v3244
    %3951 = vmatprep.subr.bf16.mxu0 0
    %3952 = vmatpush1.bf16.msra.mxu0 %v3245
    %3953 = vmatprep.subr.bf16.mxu0 0
    %3954 = vmatpush1.bf16.msra.mxu0 %v3246
    %3955 = vmatprep.subr.bf16.mxu0 0
    %3956 = vmatpush1.bf16.msra.mxu0 %v3247
    %3957 = vmatprep.mubr.bf16.mxu0 %v2299
    %3958 = vmatmul.mubr.bf16.gmra.mrb[0].mxu0 %v2298
    %v3959 = vpop.f32.mrb[0].mxu0
    %v3960 = vadd.f32 %v3863, %v3959
    %v3961 = vpop.f32.mrb[0].mxu0
    %v3962 = vpop.f32.mrb[0].mxu0
    %v3963 = vadd.f32 %v3866, %v3962
    %v3964 = vpop.f32.mrb[0].mxu0
    %3965 = vmatprep.mubr.bf16.mxu0 %v2317
    %3966 = vmatmul.mubr.bf16.gmra.mrb[0].mxu0 %v2316
    %v3967 = vpop.f32.mrb[0].mxu0
    %v3968 = vadd.f32 %v3871, %v3967
    %v3969 = vpop.f32.mrb[0].mxu0
    %v3970 = vpop.f32.mrb[0].mxu0
    %v3971 = vadd.f32 %v3874, %v3970
    %v3972 = vpop.f32.mrb[0].mxu0
    %3973 = vmatprep.mubr.bf16.mxu0 %v2335
    %3974 = vmatmul.mubr.bf16.gmra.mrb[0].mxu0 %v2334
    %v3975 = vpop.f32.mrb[0].mxu0
    %v3976 = vadd.f32 %v3879, %v3975
    %v3977 = vpop.f32.mrb[0].mxu0
    %v3978 = vpop.f32.mrb[0].mxu0
    %v3979 = vadd.f32 %v3882, %v3978
    %v3980 = vpop.f32.mrb[0].mxu0
    %3981 = vmatprep.mubr.bf16.mxu0 %v2353
    %3982 = vmatmul.mubr.bf16.gmra.mrb[0].mxu0 %v2352
    %v3983 = vpop.f32.mrb[0].mxu0
    %v3984 = vadd.f32 %v3887, %v3983
    %v3985 = vpop.f32.mrb[0].mxu0
    %v3986 = vpop.f32.mrb[0].mxu0
    %v3987 = vadd.f32 %v3890, %v3986
    %v3988 = vpop.f32.mrb[0].mxu0
    %3989 = vmatprep.mubr.bf16.mxu0 %v2371
    %3990 = vmatmul.mubr.bf16.gmra.mrb[0].mxu0 %v2370
    %v3991 = vpop.f32.mrb[0].mxu0
    %v3992 = vadd.f32 %v3895, %v3991
    %v3993 = vpop.f32.mrb[0].mxu0
    %v3994 = vpop.f32.mrb[0].mxu0
    %v3995 = vadd.f32 %v3898, %v3994
    %v3996 = vpop.f32.mrb[0].mxu0
    %3997 = vmatprep.mubr.bf16.mxu0 %v2389
    %3998 = vmatmul.mubr.bf16.gmra.mrb[0].mxu0 %v2388
    %v3999 = vpop.f32.mrb[0].mxu0
    %v4000 = vadd.f32 %v3903, %v3999
    %v4001 = vpop.f32.mrb[0].mxu0
    %v4002 = vpop.f32.mrb[0].mxu0
    %v4003 = vadd.f32 %v3906, %v4002
    %v4004 = vpop.f32.mrb[0].mxu0
    %4005 = vmatprep.mubr.bf16.mxu0 %v2407
    %4006 = vmatmul.mubr.bf16.gmra.mrb[0].mxu0 %v2406
    %v4007 = vpop.f32.mrb[0].mxu0
    %v4008 = vadd.f32 %v3911, %v4007
    %v4009 = vpop.f32.mrb[0].mxu0
    %v4010 = vpop.f32.mrb[0].mxu0
    %v4011 = vadd.f32 %v3914, %v4010
    %v4012 = vpop.f32.mrb[0].mxu0
    %4013 = vmatprep.mubr.bf16.mxu0 %v2425
    %4014 = vmatmul.mubr.bf16.gmra.mrb[0].mxu0 %v2424
    %v4015 = vpop.f32.mrb[0].mxu0
    %v4016 = vadd.f32 %v3919, %v4015
    %v4017 = vpop.f32.mrb[0].mxu0
    %v4018 = vpop.f32.mrb[0].mxu0
    %v4019 = vadd.f32 %v3922, %v4018
    %v4020 = vpop.f32.mrb[0].mxu0
    %4021 = vdwg.mxu0
    %4022 = vmatprep.subr.bf16.mxu0 0
    %4023 = vmatpush1.bf16.msra.mxu0 %v3248
    %4024 = vmatprep.subr.bf16.mxu0 0
    %4025 = vmatpush1.bf16.msra.mxu0 %v3249
    %4026 = vmatprep.subr.bf16.mxu0 0
    %4027 = vmatpush1.bf16.msra.mxu0 %v3250
    %4028 = vmatprep.subr.bf16.mxu0 0
    %4029 = vmatpush1.bf16.msra.mxu0 %v3251
    %4030 = vmatprep.subr.bf16.mxu0 0
    %4031 = vmatpush1.bf16.msra.mxu0 %v3252
    %4032 = vmatprep.subr.bf16.mxu0 0
    %4033 = vmatpush1.bf16.msra.mxu0 %v3253
    %4034 = vmatprep.subr.bf16.mxu0 0
    %4035 = vmatpush1.bf16.msra.mxu0 %v3254
    %4036 = vmatprep.subr.bf16.mxu0 0
    %4037 = vmatpush1.bf16.msra.mxu0 %v3255
    %4038 = vmatprep.subr.bf16.mxu0 0
    %4039 = vmatpush1.bf16.msra.mxu0 %v3256
    %4040 = vmatprep.subr.bf16.mxu0 0
    %4041 = vmatpush1.bf16.msra.mxu0 %v3257
    %4042 = vmatprep.subr.bf16.mxu0 0
    %4043 = vmatpush1.bf16.msra.mxu0 %v3258
    %4044 = vmatprep.subr.bf16.mxu0 0
    %4045 = vmatpush1.bf16.msra.mxu0 %v3259
    %4046 = vmatprep.subr.bf16.mxu0 0
    %4047 = vmatpush1.bf16.msra.mxu0 %v3260
    %4048 = vmatprep.subr.bf16.mxu0 0
    %4049 = vmatpush1.bf16.msra.mxu0 %v3261
    %4050 = vmatprep.subr.bf16.mxu0 0
    %4051 = vmatpush1.bf16.msra.mxu0 %v3262
    %4052 = vmatprep.subr.bf16.mxu0 0
    %4053 = vmatpush1.bf16.msra.mxu0 %v3263
    %4054 = vmatprep.mubr.bf16.mxu0 %v2301
    %4055 = vmatmul.mubr.bf16.gmra.mrb[0].mxu0 %v2300
    %v4056 = vpop.f32.mrb[0].mxu0
    %v4057 = vadd.f32 %v3960, %v4056
    %v4058 = vpop.f32.mrb[0].mxu0
    %v4059 = vpop.f32.mrb[0].mxu0
    %v4060 = vadd.f32 %v3963, %v4059
    %v4061 = vpop.f32.mrb[0].mxu0
    %4062 = vmatprep.mubr.bf16.mxu0 %v2319
    %4063 = vmatmul.mubr.bf16.gmra.mrb[0].mxu0 %v2318
    %v4064 = vpop.f32.mrb[0].mxu0
    %v4065 = vadd.f32 %v3968, %v4064
    %v4066 = vpop.f32.mrb[0].mxu0
    %v4067 = vpop.f32.mrb[0].mxu0
    %v4068 = vadd.f32 %v3971, %v4067
    %v4069 = vpop.f32.mrb[0].mxu0
    %4070 = vmatprep.mubr.bf16.mxu0 %v2337
    %4071 = vmatmul.mubr.bf16.gmra.mrb[0].mxu0 %v2336
    %v4072 = vpop.f32.mrb[0].mxu0
    %v4073 = vadd.f32 %v3976, %v4072
    %v4074 = vpop.f32.mrb[0].mxu0
    %v4075 = vpop.f32.mrb[0].mxu0
    %v4076 = vadd.f32 %v3979, %v4075
    %v4077 = vpop.f32.mrb[0].mxu0
    %4078 = vmatprep.mubr.bf16.mxu0 %v2355
    %4079 = vmatmul.mubr.bf16.gmra.mrb[0].mxu0 %v2354
    %v4080 = vpop.f32.mrb[0].mxu0
    %v4081 = vadd.f32 %v3984, %v4080
    %v4082 = vpop.f32.mrb[0].mxu0
    %v4083 = vpop.f32.mrb[0].mxu0
    %v4084 = vadd.f32 %v3987, %v4083
    %v4085 = vpop.f32.mrb[0].mxu0
    %4086 = vmatprep.mubr.bf16.mxu0 %v2373
    %4087 = vmatmul.mubr.bf16.gmra.mrb[0].mxu0 %v2372
    %v4088 = vpop.f32.mrb[0].mxu0
    %v4089 = vadd.f32 %v3992, %v4088
    %v4090 = vpop.f32.mrb[0].mxu0
    %v4091 = vpop.f32.mrb[0].mxu0
    %v4092 = vadd.f32 %v3995, %v4091
    %v4093 = vpop.f32.mrb[0].mxu0
    %4094 = vmatprep.mubr.bf16.mxu0 %v2391
    %4095 = vmatmul.mubr.bf16.gmra.mrb[0].mxu0 %v2390
    %v4096 = vpop.f32.mrb[0].mxu0
    %v4097 = vadd.f32 %v4000, %v4096
    %v4098 = vpop.f32.mrb[0].mxu0
    %v4099 = vpop.f32.mrb[0].mxu0
    %v4100 = vadd.f32 %v4003, %v4099
    %v4101 = vpop.f32.mrb[0].mxu0
    %4102 = vmatprep.mubr.bf16.mxu0 %v2409
    %4103 = vmatmul.mubr.bf16.gmra.mrb[0].mxu0 %v2408
    %v4104 = vpop.f32.mrb[0].mxu0
    %v4105 = vadd.f32 %v4008, %v4104
    %v4106 = vpop.f32.mrb[0].mxu0
    %v4107 = vpop.f32.mrb[0].mxu0
    %v4108 = vadd.f32 %v4011, %v4107
    %v4109 = vpop.f32.mrb[0].mxu0
    %4110 = vmatprep.mubr.bf16.mxu0 %v2427
    %4111 = vmatmul.mubr.bf16.gmra.mrb[0].mxu0 %v2426
    %v4112 = vpop.f32.mrb[0].mxu0
    %v4113 = vadd.f32 %v4016, %v4112
    %v4114 = vpop.f32.mrb[0].mxu0
    %v4115 = vpop.f32.mrb[0].mxu0
    %v4116 = vadd.f32 %v4019, %v4115
    %v4117 = vpop.f32.mrb[0].mxu0
    %4118 = vdwg.mxu0
    %4119 = vmatprep.subr.bf16.mxu0 0
    %4120 = vmatpush1.bf16.msra.mxu0 %v3264
    %4121 = vmatprep.subr.bf16.mxu0 0
    %4122 = vmatpush1.bf16.msra.mxu0 %v3265
    %4123 = vmatprep.subr.bf16.mxu0 0
    %4124 = vmatpush1.bf16.msra.mxu0 %v3266
    %4125 = vmatprep.subr.bf16.mxu0 0
    %4126 = vmatpush1.bf16.msra.mxu0 %v3267
    %4127 = vmatprep.subr.bf16.mxu0 0
    %4128 = vmatpush1.bf16.msra.mxu0 %v3268
    %4129 = vmatprep.subr.bf16.mxu0 0
    %4130 = vmatpush1.bf16.msra.mxu0 %v3269
    %4131 = vmatprep.subr.bf16.mxu0 0
    %4132 = vmatpush1.bf16.msra.mxu0 %v3270
    %4133 = vmatprep.subr.bf16.mxu0 0
    %4134 = vmatpush1.bf16.msra.mxu0 %v3271
    %4135 = vmatprep.subr.bf16.mxu0 0
    %4136 = vmatpush1.bf16.msra.mxu0 %v3272
    %4137 = vmatprep.subr.bf16.mxu0 0
    %4138 = vmatpush1.bf16.msra.mxu0 %v3273
    %4139 = vmatprep.subr.bf16.mxu0 0
    %4140 = vmatpush1.bf16.msra.mxu0 %v3274
    %4141 = vmatprep.subr.bf16.mxu0 0
    %4142 = vmatpush1.bf16.msra.mxu0 %v3275
    %4143 = vmatprep.subr.bf16.mxu0 0
    %4144 = vmatpush1.bf16.msra.mxu0 %v3276
    %4145 = vmatprep.subr.bf16.mxu0 0
    %4146 = vmatpush1.bf16.msra.mxu0 %v3277
    %4147 = vmatprep.subr.bf16.mxu0 0
    %4148 = vmatpush1.bf16.msra.mxu0 %v3278
    %4149 = vmatprep.subr.bf16.mxu0 0
    %4150 = vmatpush1.bf16.msra.mxu0 %v3279
    %4151 = vmatprep.mubr.bf16.mxu0 %v2303
    %4152 = vmatmul.mubr.bf16.gmra.mrb[0].mxu0 %v2302
    %v4153 = vpop.f32.mrb[0].mxu0
    %v4154 = vadd.f32 %v4057, %v4153
    %v4155 = vpop.f32.mrb[0].mxu0
    %v4156 = vpop.f32.mrb[0].mxu0
    %v4157 = vadd.f32 %v4060, %v4156
    %v4158 = vpop.f32.mrb[0].mxu0
    %4159 = vmatprep.mubr.bf16.mxu0 %v2321
    %4160 = vmatmul.mubr.bf16.gmra.mrb[0].mxu0 %v2320
    %v4161 = vpop.f32.mrb[0].mxu0
    %v4162 = vadd.f32 %v4065, %v4161
    %v4163 = vpop.f32.mrb[0].mxu0
    %v4164 = vpop.f32.mrb[0].mxu0
    %v4165 = vadd.f32 %v4068, %v4164
    %v4166 = vpop.f32.mrb[0].mxu0
    %4167 = vmatprep.mubr.bf16.mxu0 %v2339
    %4168 = vmatmul.mubr.bf16.gmra.mrb[0].mxu0 %v2338
    %v4169 = vpop.f32.mrb[0].mxu0
    %v4170 = vadd.f32 %v4073, %v4169
    %v4171 = vpop.f32.mrb[0].mxu0
    %v4172 = vpop.f32.mrb[0].mxu0
    %v4173 = vadd.f32 %v4076, %v4172
    %v4174 = vpop.f32.mrb[0].mxu0
    %4175 = vmatprep.mubr.bf16.mxu0 %v2357
    %4176 = vmatmul.mubr.bf16.gmra.mrb[0].mxu0 %v2356
    %v4177 = vpop.f32.mrb[0].mxu0
    %v4178 = vadd.f32 %v4081, %v4177
    %v4179 = vpop.f32.mrb[0].mxu0
    %v4180 = vpop.f32.mrb[0].mxu0
    %v4181 = vadd.f32 %v4084, %v4180
    %v4182 = vpop.f32.mrb[0].mxu0
    %4183 = vmatprep.mubr.bf16.mxu0 %v2375
    %4184 = vmatmul.mubr.bf16.gmra.mrb[0].mxu0 %v2374
    %v4185 = vpop.f32.mrb[0].mxu0
    %v4186 = vadd.f32 %v4089, %v4185
    %v4187 = vpop.f32.mrb[0].mxu0
    %v4188 = vpop.f32.mrb[0].mxu0
    %v4189 = vadd.f32 %v4092, %v4188
    %v4190 = vpop.f32.mrb[0].mxu0
    %4191 = vmatprep.mubr.bf16.mxu0 %v2393
    %4192 = vmatmul.mubr.bf16.gmra.mrb[0].mxu0 %v2392
    %v4193 = vpop.f32.mrb[0].mxu0
    %v4194 = vadd.f32 %v4097, %v4193
    %v4195 = vpop.f32.mrb[0].mxu0
    %v4196 = vpop.f32.mrb[0].mxu0
    %v4197 = vadd.f32 %v4100, %v4196
    %v4198 = vpop.f32.mrb[0].mxu0
    %4199 = vmatprep.mubr.bf16.mxu0 %v2411
    %4200 = vmatmul.mubr.bf16.gmra.mrb[0].mxu0 %v2410
    %v4201 = vpop.f32.mrb[0].mxu0
    %v4202 = vadd.f32 %v4105, %v4201
    %v4203 = vpop.f32.mrb[0].mxu0
    %v4204 = vpop.f32.mrb[0].mxu0
    %v4205 = vadd.f32 %v4108, %v4204
    %v4206 = vpop.f32.mrb[0].mxu0
    %4207 = vmatprep.mubr.bf16.mxu0 %v2429
    %4208 = vmatmul.mubr.bf16.gmra.mrb[0].mxu0 %v2428
    %v4209 = vpop.f32.mrb[0].mxu0
    %v4210 = vadd.f32 %v4113, %v4209
    %v4211 = vpop.f32.mrb[0].mxu0
    %v4212 = vpop.f32.mrb[0].mxu0
    %v4213 = vadd.f32 %v4116, %v4212
    %v4214 = vpop.f32.mrb[0].mxu0
    %4215 = vdwg.mxu0
    %4216 = vmatprep.subr.bf16.mxu0 0
    %4217 = vmatpush1.bf16.msra.mxu0 %v3280
    %4218 = vmatprep.subr.bf16.mxu0 0
    %4219 = vmatpush1.bf16.msra.mxu0 %v3281
    %4220 = vmatprep.subr.bf16.mxu0 0
    %4221 = vmatpush1.bf16.msra.mxu0 %v3282
    %4222 = vmatprep.subr.bf16.mxu0 0
    %4223 = vmatpush1.bf16.msra.mxu0 %v3283
    %4224 = vmatprep.subr.bf16.mxu0 0
    %4225 = vmatpush1.bf16.msra.mxu0 %v3284
    %4226 = vmatprep.subr.bf16.mxu0 0
    %4227 = vmatpush1.bf16.msra.mxu0 %v3285
    %4228 = vmatprep.subr.bf16.mxu0 0
    %4229 = vmatpush1.bf16.msra.mxu0 %v3286
    %4230 = vmatprep.subr.bf16.mxu0 0
    %4231 = vmatpush1.bf16.msra.mxu0 %v3287
    %4232 = vmatprep.subr.bf16.mxu0 0
    %4233 = vmatpush1.bf16.msra.mxu0 %v3288
    %4234 = vmatprep.subr.bf16.mxu0 0
    %4235 = vmatpush1.bf16.msra.mxu0 %v3289
    %4236 = vmatprep.subr.bf16.mxu0 0
    %4237 = vmatpush1.bf16.msra.mxu0 %v3290
    %4238 = vmatprep.subr.bf16.mxu0 0
    %4239 = vmatpush1.bf16.msra.mxu0 %v3291
    %4240 = vmatprep.subr.bf16.mxu0 0
    %4241 = vmatpush1.bf16.msra.mxu0 %v3292
    %4242 = vmatprep.subr.bf16.mxu0 0
    %4243 = vmatpush1.bf16.msra.mxu0 %v3293
    %4244 = vmatprep.subr.bf16.mxu0 0
    %4245 = vmatpush1.bf16.msra.mxu0 %v3294
    %4246 = vmatprep.subr.bf16.mxu0 0
    %4247 = vmatpush1.bf16.msra.mxu0 %v3295
    %4248 = vmatprep.mubr.bf16.mxu0 %v2305
    %4249 = vmatmul.mubr.bf16.gmra.mrb[0].mxu0 %v2304
    %v4250 = vpop.f32.mrb[0].mxu0
    %v4251 = vadd.f32 %v4154, %v4250
    %v4252 = vpop.f32.mrb[0].mxu0
    %v4253 = vpop.f32.mrb[0].mxu0
    %v4254 = vadd.f32 %v4157, %v4253
    %v4255 = vpop.f32.mrb[0].mxu0
    %4256 = vmatprep.mubr.bf16.mxu0 %v2323
    %4257 = vmatmul.mubr.bf16.gmra.mrb[0].mxu0 %v2322
    %v4258 = vpop.f32.mrb[0].mxu0
    %v4259 = vadd.f32 %v4162, %v4258
    %v4260 = vpop.f32.mrb[0].mxu0
    %v4261 = vpop.f32.mrb[0].mxu0
    %v4262 = vadd.f32 %v4165, %v4261
    %v4263 = vpop.f32.mrb[0].mxu0
    %4264 = vmatprep.mubr.bf16.mxu0 %v2341
    %4265 = vmatmul.mubr.bf16.gmra.mrb[0].mxu0 %v2340
    %v4266 = vpop.f32.mrb[0].mxu0
    %v4267 = vadd.f32 %v4170, %v4266
    %v4268 = vpop.f32.mrb[0].mxu0
    %v4269 = vpop.f32.mrb[0].mxu0
    %v4270 = vadd.f32 %v4173, %v4269
    %v4271 = vpop.f32.mrb[0].mxu0
    %4272 = vmatprep.mubr.bf16.mxu0 %v2359
    %4273 = vmatmul.mubr.bf16.gmra.mrb[0].mxu0 %v2358
    %v4274 = vpop.f32.mrb[0].mxu0
    %v4275 = vadd.f32 %v4178, %v4274
    %v4276 = vpop.f32.mrb[0].mxu0
    %v4277 = vpop.f32.mrb[0].mxu0
    %v4278 = vadd.f32 %v4181, %v4277
    %v4279 = vpop.f32.mrb[0].mxu0
    %4280 = vmatprep.mubr.bf16.mxu0 %v2377
    %4281 = vmatmul.mubr.bf16.gmra.mrb[0].mxu0 %v2376
    %v4282 = vpop.f32.mrb[0].mxu0
    %v4283 = vadd.f32 %v4186, %v4282
    %v4284 = vpop.f32.mrb[0].mxu0
    %v4285 = vpop.f32.mrb[0].mxu0
    %v4286 = vadd.f32 %v4189, %v4285
    %v4287 = vpop.f32.mrb[0].mxu0
    %4288 = vmatprep.mubr.bf16.mxu0 %v2395
    %4289 = vmatmul.mubr.bf16.gmra.mrb[0].mxu0 %v2394
    %v4290 = vpop.f32.mrb[0].mxu0
    %v4291 = vadd.f32 %v4194, %v4290
    %v4292 = vpop.f32.mrb[0].mxu0
    %v4293 = vpop.f32.mrb[0].mxu0
    %v4294 = vadd.f32 %v4197, %v4293
    %v4295 = vpop.f32.mrb[0].mxu0
    %4296 = vmatprep.mubr.bf16.mxu0 %v2413
    %4297 = vmatmul.mubr.bf16.gmra.mrb[0].mxu0 %v2412
    %v4298 = vpop.f32.mrb[0].mxu0
    %v4299 = vadd.f32 %v4202, %v4298
    %v4300 = vpop.f32.mrb[0].mxu0
    %v4301 = vpop.f32.mrb[0].mxu0
    %v4302 = vadd.f32 %v4205, %v4301
    %v4303 = vpop.f32.mrb[0].mxu0
    %4304 = vmatprep.mubr.bf16.mxu0 %v2431
    %4305 = vmatmul.mubr.bf16.gmra.mrb[0].mxu0 %v2430
    %v4306 = vpop.f32.mrb[0].mxu0
    %v4307 = vadd.f32 %v4210, %v4306
    %v4308 = vpop.f32.mrb[0].mxu0
    %v4309 = vpop.f32.mrb[0].mxu0
    %v4310 = vadd.f32 %v4213, %v4309
    %v4311 = vpop.f32.mrb[0].mxu0
    %4312 = vdwg.mxu0
    %vm4313 = vcmask 261120
    %v4314 = vsel %vm4313, %v4251, 0.0
    %v4315 = vsel %vm4313, %v4254, 0.0
    %v4316 = vadd.f32 %v4314, %v4315
    %v4317 = vsel %vm4313, %v4259, 0.0
    %v4318 = vadd.f32 %v4316, %v4317
    %v4319 = vsel %vm4313, %v4262, 0.0
    %v4320 = vadd.f32 %v4318, %v4319
    %v4321 = vsel %vm4313, %v4267, 0.0
    %v4322 = vadd.f32 %v4320, %v4321
    %v4323 = vsel %vm4313, %v4270, 0.0
    %v4324 = vadd.f32 %v4322, %v4323
    %v4325 = vsel %vm4313, %v4275, 0.0
    %v4326 = vadd.f32 %v4324, %v4325
    %v4327 = vsel %vm4313, %v4278, 0.0
    %v4328 = vadd.f32 %v4326, %v4327
    %v4329 = vsel %vm4313, %v4283, 0.0
    %v4330 = vadd.f32 %v4328, %v4329
    %v4331 = vsel %vm4313, %v4286, 0.0
    %v4332 = vadd.f32 %v4330, %v4331
    %v4333 = vsel %vm4313, %v4291, 0.0
    %v4334 = vadd.f32 %v4332, %v4333
    %v4335 = vsel %vm4313, %v4294, 0.0
    %v4336 = vadd.f32 %v4334, %v4335
    %v4337 = vsel %vm4313, %v4299, 0.0
    %v4338 = vadd.f32 %v4336, %v4337
    %v4339 = vsel %vm4313, %v4302, 0.0
    %v4340 = vadd.f32 %v4338, %v4339
    %v4341 = vsel %vm4313, %v4307, 0.0
    %v4342 = vadd.f32 %v4340, %v4341
    %v4343 = vsel %vm4313, %v4310, 0.0
    %v4344 = vadd.f32 %v4342, %v4343
    %v4345 = vrot.slane %v4344, 4
    %v4346 = vadd.f32 %v4344, %v4345
    %v4347 = vrot.slane %v4346, 2
    %v4348 = vadd.f32 %v4346, %v4347
    %v4349 = vrot.slane %v4348, 1
    %v4350 = vadd.f32 %v4348, %v4349
    %v4351 = vrcp.pop 128.0
    %v4352 = vmul.f32 %v4350, %v4351
    %v4353 = vsub.f32 %v4251, %v4352
    %v4354 = vsub.f32 %v4254, %v4352
    %v4355 = vsub.f32 %v4259, %v4352
    %v4356 = vsub.f32 %v4262, %v4352
    %v4357 = vsub.f32 %v4267, %v4352
    %v4358 = vsub.f32 %v4270, %v4352
    %v4359 = vsub.f32 %v4275, %v4352
    %v4360 = vsub.f32 %v4278, %v4352
    %v4361 = vsub.f32 %v4283, %v4352
    %v4362 = vsub.f32 %v4286, %v4352
    %v4363 = vsub.f32 %v4291, %v4352
    %v4364 = vsub.f32 %v4294, %v4352
    %v4365 = vsub.f32 %v4299, %v4352
    %v4366 = vsub.f32 %v4302, %v4352
    %v4367 = vsub.f32 %v4307, %v4352
    %v4368 = vsub.f32 %v4310, %v4352
    %v4369 = vmul.f32 %v4353, %v4353
    %v4370 = vmul.f32 %v4354, %v4354
    %v4371 = vmul.f32 %v4355, %v4355
    %v4372 = vmul.f32 %v4356, %v4356
    %v4373 = vmul.f32 %v4357, %v4357
    %v4374 = vmul.f32 %v4358, %v4358
    %v4375 = vmul.f32 %v4359, %v4359
    %v4376 = vmul.f32 %v4360, %v4360
    %v4377 = vmul.f32 %v4361, %v4361
    %v4378 = vmul.f32 %v4362, %v4362
    %v4379 = vmul.f32 %v4363, %v4363
    %v4380 = vmul.f32 %v4364, %v4364
    %v4381 = vmul.f32 %v4365, %v4365
    %v4382 = vmul.f32 %v4366, %v4366
    %v4383 = vmul.f32 %v4367, %v4367
    %v4384 = vmul.f32 %v4368, %v4368
    %v4385 = vsel %vm4313, %v4369, 0.0
    %v4386 = vsel %vm4313, %v4370, 0.0
    %v4387 = vadd.f32 %v4385, %v4386
    %v4388 = vsel %vm4313, %v4371, 0.0
    %v4389 = vadd.f32 %v4387, %v4388
    %v4390 = vsel %vm4313, %v4372, 0.0
    %v4391 = vadd.f32 %v4389, %v4390
    %v4392 = vsel %vm4313, %v4373, 0.0
    %v4393 = vadd.f32 %v4391, %v4392
    %v4394 = vsel %vm4313, %v4374, 0.0
    %v4395 = vadd.f32 %v4393, %v4394
    %v4396 = vsel %vm4313, %v4375, 0.0
    %v4397 = vadd.f32 %v4395, %v4396
    %v4398 = vsel %vm4313, %v4376, 0.0
    %v4399 = vadd.f32 %v4397, %v4398
    %v4400 = vsel %vm4313, %v4377, 0.0
    %v4401 = vadd.f32 %v4399, %v4400
    %v4402 = vsel %vm4313, %v4378, 0.0
    %v4403 = vadd.f32 %v4401, %v4402
    %v4404 = vsel %vm4313, %v4379, 0.0
    %v4405 = vadd.f32 %v4403, %v4404
    %v4406 = vsel %vm4313, %v4380, 0.0
    %v4407 = vadd.f32 %v4405, %v4406
    %v4408 = vsel %vm4313, %v4381, 0.0
    %v4409 = vadd.f32 %v4407, %v4408
    %v4410 = vsel %vm4313, %v4382, 0.0
    %v4411 = vadd.f32 %v4409, %v4410
    %v4412 = vsel %vm4313, %v4383, 0.0
    %v4413 = vadd.f32 %v4411, %v4412
    %v4414 = vsel %vm4313, %v4384, 0.0
    %v4415 = vadd.f32 %v4413, %v4414
    %v4416 = vrot.slane %v4415, 4
    %v4417 = vadd.f32 %v4415, %v4416
    %v4418 = vrot.slane %v4417, 2
    %v4419 = vadd.f32 %v4417, %v4418
    %v4420 = vrot.slane %v4419, 1
    %v4421 = vadd.f32 %v4419, %v4420
    %v4422 = vmul.f32 %v4421, %v4351
    %v4423 = vld [vmem:[%s2] sm:$0x1]
    %v4424 = vadd.f32 %v4422, 1e-05
    %v4425 = vrsqrt.pop %v4424
    %v4426 = vmul.f32 %v4423, %v4425
    %v4427 = vld [vmem:[%s3] sm:$0x1]
    %v4428 = vmul.f32 %v4352, %v4426
    %v4429 = vsub.f32 %v4427, %v4428
    %v4431 = vlaneseq
    %v4432 = vshrl.u32 %v4431, 7
    %v4433 = vsub.s32 0, %v4432
    %v4434 = vrot.slane %v4426, %v4433
    %v4436 = vmul.f32 %v4251, %v4434
    %v4437 = vmul.f32 %v4254, %v4434
    %v4438 = vmul.f32 %v4259, %v4434
    %v4439 = vmul.f32 %v4262, %v4434
    %v4440 = vmul.f32 %v4267, %v4434
    %v4441 = vmul.f32 %v4270, %v4434
    %v4442 = vmul.f32 %v4275, %v4434
    %v4443 = vmul.f32 %v4278, %v4434
    %v4444 = vmul.f32 %v4283, %v4434
    %v4445 = vmul.f32 %v4286, %v4434
    %v4446 = vmul.f32 %v4291, %v4434
    %v4447 = vmul.f32 %v4294, %v4434
    %v4448 = vmul.f32 %v4299, %v4434
    %v4449 = vmul.f32 %v4302, %v4434
    %v4450 = vmul.f32 %v4307, %v4434
    %v4451 = vmul.f32 %v4310, %v4434
    %v4453 = vlaneseq
    %v4454 = vshrl.u32 %v4453, 7
    %v4455 = vsub.s32 0, %v4454
    %v4456 = vrot.slane %v4429, %v4455
    %v4458 = vadd.f32 %v4436, %v4456
    %v4459 = vadd.f32 %v4437, %v4456
    %v4460 = vadd.f32 %v4438, %v4456
    %v4461 = vadd.f32 %v4439, %v4456
    %v4462 = vadd.f32 %v4440, %v4456
    %v4463 = vadd.f32 %v4441, %v4456
    %v4464 = vadd.f32 %v4442, %v4456
    %v4465 = vadd.f32 %v4443, %v4456
    %v4466 = vadd.f32 %v4444, %v4456
    %v4467 = vadd.f32 %v4445, %v4456
    %v4468 = vadd.f32 %v4446, %v4456
    %v4469 = vadd.f32 %v4447, %v4456
    %v4470 = vadd.f32 %v4448, %v4456
    %v4471 = vadd.f32 %v4449, %v4456
    %v4472 = vadd.f32 %v4450, %v4456
    %v4473 = vadd.f32 %v4451, %v4456
    %v4474 = vmax.f32 %v4458, 0.0
    %v4475 = vmax.f32 %v4459, 0.0
    %v4476 = vmax.f32 %v4460, 0.0
    %v4477 = vmax.f32 %v4461, 0.0
    %v4478 = vmax.f32 %v4462, 0.0
    %v4479 = vmax.f32 %v4463, 0.0
    %v4480 = vmax.f32 %v4464, 0.0
    %v4481 = vmax.f32 %v4465, 0.0
    %v4482 = vmax.f32 %v4466, 0.0
    %v4483 = vmax.f32 %v4467, 0.0
    %v4484 = vmax.f32 %v4468, 0.0
    %v4485 = vmax.f32 %v4469, 0.0
    %v4486 = vmax.f32 %v4470, 0.0
    %v4487 = vmax.f32 %v4471, 0.0
    %v4488 = vmax.f32 %v4472, 0.0
    %v4489 = vmax.f32 %v4473, 0.0
    %v4490 = vpack.c.bf16 %v4475, %v4474
    %v4491 = vpack.c.bf16 %v4477, %v4476
    %v4492 = vpack.c.bf16 %v4479, %v4478
    %v4493 = vpack.c.bf16 %v4481, %v4480
    %v4494 = vpack.c.bf16 %v4483, %v4482
    %v4495 = vpack.c.bf16 %v4485, %v4484
    %v4496 = vpack.c.bf16 %v4487, %v4486
    %v4497 = vpack.c.bf16 %v4489, %v4488
    %v4506 = vunpack.c.l.b16 %v4490
    %v4507 = vunpack.c.h.b16 %v4490
    %v4508 = vunpack.c.l.b16 %v4491
    %v4509 = vunpack.c.h.b16 %v4491
    %v4510 = vunpack.c.l.b16 %v4492
    %v4511 = vunpack.c.h.b16 %v4492
    %v4512 = vunpack.c.l.b16 %v4493
    %v4513 = vunpack.c.h.b16 %v4493
    %v4514 = vunpack.c.l.b16 %v4494
    %v4515 = vunpack.c.h.b16 %v4494
    %v4516 = vunpack.c.l.b16 %v4495
    %v4517 = vunpack.c.h.b16 %v4495
    %v4518 = vunpack.c.l.b16 %v4496
    %v4519 = vunpack.c.h.b16 %v4496
    %v4520 = vunpack.c.l.b16 %v4497
    %v4521 = vunpack.c.h.b16 %v4497
    %v4522 = vpack.c.b16 %v4506, %v4506
    %v4523 = vpack.c.b16 %v4507, %v4507
    %v4524 = vpack.c.b16 %v4508, %v4508
    %v4525 = vpack.c.b16 %v4509, %v4509
    %v4526 = vpack.c.b16 %v4510, %v4510
    %v4527 = vpack.c.b16 %v4511, %v4511
    %v4528 = vpack.c.b16 %v4512, %v4512
    %v4529 = vpack.c.b16 %v4513, %v4513
    %v4530 = vpack.c.b16 %v4514, %v4514
    %v4531 = vpack.c.b16 %v4515, %v4515
    %v4532 = vpack.c.b16 %v4516, %v4516
    %v4533 = vpack.c.b16 %v4517, %v4517
    %v4534 = vpack.c.b16 %v4518, %v4518
    %v4535 = vpack.c.b16 %v4519, %v4519
    %v4536 = vpack.c.b16 %v4520, %v4520
    %v4537 = vpack.c.b16 %v4521, %v4521
    %4554 = vst [vmem:[#allocation3] sm:$0xff] 0
    %vm4555 = vcmask 257024
    %4556 = vst.msk [vmem:[#allocation3 + $0x8] sm:$0xf] %vm4555, 0
    %4557 = vst [vmem:[#allocation3 + $0xc] sm:$0xff] 0
    %4558 = vst.msk [vmem:[#allocation3 + $0x14] sm:$0xf] %vm4555, 0
    %4559 = vst [vmem:[#allocation3 + $0x18] sm:$0xff] 0
    %4560 = vst.msk [vmem:[#allocation3 + $0x20] sm:$0xf] %vm4555, 0
    %4561 = vst [vmem:[#allocation3 + $0x24] sm:$0xff] 0
    %4562 = vst.msk [vmem:[#allocation3 + $0x2c] sm:$0xf] %vm4555, 0
    %4563 = vst [vmem:[#allocation3 + $0x30] sm:$0xff] 0
    %4564 = vst.msk [vmem:[#allocation3 + $0x38] sm:$0xf] %vm4555, 0
    %4565 = vst [vmem:[#allocation3 + $0x3c] sm:$0xff] 0
    %4566 = vst.msk [vmem:[#allocation3 + $0x44] sm:$0xf] %vm4555, 0
    %4567 = vst [vmem:[#allocation3 + $0x48] sm:$0xff] 0
    %4568 = vst.msk [vmem:[#allocation3 + $0x50] sm:$0xf] %vm4555, 0
    %4569 = vst [vmem:[#allocation3 + $0x54] sm:$0xff] 0
    %4570 = vst.msk [vmem:[#allocation3 + $0x5c] sm:$0xf] %vm4555, 0
    %4571 = vst [vmem:[#allocation3 + $0x60] sm:$0xff] 0
    %4572 = vst.msk [vmem:[#allocation3 + $0x68] sm:$0xf] %vm4555, 0
    %4573 = vst [vmem:[#allocation3 + $0x6c] sm:$0xff] 0
    %4574 = vst.msk [vmem:[#allocation3 + $0x74] sm:$0xf] %vm4555, 0
    %4575 = vst [vmem:[#allocation3 + $0x78] sm:$0xff] 0
    %4576 = vst.msk [vmem:[#allocation3 + $0x80] sm:$0xf] %vm4555, 0
    %4577 = vst [vmem:[#allocation3 + $0x84] sm:$0xff] 0
    %4578 = vst.msk [vmem:[#allocation3 + $0x8c] sm:$0xf] %vm4555, 0
    %4579 = vst [vmem:[#allocation3 + $0x90] sm:$0xff] 0
    %4580 = vst.msk [vmem:[#allocation3 + $0x98] sm:$0xf] %vm4555, 0
    %4581 = vst [vmem:[#allocation3 + $0x9c] sm:$0xff] 0
    %4582 = vst.msk [vmem:[#allocation3 + $0xa4] sm:$0xf] %vm4555, 0
    %4583 = vst [vmem:[#allocation3 + $0xa8] sm:$0xff] 0
    %4584 = vst.msk [vmem:[#allocation3 + $0xb0] sm:$0xf] %vm4555, 0
    %4585 = vst [vmem:[#allocation3 + $0xb4] sm:$0xff] 0
    %4586 = vst.msk [vmem:[#allocation3 + $0xbc] sm:$0xf] %vm4555, 0
    %v4588 = vshrl.u32 %v4522, 16
    %v4590 = vrot.slane %v4588, 7
    %v4591 = vshll.u32 %v4522, 16
    %v4593 = vor.u32 %v4590, %v4591
    %v4595 = vshrl.u32 %v4523, 16
    %v4597 = vrot.slane %v4595, 7
    %v4598 = vshll.u32 %v4523, 16
    %v4600 = vor.u32 %v4597, %v4598
    %v4602 = vshrl.u32 %v4524, 16
    %v4604 = vrot.slane %v4602, 7
    %v4605 = vshll.u32 %v4524, 16
    %v4607 = vor.u32 %v4604, %v4605
    %v4609 = vshrl.u32 %v4525, 16
    %v4611 = vrot.slane %v4609, 7
    %v4612 = vshll.u32 %v4525, 16
    %v4614 = vor.u32 %v4611, %v4612
    %v4616 = vshrl.u32 %v4526, 16
    %v4618 = vrot.slane %v4616, 7
    %v4619 = vshll.u32 %v4526, 16
    %v4621 = vor.u32 %v4618, %v4619
    %v4623 = vshrl.u32 %v4527, 16
    %v4625 = vrot.slane %v4623, 7
    %v4626 = vshll.u32 %v4527, 16
    %v4628 = vor.u32 %v4625, %v4626
    %v4630 = vshrl.u32 %v4528, 16
    %v4632 = vrot.slane %v4630, 7
    %v4633 = vshll.u32 %v4528, 16
    %v4635 = vor.u32 %v4632, %v4633
    %v4637 = vshrl.u32 %v4530, 16
    %v4639 = vrot.slane %v4637, 7
    %v4640 = vshll.u32 %v4530, 16
    %v4642 = vor.u32 %v4639, %v4640
    %v4644 = vshrl.u32 %v4531, 16
    %v4646 = vrot.slane %v4644, 7
    %v4647 = vshll.u32 %v4531, 16
    %v4649 = vor.u32 %v4646, %v4647
    %v4651 = vshrl.u32 %v4532, 16
    %v4653 = vrot.slane %v4651, 7
    %v4654 = vshll.u32 %v4532, 16
    %v4656 = vor.u32 %v4653, %v4654
    %v4658 = vshrl.u32 %v4533, 16
    %v4660 = vrot.slane %v4658, 7
    %v4661 = vshll.u32 %v4533, 16
    %v4663 = vor.u32 %v4660, %v4661
    %v4665 = vshrl.u32 %v4534, 16
    %v4667 = vrot.slane %v4665, 7
    %v4668 = vshll.u32 %v4534, 16
    %v4670 = vor.u32 %v4667, %v4668
    %v4672 = vshrl.u32 %v4535, 16
    %v4674 = vrot.slane %v4672, 7
    %v4675 = vshll.u32 %v4535, 16
    %v4677 = vor.u32 %v4674, %v4675
    %v4679 = vshrl.u32 %v4536, 16
    %v4681 = vrot.slane %v4679, 7
    %v4682 = vshll.u32 %v4536, 16
    %v4684 = vor.u32 %v4681, %v4682
    %s4699 = scalar_lea.vmem [#allocation3], 12
    %vm4700 = vcmask 257024
    %vm4701 = vmand %vm4700, %vm306
    %v4702 = vld [vmem:[%s4699] sm:$0xf]
    %v4703 = vsel %vm4701, %v4593, %v4702
    %4704 = vst [vmem:[%s4699] sm:$0xf] %v4703
    %v4705 = vld [vmem:[%s4699 + $0xc] sm:$0xf]
    %v4706 = vsel %vm4701, %v4600, %v4705
    %4707 = vst [vmem:[%s4699 + $0xc] sm:$0xf] %v4706
    %v4708 = vld [vmem:[%s4699 + $0x18] sm:$0xf]
    %v4709 = vsel %vm4701, %v4607, %v4708
    %4710 = vst [vmem:[%s4699 + $0x18] sm:$0xf] %v4709
    %v4711 = vld [vmem:[%s4699 + $0x24] sm:$0xf]
    %v4712 = vsel %vm4701, %v4614, %v4711
    %4713 = vst [vmem:[%s4699 + $0x24] sm:$0xf] %v4712
    %v4714 = vld [vmem:[%s4699 + $0x30] sm:$0xf]
    %v4715 = vsel %vm4701, %v4621, %v4714
    %4716 = vst [vmem:[%s4699 + $0x30] sm:$0xf] %v4715
    %v4717 = vld [vmem:[%s4699 + $0x3c] sm:$0xf]
    %v4718 = vsel %vm4701, %v4628, %v4717
    %4719 = vst [vmem:[%s4699 + $0x3c] sm:$0xf] %v4718
    %v4720 = vld [vmem:[%s4699 + $0x48] sm:$0xf]
    %v4721 = vsel %vm4701, %v4635, %v4720
    %4722 = vst [vmem:[%s4699 + $0x48] sm:$0xf] %v4721
    %v4723 = vld [vmem:[%s4699 + $0x60] sm:$0xf]
    %v4724 = vsel %vm4701, %v4642, %v4723
    %4725 = vst [vmem:[%s4699 + $0x60] sm:$0xf] %v4724
    %v4726 = vld [vmem:[%s4699 + $0x6c] sm:$0xf]
    %v4727 = vsel %vm4701, %v4649, %v4726
    %4728 = vst [vmem:[%s4699 + $0x6c] sm:$0xf] %v4727
    %v4729 = vld [vmem:[%s4699 + $0x78] sm:$0xf]
    %v4730 = vsel %vm4701, %v4656, %v4729
    %4731 = vst [vmem:[%s4699 + $0x78] sm:$0xf] %v4730
    %v4732 = vld [vmem:[%s4699 + $0x84] sm:$0xf]
    %v4733 = vsel %vm4701, %v4663, %v4732
    %4734 = vst [vmem:[%s4699 + $0x84] sm:$0xf] %v4733
    %v4735 = vld [vmem:[%s4699 + $0x90] sm:$0xf]
    %v4736 = vsel %vm4701, %v4670, %v4735
    %4737 = vst [vmem:[%s4699 + $0x90] sm:$0xf] %v4736
    %v4738 = vld [vmem:[%s4699 + $0x9c] sm:$0xf]
    %v4739 = vsel %vm4701, %v4677, %v4738
    %4740 = vst [vmem:[%s4699 + $0x9c] sm:$0xf] %v4739
    %v4741 = vld [vmem:[%s4699 + $0xa8] sm:$0xf]
    %v4742 = vsel %vm4701, %v4684, %v4741
    %4743 = vst [vmem:[%s4699 + $0xa8] sm:$0xf] %v4742
    %4744 = vrot.lane.b32.xlu0 %v4522, 32
    %v4745 = vpop.permute.xlu0 %4744
    %4746 = vrot.lane.b32.xlu0 %v4523, 32
    %v4747 = vpop.permute.xlu0 %4746
    %4748 = vrot.lane.b32.xlu0 %v4524, 32
    %v4749 = vpop.permute.xlu0 %4748
    %4750 = vrot.lane.b32.xlu0 %v4525, 32
    %v4751 = vpop.permute.xlu0 %4750
    %4752 = vrot.lane.b32.xlu0 %v4526, 32
    %v4753 = vpop.permute.xlu0 %4752
    %4754 = vrot.lane.b32.xlu0 %v4527, 32
    %v4755 = vpop.permute.xlu0 %4754
    %4756 = vrot.lane.b32.xlu0 %v4528, 32
    %v4757 = vpop.permute.xlu0 %4756
    %4758 = vrot.lane.b32.xlu0 %v4530, 32
    %v4759 = vpop.permute.xlu0 %4758
    %4760 = vrot.lane.b32.xlu0 %v4531, 32
    %v4761 = vpop.permute.xlu0 %4760
    %4762 = vrot.lane.b32.xlu0 %v4532, 32
    %v4763 = vpop.permute.xlu0 %4762
    %4764 = vrot.lane.b32.xlu0 %v4533, 32
    %v4765 = vpop.permute.xlu0 %4764
    %4766 = vrot.lane.b32.xlu0 %v4534, 32
    %v4767 = vpop.permute.xlu0 %4766
    %4768 = vrot.lane.b32.xlu0 %v4535, 32
    %v4769 = vpop.permute.xlu0 %4768
    %4770 = vrot.lane.b32.xlu0 %v4536, 32
    %v4771 = vpop.permute.xlu0 %4770
    %vm4786 = vcmask 519424
    %4787 = vst.msk [vmem:[%s4699] sm:$0xf] %vm4786, %v4745
    %4788 = vst.msk [vmem:[%s4699 + $0xc] sm:$0xf] %vm4786, %v4747
    %4789 = vst.msk [vmem:[%s4699 + $0x18] sm:$0xf] %vm4786, %v4749
    %4790 = vst.msk [vmem:[%s4699 + $0x24] sm:$0xf] %vm4786, %v4751
    %4791 = vst.msk [vmem:[%s4699 + $0x30] sm:$0xf] %vm4786, %v4753
    %4792 = vst.msk [vmem:[%s4699 + $0x3c] sm:$0xf] %vm4786, %v4755
    %4793 = vst.msk [vmem:[%s4699 + $0x48] sm:$0xf] %vm4786, %v4757
    %4794 = vst.msk [vmem:[%s4699 + $0x60] sm:$0xf] %vm4786, %v4759
    %4795 = vst.msk [vmem:[%s4699 + $0x6c] sm:$0xf] %vm4786, %v4761
    %4796 = vst.msk [vmem:[%s4699 + $0x78] sm:$0xf] %vm4786, %v4763
    %4797 = vst.msk [vmem:[%s4699 + $0x84] sm:$0xf] %vm4786, %v4765
    %4798 = vst.msk [vmem:[%s4699 + $0x90] sm:$0xf] %vm4786, %v4767
    %4799 = vst.msk [vmem:[%s4699 + $0x9c] sm:$0xf] %vm4786, %v4769
    %4800 = vst.msk [vmem:[%s4699 + $0xa8] sm:$0xf] %vm4786, %v4771
    %v4801 = vrot.slane %v4588, 4
    %v4802 = vrot.slane %v4591, 5
    %v4803 = vor.u32 %v4801, %v4802
    %v4804 = vrot.slane %v4803, 4
    %v4805 = vrot.slane %v4595, 4
    %v4806 = vrot.slane %v4598, 5
    %v4807 = vor.u32 %v4805, %v4806
    %v4808 = vrot.slane %v4807, 4
    %v4809 = vrot.slane %v4602, 4
    %v4810 = vrot.slane %v4605, 5
    %v4811 = vor.u32 %v4809, %v4810
    %v4812 = vrot.slane %v4811, 4
    %v4813 = vrot.slane %v4609, 4
    %v4814 = vrot.slane %v4612, 5
    %v4815 = vor.u32 %v4813, %v4814
    %v4816 = vrot.slane %v4815, 4
    %v4817 = vrot.slane %v4616, 4
    %v4818 = vrot.slane %v4619, 5
    %v4819 = vor.u32 %v4817, %v4818
    %v4820 = vrot.slane %v4819, 4
    %v4821 = vrot.slane %v4623, 4
    %v4822 = vrot.slane %v4626, 5
    %v4823 = vor.u32 %v4821, %v4822
    %v4824 = vrot.slane %v4823, 4
    %v4825 = vrot.slane %v4630, 4
    %v4826 = vrot.slane %v4633, 5
    %v4827 = vor.u32 %v4825, %v4826
    %v4828 = vrot.slane %v4827, 4
    %v4829 = vrot.slane %v4637, 4
    %v4830 = vrot.slane %v4640, 5
    %v4831 = vor.u32 %v4829, %v4830
    %v4832 = vrot.slane %v4831, 4
    %v4833 = vrot.slane %v4644, 4
    %v4834 = vrot.slane %v4647, 5
    %v4835 = vor.u32 %v4833, %v4834
    %v4836 = vrot.slane %v4835, 4
    %v4837 = vrot.slane %v4651, 4
    %v4838 = vrot.slane %v4654, 5
    %v4839 = vor.u32 %v4837, %v4838
    %v4840 = vrot.slane %v4839, 4
    %v4841 = vrot.slane %v4658, 4
    %v4842 = vrot.slane %v4661, 5
    %v4843 = vor.u32 %v4841, %v4842
    %v4844 = vrot.slane %v4843, 4
    %v4845 = vrot.slane %v4665, 4
    %v4846 = vrot.slane %v4668, 5
    %v4847 = vor.u32 %v4845, %v4846
    %v4848 = vrot.slane %v4847, 4
    %v4849 = vrot.slane %v4672, 4
    %v4850 = vrot.slane %v4675, 5
    %v4851 = vor.u32 %v4849, %v4850
    %v4852 = vrot.slane %v4851, 4
    %v4853 = vrot.slane %v4679, 4
    %v4854 = vrot.slane %v4682, 5
    %v4855 = vor.u32 %v4853, %v4854
    %v4856 = vrot.slane %v4855, 4
    %4857 = vrot.lane.b32.xlu0 %v4804, 64
    %v4858 = vpop.permute.xlu0 %4857
    %4859 = vrot.lane.b32.xlu0 %v4808, 64
    %v4860 = vpop.permute.xlu0 %4859
    %4861 = vrot.lane.b32.xlu0 %v4812, 64
    %v4862 = vpop.permute.xlu0 %4861
    %4863 = vrot.lane.b32.xlu0 %v4816, 64
    %v4864 = vpop.permute.xlu0 %4863
    %4865 = vrot.lane.b32.xlu0 %v4820, 64
    %v4866 = vpop.permute.xlu0 %4865
    %4867 = vrot.lane.b32.xlu0 %v4824, 64
    %v4868 = vpop.permute.xlu0 %4867
    %4869 = vrot.lane.b32.xlu0 %v4828, 64
    %v4870 = vpop.permute.xlu0 %4869
    %4871 = vrot.lane.b32.xlu0 %v4832, 64
    %v4872 = vpop.permute.xlu0 %4871
    %4873 = vrot.lane.b32.xlu0 %v4836, 64
    %v4874 = vpop.permute.xlu0 %4873
    %4875 = vrot.lane.b32.xlu0 %v4840, 64
    %v4876 = vpop.permute.xlu0 %4875
    %4877 = vrot.lane.b32.xlu0 %v4844, 64
    %v4878 = vpop.permute.xlu0 %4877
    %4879 = vrot.lane.b32.xlu0 %v4848, 64
    %v4880 = vpop.permute.xlu0 %4879
    %4881 = vrot.lane.b32.xlu0 %v4852, 64
    %v4882 = vpop.permute.xlu0 %4881
    %4883 = vrot.lane.b32.xlu0 %v4856, 64
    %v4884 = vpop.permute.xlu0 %4883
    %vm4899 = vcmask 781824
    %vm4900 = vmand %vm4899, %vm536
    %v4901 = vld [vmem:[%s4699] sm:$0xf]
    %v4902 = vsel %vm4900, %v4858, %v4901
    %4903 = vst [vmem:[%s4699] sm:$0xf] %v4902
    %v4904 = vld [vmem:[%s4699 + $0xc] sm:$0xf]
    %v4905 = vsel %vm4900, %v4860, %v4904
    %4906 = vst [vmem:[%s4699 + $0xc] sm:$0xf] %v4905
    %v4907 = vld [vmem:[%s4699 + $0x18] sm:$0xf]
    %v4908 = vsel %vm4900, %v4862, %v4907
    %4909 = vst [vmem:[%s4699 + $0x18] sm:$0xf] %v4908
    %v4910 = vld [vmem:[%s4699 + $0x24] sm:$0xf]
    %v4911 = vsel %vm4900, %v4864, %v4910
    %4912 = vst [vmem:[%s4699 + $0x24] sm:$0xf] %v4911
    %v4913 = vld [vmem:[%s4699 + $0x30] sm:$0xf]
    %v4914 = vsel %vm4900, %v4866, %v4913
    %4915 = vst [vmem:[%s4699 + $0x30] sm:$0xf] %v4914
    %v4916 = vld [vmem:[%s4699 + $0x3c] sm:$0xf]
    %v4917 = vsel %vm4900, %v4868, %v4916
    %4918 = vst [vmem:[%s4699 + $0x3c] sm:$0xf] %v4917
    %v4919 = vld [vmem:[%s4699 + $0x48] sm:$0xf]
    %v4920 = vsel %vm4900, %v4870, %v4919
    %4921 = vst [vmem:[%s4699 + $0x48] sm:$0xf] %v4920
    %v4922 = vld [vmem:[%s4699 + $0x60] sm:$0xf]
    %v4923 = vsel %vm4900, %v4872, %v4922
    %4924 = vst [vmem:[%s4699 + $0x60] sm:$0xf] %v4923
    %v4925 = vld [vmem:[%s4699 + $0x6c] sm:$0xf]
    %v4926 = vsel %vm4900, %v4874, %v4925
    %4927 = vst [vmem:[%s4699 + $0x6c] sm:$0xf] %v4926
    %v4928 = vld [vmem:[%s4699 + $0x78] sm:$0xf]
    %v4929 = vsel %vm4900, %v4876, %v4928
    %4930 = vst [vmem:[%s4699 + $0x78] sm:$0xf] %v4929
    %v4931 = vld [vmem:[%s4699 + $0x84] sm:$0xf]
    %v4932 = vsel %vm4900, %v4878, %v4931
    %4933 = vst [vmem:[%s4699 + $0x84] sm:$0xf] %v4932
    %v4934 = vld [vmem:[%s4699 + $0x90] sm:$0xf]
    %v4935 = vsel %vm4900, %v4880, %v4934
    %4936 = vst [vmem:[%s4699 + $0x90] sm:$0xf] %v4935
    %v4937 = vld [vmem:[%s4699 + $0x9c] sm:$0xf]
    %v4938 = vsel %vm4900, %v4882, %v4937
    %4939 = vst [vmem:[%s4699 + $0x9c] sm:$0xf] %v4938
    %v4940 = vld [vmem:[%s4699 + $0xa8] sm:$0xf]
    %v4941 = vsel %vm4900, %v4884, %v4940
    %4942 = vst [vmem:[%s4699 + $0xa8] sm:$0xf] %v4941
    %v4944 = vshrl.u32 %v4529, 16
    %v4946 = vrot.slane %v4944, 7
    %v4947 = vshll.u32 %v4529, 16
    %v4949 = vor.u32 %v4946, %v4947
    %v4951 = vshrl.u32 %v4537, 16
    %v4953 = vrot.slane %v4951, 7
    %v4954 = vshll.u32 %v4537, 16
    %v4956 = vor.u32 %v4953, %v4954
    %4957 = vrot.lane.b32.xlu0 %v4593, 96
    %v4958 = vpop.permute.xlu0 %4957
    %4959 = vrot.lane.b32.xlu0 %v4600, 96
    %v4960 = vpop.permute.xlu0 %4959
    %4961 = vrot.lane.b32.xlu0 %v4607, 96
    %v4962 = vpop.permute.xlu0 %4961
    %4963 = vrot.lane.b32.xlu0 %v4614, 96
    %v4964 = vpop.permute.xlu0 %4963
    %4965 = vrot.lane.b32.xlu0 %v4621, 96
    %v4966 = vpop.permute.xlu0 %4965
    %4967 = vrot.lane.b32.xlu0 %v4628, 96
    %v4968 = vpop.permute.xlu0 %4967
    %4969 = vrot.lane.b32.xlu0 %v4635, 96
    %v4970 = vpop.permute.xlu0 %4969
    %4971 = vrot.lane.b32.xlu0 %v4949, 96
    %v4972 = vpop.permute.xlu0 %4971
    %4973 = vrot.lane.b32.xlu0 %v4642, 96
    %v4974 = vpop.permute.xlu0 %4973
    %4975 = vrot.lane.b32.xlu0 %v4649, 96
    %v4976 = vpop.permute.xlu0 %4975
    %4977 = vrot.lane.b32.xlu0 %v4656, 96
    %v4978 = vpop.permute.xlu0 %4977
    %4979 = vrot.lane.b32.xlu0 %v4663, 96
    %v4980 = vpop.permute.xlu0 %4979
    %4981 = vrot.lane.b32.xlu0 %v4670, 96
    %v4982 = vpop.permute.xlu0 %4981
    %4983 = vrot.lane.b32.xlu0 %v4677, 96
    %v4984 = vpop.permute.xlu0 %4983
    %4985 = vrot.lane.b32.xlu0 %v4684, 96
    %v4986 = vpop.permute.xlu0 %4985
    %4987 = vrot.lane.b32.xlu0 %v4956, 96
    %v4988 = vpop.permute.xlu0 %4987
    %vm5005 = vcmask 1044224
    %vm5006 = vmand %vm5005, %vm306
    %v5007 = vld [vmem:[#allocation3] sm:$0xf]
    %v5008 = vsel %vm5006, %v4958, %v5007
    %5009 = vst [vmem:[#allocation3] sm:$0xf] %v5008
    %v5010 = vld [vmem:[#allocation3 + $0xc] sm:$0xf]
    %v5011 = vsel %vm5006, %v4960, %v5010
    %5012 = vst [vmem:[#allocation3 + $0xc] sm:$0xf] %v5011
    %v5013 = vld [vmem:[#allocation3 + $0x18] sm:$0xf]
    %v5014 = vsel %vm5006, %v4962, %v5013
    %5015 = vst [vmem:[#allocation3 + $0x18] sm:$0xf] %v5014
    %v5016 = vld [vmem:[#allocation3 + $0x24] sm:$0xf]
    %v5017 = vsel %vm5006, %v4964, %v5016
    %5018 = vst [vmem:[#allocation3 + $0x24] sm:$0xf] %v5017
    %v5019 = vld [vmem:[#allocation3 + $0x30] sm:$0xf]
    %v5020 = vsel %vm5006, %v4966, %v5019
    %5021 = vst [vmem:[#allocation3 + $0x30] sm:$0xf] %v5020
    %v5022 = vld [vmem:[#allocation3 + $0x3c] sm:$0xf]
    %v5023 = vsel %vm5006, %v4968, %v5022
    %5024 = vst [vmem:[#allocation3 + $0x3c] sm:$0xf] %v5023
    %v5025 = vld [vmem:[#allocation3 + $0x48] sm:$0xf]
    %v5026 = vsel %vm5006, %v4970, %v5025
    %5027 = vst [vmem:[#allocation3 + $0x48] sm:$0xf] %v5026
    %v5028 = vld [vmem:[#allocation3 + $0x54] sm:$0xf]
    %v5029 = vsel %vm5006, %v4972, %v5028
    %5030 = vst [vmem:[#allocation3 + $0x54] sm:$0xf] %v5029
    %v5031 = vld [vmem:[#allocation3 + $0x60] sm:$0xf]
    %v5032 = vsel %vm5006, %v4974, %v5031
    %5033 = vst [vmem:[#allocation3 + $0x60] sm:$0xf] %v5032
    %v5034 = vld [vmem:[#allocation3 + $0x6c] sm:$0xf]
    %v5035 = vsel %vm5006, %v4976, %v5034
    %5036 = vst [vmem:[#allocation3 + $0x6c] sm:$0xf] %v5035
    %v5037 = vld [vmem:[#allocation3 + $0x78] sm:$0xf]
    %v5038 = vsel %vm5006, %v4978, %v5037
    %5039 = vst [vmem:[#allocation3 + $0x78] sm:$0xf] %v5038
    %v5040 = vld [vmem:[#allocation3 + $0x84] sm:$0xf]
    %v5041 = vsel %vm5006, %v4980, %v5040
    %5042 = vst [vmem:[#allocation3 + $0x84] sm:$0xf] %v5041
    %v5043 = vld [vmem:[#allocation3 + $0x90] sm:$0xf]
    %v5044 = vsel %vm5006, %v4982, %v5043
    %5045 = vst [vmem:[#allocation3 + $0x90] sm:$0xf] %v5044
    %v5046 = vld [vmem:[#allocation3 + $0x9c] sm:$0xf]
    %v5047 = vsel %vm5006, %v4984, %v5046
    %5048 = vst [vmem:[#allocation3 + $0x9c] sm:$0xf] %v5047
    %v5049 = vld [vmem:[#allocation3 + $0xa8] sm:$0xf]
    %v5050 = vsel %vm5006, %v4986, %v5049
    %5051 = vst [vmem:[#allocation3 + $0xa8] sm:$0xf] %v5050
    %v5052 = vld [vmem:[#allocation3 + $0xb4] sm:$0xf]
    %v5053 = vsel %vm5006, %v4988, %v5052
    %5054 = vst [vmem:[#allocation3 + $0xb4] sm:$0xf] %v5053
    %5055 = vst.msk [vmem:[#allocation3 + $0x4] sm:$0xf] %vm4555, %v4522
    %5056 = vst.msk [vmem:[#allocation3 + $0x10] sm:$0xf] %vm4555, %v4523
    %5057 = vst.msk [vmem:[#allocation3 + $0x1c] sm:$0xf] %vm4555, %v4524
    %5058 = vst.msk [vmem:[#allocation3 + $0x28] sm:$0xf] %vm4555, %v4525
    %5059 = vst.msk [vmem:[#allocation3 + $0x34] sm:$0xf] %vm4555, %v4526
    %5060 = vst.msk [vmem:[#allocation3 + $0x40] sm:$0xf] %vm4555, %v4527
    %5061 = vst.msk [vmem:[#allocation3 + $0x4c] sm:$0xf] %vm4555, %v4528
    %5062 = vst.msk [vmem:[#allocation3 + $0x58] sm:$0xf] %vm4555, %v4529
    %5063 = vst.msk [vmem:[#allocation3 + $0x64] sm:$0xf] %vm4555, %v4530
    %5064 = vst.msk [vmem:[#allocation3 + $0x70] sm:$0xf] %vm4555, %v4531
    %5065 = vst.msk [vmem:[#allocation3 + $0x7c] sm:$0xf] %vm4555, %v4532
    %5066 = vst.msk [vmem:[#allocation3 + $0x88] sm:$0xf] %vm4555, %v4533
    %5067 = vst.msk [vmem:[#allocation3 + $0x94] sm:$0xf] %vm4555, %v4534
    %5068 = vst.msk [vmem:[#allocation3 + $0xa0] sm:$0xf] %vm4555, %v4535
    %5069 = vst.msk [vmem:[#allocation3 + $0xac] sm:$0xf] %vm4555, %v4536
    %5070 = vst.msk [vmem:[#allocation3 + $0xb8] sm:$0xf] %vm4555, %v4537
    %v5071 = vrot.slane %v4944, 4
    %v5072 = vrot.slane %v4947, 5
    %v5073 = vor.u32 %v5071, %v5072
    %v5074 = vrot.slane %v5073, 4
    %v5075 = vrot.slane %v4951, 4
    %v5076 = vrot.slane %v4954, 5
    %v5077 = vor.u32 %v5075, %v5076
    %v5078 = vrot.slane %v5077, 4
    %5079 = vrot.lane.b32.xlu0 %v4804, 32
    %v5080 = vpop.permute.xlu0 %5079
    %5081 = vrot.lane.b32.xlu0 %v4808, 32
    %v5082 = vpop.permute.xlu0 %5081
    %5083 = vrot.lane.b32.xlu0 %v4812, 32
    %v5084 = vpop.permute.xlu0 %5083
    %5085 = vrot.lane.b32.xlu0 %v4816, 32
    %v5086 = vpop.permute.xlu0 %5085
    %5087 = vrot.lane.b32.xlu0 %v4820, 32
    %v5088 = vpop.permute.xlu0 %5087
    %5089 = vrot.lane.b32.xlu0 %v4824, 32
    %v5090 = vpop.permute.xlu0 %5089
    %5091 = vrot.lane.b32.xlu0 %v4828, 32
    %v5092 = vpop.permute.xlu0 %5091
    %5093 = vrot.lane.b32.xlu0 %v5074, 32
    %v5094 = vpop.permute.xlu0 %5093
    %5095 = vrot.lane.b32.xlu0 %v4832, 32
    %v5096 = vpop.permute.xlu0 %5095
    %5097 = vrot.lane.b32.xlu0 %v4836, 32
    %v5098 = vpop.permute.xlu0 %5097
    %5099 = vrot.lane.b32.xlu0 %v4840, 32
    %v5100 = vpop.permute.xlu0 %5099
    %5101 = vrot.lane.b32.xlu0 %v4844, 32
    %v5102 = vpop.permute.xlu0 %5101
    %5103 = vrot.lane.b32.xlu0 %v4848, 32
    %v5104 = vpop.permute.xlu0 %5103
    %5105 = vrot.lane.b32.xlu0 %v4852, 32
    %v5106 = vpop.permute.xlu0 %5105
    %5107 = vrot.lane.b32.xlu0 %v4856, 32
    %v5108 = vpop.permute.xlu0 %5107
    %5109 = vrot.lane.b32.xlu0 %v5078, 32
    %v5110 = vpop.permute.xlu0 %5109
    %vm5127 = vcmask 519424
    %vm5128 = vmand %vm5127, %vm536
    %v5129 = vld [vmem:[#allocation3 + $0x4] sm:$0xf]
    %v5130 = vsel %vm5128, %v5080, %v5129
    %5131 = vst [vmem:[#allocation3 + $0x4] sm:$0xf] %v5130
    %v5132 = vld [vmem:[#allocation3 + $0x10] sm:$0xf]
    %v5133 = vsel %vm5128, %v5082, %v5132
    %5134 = vst [vmem:[#allocation3 + $0x10] sm:$0xf] %v5133
    %v5135 = vld [vmem:[#allocation3 + $0x1c] sm:$0xf]
    %v5136 = vsel %vm5128, %v5084, %v5135
    %5137 = vst [vmem:[#allocation3 + $0x1c] sm:$0xf] %v5136
    %v5138 = vld [vmem:[#allocation3 + $0x28] sm:$0xf]
    %v5139 = vsel %vm5128, %v5086, %v5138
    %5140 = vst [vmem:[#allocation3 + $0x28] sm:$0xf] %v5139
    %v5141 = vld [vmem:[#allocation3 + $0x34] sm:$0xf]
    %v5142 = vsel %vm5128, %v5088, %v5141
    %5143 = vst [vmem:[#allocation3 + $0x34] sm:$0xf] %v5142
    %v5144 = vld [vmem:[#allocation3 + $0x40] sm:$0xf]
    %v5145 = vsel %vm5128, %v5090, %v5144
    %5146 = vst [vmem:[#allocation3 + $0x40] sm:$0xf] %v5145
    %v5147 = vld [vmem:[#allocation3 + $0x4c] sm:$0xf]
    %v5148 = vsel %vm5128, %v5092, %v5147
    %5149 = vst [vmem:[#allocation3 + $0x4c] sm:$0xf] %v5148
    %v5150 = vld [vmem:[#allocation3 + $0x58] sm:$0xf]
    %v5151 = vsel %vm5128, %v5094, %v5150
    %5152 = vst [vmem:[#allocation3 + $0x58] sm:$0xf] %v5151
    %v5153 = vld [vmem:[#allocation3 + $0x64] sm:$0xf]
    %v5154 = vsel %vm5128, %v5096, %v5153
    %5155 = vst [vmem:[#allocation3 + $0x64] sm:$0xf] %v5154
    %v5156 = vld [vmem:[#allocation3 + $0x70] sm:$0xf]
    %v5157 = vsel %vm5128, %v5098, %v5156
    %5158 = vst [vmem:[#allocation3 + $0x70] sm:$0xf] %v5157
    %v5159 = vld [vmem:[#allocation3 + $0x7c] sm:$0xf]
    %v5160 = vsel %vm5128, %v5100, %v5159
    %5161 = vst [vmem:[#allocation3 + $0x7c] sm:$0xf] %v5160
    %v5162 = vld [vmem:[#allocation3 + $0x88] sm:$0xf]
    %v5163 = vsel %vm5128, %v5102, %v5162
    %5164 = vst [vmem:[#allocation3 + $0x88] sm:$0xf] %v5163
    %v5165 = vld [vmem:[#allocation3 + $0x94] sm:$0xf]
    %v5166 = vsel %vm5128, %v5104, %v5165
    %5167 = vst [vmem:[#allocation3 + $0x94] sm:$0xf] %v5166
    %v5168 = vld [vmem:[#allocation3 + $0xa0] sm:$0xf]
    %v5169 = vsel %vm5128, %v5106, %v5168
    %5170 = vst [vmem:[#allocation3 + $0xa0] sm:$0xf] %v5169
    %v5171 = vld [vmem:[#allocation3 + $0xac] sm:$0xf]
    %v5172 = vsel %vm5128, %v5108, %v5171
    %5173 = vst [vmem:[#allocation3 + $0xac] sm:$0xf] %v5172
    %v5174 = vld [vmem:[#allocation3 + $0xb8] sm:$0xf]
    %v5175 = vsel %vm5128, %v5110, %v5174
    %5176 = vst [vmem:[#allocation3 + $0xb8] sm:$0xf] %v5175
    %5177 = vrot.lane.b32.xlu0 %v4600, 64
    %v5178 = vpop.permute.xlu0 %5177
    %5179 = vrot.lane.b32.xlu0 %v4607, 64
    %v5180 = vpop.permute.xlu0 %5179
    %5181 = vrot.lane.b32.xlu0 %v4614, 64
    %v5182 = vpop.permute.xlu0 %5181
    %5183 = vrot.lane.b32.xlu0 %v4621, 64
    %v5184 = vpop.permute.xlu0 %5183
    %5185 = vrot.lane.b32.xlu0 %v4628, 64
    %v5186 = vpop.permute.xlu0 %5185
    %5187 = vrot.lane.b32.xlu0 %v4635, 64
    %v5188 = vpop.permute.xlu0 %5187
    %5189 = vrot.lane.b32.xlu0 %v4949, 64
    %v5190 = vpop.permute.xlu0 %5189
    %5191 = vrot.lane.b32.xlu0 %v4649, 64
    %v5192 = vpop.permute.xlu0 %5191
    %5193 = vrot.lane.b32.xlu0 %v4656, 64
    %v5194 = vpop.permute.xlu0 %5193
    %5195 = vrot.lane.b32.xlu0 %v4663, 64
    %v5196 = vpop.permute.xlu0 %5195
    %5197 = vrot.lane.b32.xlu0 %v4670, 64
    %v5198 = vpop.permute.xlu0 %5197
    %5199 = vrot.lane.b32.xlu0 %v4677, 64
    %v5200 = vpop.permute.xlu0 %5199
    %5201 = vrot.lane.b32.xlu0 %v4684, 64
    %v5202 = vpop.permute.xlu0 %5201
    %5203 = vrot.lane.b32.xlu0 %v4956, 64
    %v5204 = vpop.permute.xlu0 %5203
    %vm5219 = vmand %vm4899, %vm306
    %v5220 = vld [vmem:[#allocation3 + $0x4] sm:$0xf]
    %v5221 = vsel %vm5219, %v5178, %v5220
    %5222 = vst [vmem:[#allocation3 + $0x4] sm:$0xf] %v5221
    %v5223 = vld [vmem:[#allocation3 + $0x10] sm:$0xf]
    %v5224 = vsel %vm5219, %v5180, %v5223
    %5225 = vst [vmem:[#allocation3 + $0x10] sm:$0xf] %v5224
    %v5226 = vld [vmem:[#allocation3 + $0x1c] sm:$0xf]
    %v5227 = vsel %vm5219, %v5182, %v5226
    %5228 = vst [vmem:[#allocation3 + $0x1c] sm:$0xf] %v5227
    %v5229 = vld [vmem:[#allocation3 + $0x28] sm:$0xf]
    %v5230 = vsel %vm5219, %v5184, %v5229
    %5231 = vst [vmem:[#allocation3 + $0x28] sm:$0xf] %v5230
    %v5232 = vld [vmem:[#allocation3 + $0x34] sm:$0xf]
    %v5233 = vsel %vm5219, %v5186, %v5232
    %5234 = vst [vmem:[#allocation3 + $0x34] sm:$0xf] %v5233
    %v5235 = vld [vmem:[#allocation3 + $0x40] sm:$0xf]
    %v5236 = vsel %vm5219, %v5188, %v5235
    %5237 = vst [vmem:[#allocation3 + $0x40] sm:$0xf] %v5236
    %v5238 = vld [vmem:[#allocation3 + $0x4c] sm:$0xf]
    %v5239 = vsel %vm5219, %v5190, %v5238
    %5240 = vst [vmem:[#allocation3 + $0x4c] sm:$0xf] %v5239
    %v5241 = vld [vmem:[#allocation3 + $0x64] sm:$0xf]
    %v5242 = vsel %vm5219, %v5192, %v5241
    %5243 = vst [vmem:[#allocation3 + $0x64] sm:$0xf] %v5242
    %v5244 = vld [vmem:[#allocation3 + $0x70] sm:$0xf]
    %v5245 = vsel %vm5219, %v5194, %v5244
    %5246 = vst [vmem:[#allocation3 + $0x70] sm:$0xf] %v5245
    %v5247 = vld [vmem:[#allocation3 + $0x7c] sm:$0xf]
    %v5248 = vsel %vm5219, %v5196, %v5247
    %5249 = vst [vmem:[#allocation3 + $0x7c] sm:$0xf] %v5248
    %v5250 = vld [vmem:[#allocation3 + $0x88] sm:$0xf]
    %v5251 = vsel %vm5219, %v5198, %v5250
    %5252 = vst [vmem:[#allocation3 + $0x88] sm:$0xf] %v5251
    %v5253 = vld [vmem:[#allocation3 + $0x94] sm:$0xf]
    %v5254 = vsel %vm5219, %v5200, %v5253
    %5255 = vst [vmem:[#allocation3 + $0x94] sm:$0xf] %v5254
    %v5256 = vld [vmem:[#allocation3 + $0xa0] sm:$0xf]
    %v5257 = vsel %vm5219, %v5202, %v5256
    %5258 = vst [vmem:[#allocation3 + $0xa0] sm:$0xf] %v5257
    %v5259 = vld [vmem:[#allocation3 + $0xac] sm:$0xf]
    %v5260 = vsel %vm5219, %v5204, %v5259
    %5261 = vst [vmem:[#allocation3 + $0xac] sm:$0xf] %v5260
    %5262 = vrot.lane.b32.xlu0 %v4523, 96
    %v5263 = vpop.permute.xlu0 %5262
    %5264 = vrot.lane.b32.xlu0 %v4524, 96
    %v5265 = vpop.permute.xlu0 %5264
    %5266 = vrot.lane.b32.xlu0 %v4525, 96
    %v5267 = vpop.permute.xlu0 %5266
    %5268 = vrot.lane.b32.xlu0 %v4526, 96
    %v5269 = vpop.permute.xlu0 %5268
    %5270 = vrot.lane.b32.xlu0 %v4527, 96
    %v5271 = vpop.permute.xlu0 %5270
    %5272 = vrot.lane.b32.xlu0 %v4528, 96
    %v5273 = vpop.permute.xlu0 %5272
    %5274 = vrot.lane.b32.xlu0 %v4529, 96
    %v5275 = vpop.permute.xlu0 %5274
    %5276 = vrot.lane.b32.xlu0 %v4531, 96
    %v5277 = vpop.permute.xlu0 %5276
    %5278 = vrot.lane.b32.xlu0 %v4532, 96
    %v5279 = vpop.permute.xlu0 %5278
    %5280 = vrot.lane.b32.xlu0 %v4533, 96
    %v5281 = vpop.permute.xlu0 %5280
    %5282 = vrot.lane.b32.xlu0 %v4534, 96
    %v5283 = vpop.permute.xlu0 %5282
    %5284 = vrot.lane.b32.xlu0 %v4535, 96
    %v5285 = vpop.permute.xlu0 %5284
    %5286 = vrot.lane.b32.xlu0 %v4536, 96
    %v5287 = vpop.permute.xlu0 %5286
    %5288 = vrot.lane.b32.xlu0 %v4537, 96
    %v5289 = vpop.permute.xlu0 %5288
    %vm5304 = vcmask 1044224
    %5305 = vst.msk [vmem:[#allocation3 + $0x4] sm:$0xf] %vm5304, %v5263
    %5306 = vst.msk [vmem:[#allocation3 + $0x10] sm:$0xf] %vm5304, %v5265
    %5307 = vst.msk [vmem:[#allocation3 + $0x1c] sm:$0xf] %vm5304, %v5267
    %5308 = vst.msk [vmem:[#allocation3 + $0x28] sm:$0xf] %vm5304, %v5269
    %5309 = vst.msk [vmem:[#allocation3 + $0x34] sm:$0xf] %vm5304, %v5271
    %5310 = vst.msk [vmem:[#allocation3 + $0x40] sm:$0xf] %vm5304, %v5273
    %5311 = vst.msk [vmem:[#allocation3 + $0x4c] sm:$0xf] %vm5304, %v5275
    %5312 = vst.msk [vmem:[#allocation3 + $0x64] sm:$0xf] %vm5304, %v5277
    %5313 = vst.msk [vmem:[#allocation3 + $0x70] sm:$0xf] %vm5304, %v5279
    %5314 = vst.msk [vmem:[#allocation3 + $0x7c] sm:$0xf] %vm5304, %v5281
    %5315 = vst.msk [vmem:[#allocation3 + $0x88] sm:$0xf] %vm5304, %v5283
    %5316 = vst.msk [vmem:[#allocation3 + $0x94] sm:$0xf] %vm5304, %v5285
    %5317 = vst.msk [vmem:[#allocation3 + $0xa0] sm:$0xf] %vm5304, %v5287
    %5318 = vst.msk [vmem:[#allocation3 + $0xac] sm:$0xf] %vm5304, %v5289
    %vm5333 = vmand %vm4700, %vm536
    %v5334 = vld [vmem:[#allocation3 + $0x8] sm:$0xf]
    %v5335 = vsel %vm5333, %v4808, %v5334
    %5336 = vst [vmem:[#allocation3 + $0x8] sm:$0xf] %v5335
    %v5337 = vld [vmem:[#allocation3 + $0x14] sm:$0xf]
    %v5338 = vsel %vm5333, %v4812, %v5337
    %5339 = vst [vmem:[#allocation3 + $0x14] sm:$0xf] %v5338
    %v5340 = vld [vmem:[#allocation3 + $0x20] sm:$0xf]
    %v5341 = vsel %vm5333, %v4816, %v5340
    %5342 = vst [vmem:[#allocation3 + $0x20] sm:$0xf] %v5341
    %v5343 = vld [vmem:[#allocation3 + $0x2c] sm:$0xf]
    %v5344 = vsel %vm5333, %v4820, %v5343
    %5345 = vst [vmem:[#allocation3 + $0x2c] sm:$0xf] %v5344
    %v5346 = vld [vmem:[#allocation3 + $0x38] sm:$0xf]
    %v5347 = vsel %vm5333, %v4824, %v5346
    %5348 = vst [vmem:[#allocation3 + $0x38] sm:$0xf] %v5347
    %v5349 = vld [vmem:[#allocation3 + $0x44] sm:$0xf]
    %v5350 = vsel %vm5333, %v4828, %v5349
    %5351 = vst [vmem:[#allocation3 + $0x44] sm:$0xf] %v5350
    %v5352 = vld [vmem:[#allocation3 + $0x50] sm:$0xf]
    %v5353 = vsel %vm5333, %v5074, %v5352
    %5354 = vst [vmem:[#allocation3 + $0x50] sm:$0xf] %v5353
    %v5355 = vld [vmem:[#allocation3 + $0x68] sm:$0xf]
    %v5356 = vsel %vm5333, %v4836, %v5355
    %5357 = vst [vmem:[#allocation3 + $0x68] sm:$0xf] %v5356
    %v5358 = vld [vmem:[#allocation3 + $0x74] sm:$0xf]
    %v5359 = vsel %vm5333, %v4840, %v5358
    %5360 = vst [vmem:[#allocation3 + $0x74] sm:$0xf] %v5359
    %v5361 = vld [vmem:[#allocation3 + $0x80] sm:$0xf]
    %v5362 = vsel %vm5333, %v4844, %v5361
    %5363 = vst [vmem:[#allocation3 + $0x80] sm:$0xf] %v5362
    %v5364 = vld [vmem:[#allocation3 + $0x8c] sm:$0xf]
    %v5365 = vsel %vm5333, %v4848, %v5364
    %5366 = vst [vmem:[#allocation3 + $0x8c] sm:$0xf] %v5365
    %v5367 = vld [vmem:[#allocation3 + $0x98] sm:$0xf]
    %v5368 = vsel %vm5333, %v4852, %v5367
    %5369 = vst [vmem:[#allocation3 + $0x98] sm:$0xf] %v5368
    %v5370 = vld [vmem:[#allocation3 + $0xa4] sm:$0xf]
    %v5371 = vsel %vm5333, %v4856, %v5370
    %5372 = vst [vmem:[#allocation3 + $0xa4] sm:$0xf] %v5371
    %v5373 = vld [vmem:[#allocation3 + $0xb0] sm:$0xf]
    %v5374 = vsel %vm5333, %v5078, %v5373
    %5375 = vst [vmem:[#allocation3 + $0xb0] sm:$0xf] %v5374
    %v5376 = vld [vmem:[%s6] sm:$0x1]
    %vm5377 = vcmp.gt.f32.partialorder %v5376, 0.5
    %v5378 = vsel %vm5377, 1, 0
    %v5379 = vcvt.s32.f32 %v5378
    %vm5380 = vcmask 1040384
    %v5381 = vsel %vm5380, %v5379, 0.0
    %5382 = vadd.xlane.f32.xlu0 %v5381
    %v5383 = vpop.xlane.xlu0 %5382
    %v5384 = vpack.c.bf16 %v5379, %v5379
    %v5385 = vld [vmem:[#allocation3] sm:$0xff]
    %v5386 = vld [vmem:[#allocation3 + $0x8] sm:$0xf]
    %v5387 = vld [vmem:[#allocation3 + $0xc] sm:$0xff]
    %v5388 = vld [vmem:[#allocation3 + $0x14] sm:$0xf]
    %v5389 = vld [vmem:[#allocation3 + $0x18] sm:$0xff]
    %v5390 = vld [vmem:[#allocation3 + $0x20] sm:$0xf]
    %v5391 = vld [vmem:[#allocation3 + $0x24] sm:$0xff]
    %v5392 = vld [vmem:[#allocation3 + $0x2c] sm:$0xf]
    %v5393 = vld [vmem:[#allocation3 + $0x30] sm:$0xff]
    %v5394 = vld [vmem:[#allocation3 + $0x38] sm:$0xf]
    %v5395 = vld [vmem:[#allocation3 + $0x3c] sm:$0xff]
    %v5396 = vld [vmem:[#allocation3 + $0x44] sm:$0xf]
    %v5397 = vld [vmem:[#allocation3 + $0x48] sm:$0xff]
    %v5398 = vld [vmem:[#allocation3 + $0x50] sm:$0xf]
    %v5399 = vld [vmem:[#allocation3 + $0x54] sm:$0xff]
    %v5400 = vld [vmem:[#allocation3 + $0x5c] sm:$0xf]
    %v5401 = vld [vmem:[#allocation3 + $0x60] sm:$0xff]
    %v5402 = vld [vmem:[#allocation3 + $0x68] sm:$0xf]
    %v5403 = vld [vmem:[#allocation3 + $0x6c] sm:$0xff]
    %v5404 = vld [vmem:[#allocation3 + $0x74] sm:$0xf]
    %v5405 = vld [vmem:[#allocation3 + $0x78] sm:$0xff]
    %v5406 = vld [vmem:[#allocation3 + $0x80] sm:$0xf]
    %v5407 = vld [vmem:[#allocation3 + $0x84] sm:$0xff]
    %v5408 = vld [vmem:[#allocation3 + $0x8c] sm:$0xf]
    %v5409 = vld [vmem:[#allocation3 + $0x90] sm:$0xff]
    %v5410 = vld [vmem:[#allocation3 + $0x98] sm:$0xf]
    %v5411 = vld [vmem:[#allocation3 + $0x9c] sm:$0xff]
    %v5412 = vld [vmem:[#allocation3 + $0xa4] sm:$0xf]
    %v5413 = vld [vmem:[#allocation3 + $0xa8] sm:$0xff]
    %v5414 = vld [vmem:[#allocation3 + $0xb0] sm:$0xf]
    %v5415 = vld [vmem:[#allocation3 + $0xb4] sm:$0xff]
    %v5416 = vld [vmem:[#allocation3 + $0xbc] sm:$0xf]
    %v5449 = vunpack.c.l.b16 %v5385
    %v5450 = vunpack.c.h.b16 %v5385
    %v5451 = vunpack.c.l.b16 %v5386
    %v5452 = vunpack.c.l.b16 %v5387
    %v5453 = vunpack.c.h.b16 %v5387
    %v5454 = vunpack.c.l.b16 %v5388
    %v5455 = vunpack.c.l.b16 %v5389
    %v5456 = vunpack.c.h.b16 %v5389
    %v5457 = vunpack.c.l.b16 %v5390
    %v5458 = vunpack.c.l.b16 %v5391
    %v5459 = vunpack.c.h.b16 %v5391
    %v5460 = vunpack.c.l.b16 %v5392
    %v5461 = vunpack.c.l.b16 %v5393
    %v5462 = vunpack.c.h.b16 %v5393
    %v5463 = vunpack.c.l.b16 %v5394
    %v5464 = vunpack.c.l.b16 %v5395
    %v5465 = vunpack.c.h.b16 %v5395
    %v5466 = vunpack.c.l.b16 %v5396
    %v5467 = vunpack.c.l.b16 %v5397
    %v5468 = vunpack.c.h.b16 %v5397
    %v5469 = vunpack.c.l.b16 %v5398
    %v5470 = vunpack.c.l.b16 %v5399
    %v5471 = vunpack.c.h.b16 %v5399
    %v5472 = vunpack.c.l.b16 %v5400
    %v5473 = vunpack.c.l.b16 %v5401
    %v5474 = vunpack.c.h.b16 %v5401
    %v5475 = vunpack.c.l.b16 %v5402
    %v5476 = vunpack.c.l.b16 %v5403
    %v5477 = vunpack.c.h.b16 %v5403
    %v5478 = vunpack.c.l.b16 %v5404
    %v5479 = vunpack.c.l.b16 %v5405
    %v5480 = vunpack.c.h.b16 %v5405
    %v5481 = vunpack.c.l.b16 %v5406
    %v5482 = vunpack.c.l.b16 %v5407
    %v5483 = vunpack.c.h.b16 %v5407
    %v5484 = vunpack.c.l.b16 %v5408
    %v5485 = vunpack.c.l.b16 %v5409
    %v5486 = vunpack.c.h.b16 %v5409
    %v5487 = vunpack.c.l.b16 %v5410
    %v5488 = vunpack.c.l.b16 %v5411
    %v5489 = vunpack.c.h.b16 %v5411
    %v5490 = vunpack.c.l.b16 %v5412
    %v5491 = vunpack.c.l.b16 %v5413
    %v5492 = vunpack.c.h.b16 %v5413
    %v5493 = vunpack.c.l.b16 %v5414
    %v5494 = vunpack.c.l.b16 %v5415
    %v5495 = vunpack.c.h.b16 %v5415
    %v5496 = vunpack.c.l.b16 %v5416
    %v5497 = vpack.c.b16 %v5452, %v5449
    %v5498 = vpack.c.b16 %v5453, %v5450
    %v5499 = vpack.c.b16 %v5454, %v5451
    %v5500 = vpack.c.b16 %v5458, %v5455
    %v5501 = vpack.c.b16 %v5459, %v5456
    %v5502 = vpack.c.b16 %v5460, %v5457
    %v5503 = vpack.c.b16 %v5464, %v5461
    %v5504 = vpack.c.b16 %v5465, %v5462
    %v5505 = vpack.c.b16 %v5466, %v5463
    %v5506 = vpack.c.b16 %v5470, %v5467
    %v5507 = vpack.c.b16 %v5471, %v5468
    %v5508 = vpack.c.b16 %v5472, %v5469
    %v5509 = vpack.c.b16 %v5476, %v5473
    %v5510 = vpack.c.b16 %v5477, %v5474
    %v5511 = vpack.c.b16 %v5478, %v5475
    %v5512 = vpack.c.b16 %v5482, %v5479
    %v5513 = vpack.c.b16 %v5483, %v5480
    %v5514 = vpack.c.b16 %v5484, %v5481
    %v5515 = vpack.c.b16 %v5488, %v5485
    %v5516 = vpack.c.b16 %v5489, %v5486
    %v5517 = vpack.c.b16 %v5490, %v5487
    %v5518 = vpack.c.b16 %v5494, %v5491
    %v5519 = vpack.c.b16 %v5495, %v5492
    %v5520 = vpack.c.b16 %v5496, %v5493
    %5545 = vmatprep.subr.bf16.mxu0 %v5498
    %5546 = vmatpush1.bf16.msra.mxu0 %v5497
    %5547 = vmatprep.subr.bf16.mxu0 %v5501
    %5548 = vmatpush1.bf16.msra.mxu0 %v5500
    %5549 = vmatprep.subr.bf16.mxu0 %v5504
    %5550 = vmatpush1.bf16.msra.mxu0 %v5503
    %5551 = vmatprep.subr.bf16.mxu0 %v5507
    %5552 = vmatpush1.bf16.msra.mxu0 %v5506
    %5553 = vmatprep.subr.bf16.mxu0 %v5510
    %5554 = vmatpush1.bf16.msra.mxu0 %v5509
    %5555 = vmatprep.subr.bf16.mxu0 %v5513
    %5556 = vmatpush1.bf16.msra.mxu0 %v5512
    %5557 = vmatprep.subr.bf16.mxu0 %v5516
    %5558 = vmatpush1.bf16.msra.mxu0 %v5515
    %5559 = vmatprep.subr.bf16.mxu0 %v5519
    %5560 = vmatpush1.bf16.msra.mxu0 %v5518
    %5561 = vmatprep.subr.bf16.mxu0 0
    %5562 = vmatpush1.bf16.msra.mxu0 0
    %5563 = vmatprep.subr.bf16.mxu0 0
    %5564 = vmatpush1.bf16.msra.mxu0 0
    %5565 = vmatprep.subr.bf16.mxu0 0
    %5566 = vmatpush1.bf16.msra.mxu0 0
    %5567 = vmatprep.subr.bf16.mxu0 0
    %5568 = vmatpush1.bf16.msra.mxu0 0
    %5569 = vmatprep.subr.bf16.mxu0 0
    %5570 = vmatpush1.bf16.msra.mxu0 0
    %5571 = vmatprep.subr.bf16.mxu0 0
    %5572 = vmatpush1.bf16.msra.mxu0 0
    %5573 = vmatprep.subr.bf16.mxu0 0
    %5574 = vmatpush1.bf16.msra.mxu0 0
    %5575 = vmatprep.subr.bf16.mxu0 0
    %5576 = vmatpush1.bf16.msra.mxu0 0
    %5577 = vmatprep.mubr.bf16.mxu0 0
    %5578 = vmatmul.mubr.bf16.gmra.mrb[0].mxu0 %v5384
    %v5579 = vpop.f32.mrb[0].mxu0
    %v5580 = vadd.f32 0.0, %v5579
    %v5581 = vpop.f32.mrb[0].mxu0
    %v5582 = vadd.f32 0.0, %v5581
    %v5583 = vpop.f32.mrb[0].mxu0
    %v5584 = vpop.f32.mrb[0].mxu0
    %5585 = vdwg.mxu0
    %5586 = vmatprep.subr.bf16.mxu0 0
    %5587 = vmatpush1.bf16.msra.mxu0 %v5499
    %5588 = vmatprep.subr.bf16.mxu0 0
    %5589 = vmatpush1.bf16.msra.mxu0 %v5502
    %5590 = vmatprep.subr.bf16.mxu0 0
    %5591 = vmatpush1.bf16.msra.mxu0 %v5505
    %5592 = vmatprep.subr.bf16.mxu0 0
    %5593 = vmatpush1.bf16.msra.mxu0 %v5508
    %5594 = vmatprep.subr.bf16.mxu0 0
    %5595 = vmatpush1.bf16.msra.mxu0 %v5511
    %5596 = vmatprep.subr.bf16.mxu0 0
    %5597 = vmatpush1.bf16.msra.mxu0 %v5514
    %5598 = vmatprep.subr.bf16.mxu0 0
    %5599 = vmatpush1.bf16.msra.mxu0 %v5517
    %5600 = vmatprep.subr.bf16.mxu0 0
    %5601 = vmatpush1.bf16.msra.mxu0 %v5520
    %5602 = vmatprep.subr.bf16.mxu0 0
    %5603 = vmatpush1.bf16.msra.mxu0 0
    %5604 = vmatprep.subr.bf16.mxu0 0
    %5605 = vmatpush1.bf16.msra.mxu0 0
    %5606 = vmatprep.subr.bf16.mxu0 0
    %5607 = vmatpush1.bf16.msra.mxu0 0
    %5608 = vmatprep.subr.bf16.mxu0 0
    %5609 = vmatpush1.bf16.msra.mxu0 0
    %5610 = vmatprep.subr.bf16.mxu0 0
    %5611 = vmatpush1.bf16.msra.mxu0 0
    %5612 = vmatprep.subr.bf16.mxu0 0
    %5613 = vmatpush1.bf16.msra.mxu0 0
    %5614 = vmatprep.subr.bf16.mxu0 0
    %5615 = vmatpush1.bf16.msra.mxu0 0
    %5616 = vmatprep.subr.bf16.mxu0 0
    %5617 = vmatpush1.bf16.msra.mxu0 0
    %5618 = vmatprep.mubr.bf16.mxu0 0
    %5619 = vmatmul.mubr.bf16.gmra.mrb[0].mxu0 %v5384
    %v5620 = vpop.f32.mrb[0].mxu0
    %v5621 = vadd.f32 0.0, %v5620
    %v5622 = vpop.f32.mrb[0].mxu0
    %v5623 = vpop.f32.mrb[0].mxu0
    %v5624 = vpop.f32.mrb[0].mxu0
    %5625 = vdwg.mxu0
    %v5626 = vld [vmem:[%s4] sm:$0xff]
    %v5627 = vld [vmem:[%s4 + $0x8] sm:$0xff]
    %v5628 = vld [vmem:[%s4 + $0x10] sm:$0xff]
    %v5629 = vld [vmem:[%s4 + $0x18] sm:$0xff]
    %v5630 = vld [vmem:[%s4 + $0x20] sm:$0xff]
    %v5631 = vld [vmem:[%s4 + $0x28] sm:$0xff]
    %v5632 = vld [vmem:[%s4 + $0x30] sm:$0xff]
    %v5633 = vld [vmem:[%s4 + $0x38] sm:$0xff]
    %v5634 = vld [vmem:[%s4 + $0x40] sm:$0xff]
    %v5635 = vld [vmem:[%s4 + $0x48] sm:$0xff]
    %v5636 = vld [vmem:[%s4 + $0x50] sm:$0xff]
    %v5637 = vld [vmem:[%s4 + $0x58] sm:$0xff]
    %v5638 = vld [vmem:[%s4 + $0x60] sm:$0xff]
    %v5639 = vld [vmem:[%s4 + $0x68] sm:$0xff]
    %v5640 = vld [vmem:[%s4 + $0x70] sm:$0xff]
    %v5641 = vld [vmem:[%s4 + $0x78] sm:$0xff]
    %v5642 = vld [vmem:[%s4 + $0x80] sm:$0xff]
    %v5643 = vld [vmem:[%s4 + $0x88] sm:$0xff]
    %v5644 = vld [vmem:[%s4 + $0x90] sm:$0xff]
    %v5645 = vld [vmem:[%s4 + $0x98] sm:$0xff]
    %v5646 = vld [vmem:[%s4 + $0xa0] sm:$0xff]
    %v5647 = vld [vmem:[%s4 + $0xa8] sm:$0xff]
    %v5648 = vld [vmem:[%s4 + $0xb0] sm:$0xff]
    %v5649 = vld [vmem:[%s4 + $0xb8] sm:$0xff]
    %v5650 = vld [vmem:[%s4 + $0xc0] sm:$0xff]
    %v5651 = vld [vmem:[%s4 + $0xc8] sm:$0xff]
    %v5652 = vld [vmem:[%s4 + $0xd0] sm:$0xff]
    %v5653 = vld [vmem:[%s4 + $0xd8] sm:$0xff]
    %v5654 = vld [vmem:[%s4 + $0xe0] sm:$0xff]
    %v5655 = vld [vmem:[%s4 + $0xe8] sm:$0xff]
    %v5656 = vld [vmem:[%s4 + $0xf0] sm:$0xff]
    %v5657 = vld [vmem:[%s4 + $0xf8] sm:$0xff]
    %v5658 = vld [vmem:[%s4 + $0x100] sm:$0xff]
    %v5659 = vld [vmem:[%s4 + $0x108] sm:$0xff]
    %v5660 = vld [vmem:[%s4 + $0x110] sm:$0xff]
    %v5661 = vld [vmem:[%s4 + $0x118] sm:$0xff]
    %v5662 = vld [vmem:[%s4 + $0x120] sm:$0xff]
    %v5663 = vld [vmem:[%s4 + $0x128] sm:$0xff]
    %v5664 = vld [vmem:[%s4 + $0x130] sm:$0xff]
    %v5665 = vld [vmem:[%s4 + $0x138] sm:$0xff]
    %v5666 = vld [vmem:[%s4 + $0x140] sm:$0xff]
    %v5667 = vld [vmem:[%s4 + $0x148] sm:$0xff]
    %v5668 = vld [vmem:[%s4 + $0x150] sm:$0xff]
    %v5669 = vld [vmem:[%s4 + $0x158] sm:$0xff]
    %v5670 = vld [vmem:[%s4 + $0x160] sm:$0xff]
    %v5671 = vld [vmem:[%s4 + $0x168] sm:$0xff]
    %v5672 = vld [vmem:[%s4 + $0x170] sm:$0xff]
    %v5673 = vld [vmem:[%s4 + $0x178] sm:$0xff]
    %v5674 = vld [vmem:[%s4 + $0x180] sm:$0xff]
    %v5675 = vld [vmem:[%s4 + $0x188] sm:$0xff]
    %v5676 = vld [vmem:[%s4 + $0x190] sm:$0xff]
    %v5677 = vld [vmem:[%s4 + $0x198] sm:$0xff]
    %v5678 = vld [vmem:[%s4 + $0x1a0] sm:$0xff]
    %v5679 = vld [vmem:[%s4 + $0x1a8] sm:$0xff]
    %v5680 = vld [vmem:[%s4 + $0x1b0] sm:$0xff]
    %v5681 = vld [vmem:[%s4 + $0x1b8] sm:$0xff]
    %v5682 = vld [vmem:[%s4 + $0x1c0] sm:$0xff]
    %v5683 = vld [vmem:[%s4 + $0x1c8] sm:$0xff]
    %v5684 = vld [vmem:[%s4 + $0x1d0] sm:$0xff]
    %v5685 = vld [vmem:[%s4 + $0x1d8] sm:$0xff]
    %v5686 = vld [vmem:[%s4 + $0x1e0] sm:$0xff]
    %v5687 = vld [vmem:[%s4 + $0x1e8] sm:$0xff]
    %v5688 = vld [vmem:[%s4 + $0x1f0] sm:$0xff]
    %v5689 = vld [vmem:[%s4 + $0x1f8] sm:$0xff]
    %v5690 = vld [vmem:[%s4 + $0x200] sm:$0xff]
    %v5691 = vld [vmem:[%s4 + $0x208] sm:$0xff]
    %v5692 = vld [vmem:[%s4 + $0x210] sm:$0xff]
    %v5693 = vld [vmem:[%s4 + $0x218] sm:$0xff]
    %v5694 = vld [vmem:[%s4 + $0x220] sm:$0xff]
    %v5695 = vld [vmem:[%s4 + $0x228] sm:$0xff]
    %v5696 = vld [vmem:[%s4 + $0x230] sm:$0xff]
    %v5697 = vld [vmem:[%s4 + $0x238] sm:$0xff]
    %v5699 = vsel %vm4313, %v5621, 0
    %5701 = vmatprep.subr.mxu0 %v5627
    %5702 = vmatpush1.msra.mxu0 %v5626
    %5703 = vmatprep.subr.mxu0 %v5629
    %5704 = vmatpush1.msra.mxu0 %v5628
    %5705 = vmatprep.subr.mxu0 %v5631
    %5706 = vmatpush1.msra.mxu0 %v5630
    %5707 = vmatprep.subr.mxu0 %v5633
    %5708 = vmatpush1.msra.mxu0 %v5632
    %5709 = vmatprep.subr.mxu0 %v5635
    %5710 = vmatpush1.msra.mxu0 %v5634
    %5711 = vmatprep.subr.mxu0 %v5637
    %5712 = vmatpush1.msra.mxu0 %v5636
    %5713 = vmatprep.subr.mxu0 %v5639
    %5714 = vmatpush1.msra.mxu0 %v5638
    %5715 = vmatprep.subr.mxu0 %v5641
    %5716 = vmatpush1.msra.mxu0 %v5640
    %5717 = vmatprep.subr.mxu0 %v5643
    %5718 = vmatpush1.msra.mxu0 %v5642
    %5719 = vmatprep.subr.mxu0 %v5645
    %5720 = vmatpush1.msra.mxu0 %v5644
    %5721 = vmatprep.subr.mxu0 %v5647
    %5722 = vmatpush1.msra.mxu0 %v5646
    %5723 = vmatprep.subr.mxu0 %v5649
    %5724 = vmatpush1.msra.mxu0 %v5648
    %5725 = vmatprep.subr.mxu0 %v5651
    %5726 = vmatpush1.msra.mxu0 %v5650
    %5727 = vmatprep.subr.mxu0 %v5653
    %5728 = vmatpush1.msra.mxu0 %v5652
    %5729 = vmatprep.subr.mxu0 %v5655
    %5730 = vmatpush1.msra.mxu0 %v5654
    %5731 = vmatprep.subr.mxu0 %v5657
    %5732 = vmatpush1.msra.mxu0 %v5656
    %5733 = vmatprep.subr.mxu0 %v5659
    %5734 = vmatpush1.msra.mxu0 %v5658
    %5735 = vmatprep.subr.mxu0 %v5661
    %5736 = vmatpush1.msra.mxu0 %v5660
    %5737 = vmatprep.subr.mxu0 %v5663
    %5738 = vmatpush1.msra.mxu0 %v5662
    %5739 = vmatprep.subr.mxu0 %v5665
    %5740 = vmatpush1.msra.mxu0 %v5664
    %5741 = vmatprep.subr.mxu0 %v5667
    %5742 = vmatpush1.msra.mxu0 %v5666
    %5743 = vmatprep.subr.mxu0 %v5669
    %5744 = vmatpush1.msra.mxu0 %v5668
    %5745 = vmatprep.subr.mxu0 %v5671
    %5746 = vmatpush1.msra.mxu0 %v5670
    %5747 = vmatprep.subr.mxu0 %v5673
    %5748 = vmatpush1.msra.mxu0 %v5672
    %5749 = vmatprep.subr.mxu0 %v5675
    %5750 = vmatpush1.msra.mxu0 %v5674
    %5751 = vmatprep.subr.mxu0 %v5677
    %5752 = vmatpush1.msra.mxu0 %v5676
    %5753 = vmatprep.subr.mxu0 %v5679
    %5754 = vmatpush1.msra.mxu0 %v5678
    %5755 = vmatprep.subr.mxu0 %v5681
    %5756 = vmatpush1.msra.mxu0 %v5680
    %5757 = vmatprep.subr.mxu0 %v5683
    %5758 = vmatpush1.msra.mxu0 %v5682
    %5759 = vmatprep.subr.mxu0 %v5685
    %5760 = vmatpush1.msra.mxu0 %v5684
    %5761 = vmatprep.subr.mxu0 %v5687
    %5762 = vmatpush1.msra.mxu0 %v5686
    %5763 = vmatprep.subr.mxu0 %v5689
    %5764 = vmatpush1.msra.mxu0 %v5688
    %5765 = vmatprep.mubr.f32.mxu0 %v5582
    %5766 = vmatmul.mubr.f32.gmra.mrb[0].mxu0 %v5580
    %v5767 = vpop.f32.mrb[0].mxu0
    %v5768 = vadd.f32 0.0, %v5767
    %v5769 = vpop.f32.mrb[0].mxu0
    %v5770 = vadd.f32 0.0, %v5769
    %5771 = vdwg.mxu0
    %5772 = vmatprep.subr.mxu0 %v5691
    %5773 = vmatpush1.msra.mxu0 %v5690
    %5774 = vmatprep.subr.mxu0 %v5693
    %5775 = vmatpush1.msra.mxu0 %v5692
    %5776 = vmatprep.subr.mxu0 %v5695
    %5777 = vmatpush1.msra.mxu0 %v5694
    %5778 = vmatprep.subr.mxu0 %v5697
    %5779 = vmatpush1.msra.mxu0 %v5696
    %5780 = vmatprep.subr.mxu0 0.0
    %5781 = vmatpush1.msra.mxu0 0.0
    %5782 = vmatprep.subr.mxu0 0.0
    %5783 = vmatpush1.msra.mxu0 0.0
    %5784 = vmatprep.subr.mxu0 0.0
    %5785 = vmatpush1.msra.mxu0 0.0
    %5786 = vmatprep.subr.mxu0 0.0
    %5787 = vmatpush1.msra.mxu0 0.0
    %5788 = vmatprep.subr.mxu0 0.0
    %5789 = vmatpush1.msra.mxu0 0.0
    %5790 = vmatprep.subr.mxu0 0.0
    %5791 = vmatpush1.msra.mxu0 0.0
    %5792 = vmatprep.subr.mxu0 0.0
    %5793 = vmatpush1.msra.mxu0 0.0
    %5794 = vmatprep.subr.mxu0 0.0
    %5795 = vmatpush1.msra.mxu0 0.0
    %5796 = vmatprep.subr.mxu0 0.0
    %5797 = vmatpush1.msra.mxu0 0.0
    %5798 = vmatprep.subr.mxu0 0.0
    %5799 = vmatpush1.msra.mxu0 0.0
    %5800 = vmatprep.subr.mxu0 0.0
    %5801 = vmatpush1.msra.mxu0 0.0
    %5802 = vmatprep.subr.mxu0 0.0
    %5803 = vmatpush1.msra.mxu0 0.0
    %5804 = vmatprep.subr.mxu0 0.0
    %5805 = vmatpush1.msra.mxu0 0.0
    %5806 = vmatprep.subr.mxu0 0.0
    %5807 = vmatpush1.msra.mxu0 0.0
    %5808 = vmatprep.subr.mxu0 0.0
    %5809 = vmatpush1.msra.mxu0 0.0
    %5810 = vmatprep.subr.mxu0 0.0
    %5811 = vmatpush1.msra.mxu0 0.0
    %5812 = vmatprep.subr.mxu0 0.0
    %5813 = vmatpush1.msra.mxu0 0.0
    %5814 = vmatprep.subr.mxu0 0.0
    %5815 = vmatpush1.msra.mxu0 0.0
    %5816 = vmatprep.subr.mxu0 0.0
    %5817 = vmatpush1.msra.mxu0 0.0
    %5818 = vmatprep.subr.mxu0 0.0
    %5819 = vmatpush1.msra.mxu0 0.0
    %5820 = vmatprep.subr.mxu0 0.0
    %5821 = vmatpush1.msra.mxu0 0.0
    %5822 = vmatprep.subr.mxu0 0.0
    %5823 = vmatpush1.msra.mxu0 0.0
    %5824 = vmatprep.subr.mxu0 0.0
    %5825 = vmatpush1.msra.mxu0 0.0
    %5826 = vmatprep.subr.mxu0 0.0
    %5827 = vmatpush1.msra.mxu0 0.0
    %5828 = vmatprep.subr.mxu0 0.0
    %5829 = vmatpush1.msra.mxu0 0.0
    %5830 = vmatprep.subr.mxu0 0.0
    %5831 = vmatpush1.msra.mxu0 0.0
    %5832 = vmatprep.subr.mxu0 0.0
    %5833 = vmatpush1.msra.mxu0 0.0
    %5834 = vmatprep.subr.mxu0 0.0
    %5835 = vmatpush1.msra.mxu0 0.0
    %5836 = vmatprep.mubr.f32.mxu0 0.0
    %5837 = vmatmul.mubr.f32.gmra.mrb[0].mxu0 %v5699
    %v5838 = vpop.f32.mrb[0].mxu0
    %v5839 = vadd.f32 %v5768, %v5838
    %v5840 = vpop.f32.mrb[0].mxu0
    %v5841 = vadd.f32 %v5770, %v5840
    %5842 = vdwg.mxu0
    %v5843 = vrcp.pop %v5383
    %v5844 = vmul.f32 %v5839, %v5843
    %v5845 = vmul.f32 %v5841, %v5843
    %v5846 = vld [vmem:[%s5] sm:$0x3]
    %v5848 = vlaneseq
    %v5849 = vshrl.u32 %v5848, 7
    %v5850 = vsub.s32 0, %v5849
    %v5851 = vrot.slane %v5846, %v5850
    %v5852 = vlaneseq
    %v5853 = vshrl.u32 %v5852, 7
    %v5854 = vsub.s32 1, %v5853
    %v5855 = vrot.slane %v5846, %v5854
    %v5858 = vadd.f32 %v5844, %v5851
    %v5859 = vadd.f32 %v5845, %v5855
    %v5860 = vmul.f32 %v5858, %v5858
    %v5861 = vmul.f32 %v5859, %v5859
    %v5862 = vsel %vm5380, %v5860, 0.0
    %v5863 = vsel %vm5380, %v5861, 0.0
    %v5864 = vadd.f32 %v5862, %v5863
    %5865 = vadd.xlane.f32.xlu0 %v5864
    %v5866 = vpop.xlane.xlu0 %5865
    %v5867 = vrsqrt.pop %v5866
    %v5868 = vmul.f32 %v5866, %v5867
    %vm5869 = vcmp.eq.f32.partialorder %v5866, inf
    %v5870 = vsel %vm5869, %v5866, %v5868
    %vm5871 = vcmp.eq.f32.partialorder %v5866, 0.0
    %v5872 = vand.u32 %v5866, 2147483648
    %v5873 = vsel %vm5871, %v5872, %v5870
    %v5874 = vmax.f32 %v5873, 1e-12
    %v5875 = vrcp.pop %v5874
    %v5876 = vmul.f32 %v5858, %v5875
    %v5877 = vmul.f32 %v5859, %v5875
    %v5878 = vld [vmem:[%s7] sm:$0xff]
    %v5879 = vld [vmem:[%s7 + $0x8] sm:$0xff]
    %v5880 = vld [vmem:[%s8] sm:$0xff]
    %v5881 = vld [vmem:[%s8 + $0x8] sm:$0xff]
    %v5882 = vmul.f32 %v5878, %v5878
    %v5883 = vmul.f32 %v5879, %v5879
    %v5884 = vadd.f32 %v5882, %v5883
    %5885 = vadd.xlane.f32.xlu0 %v5884
    %v5886 = vpop.xlane.xlu0 %5885
    %v5887 = vrsqrt.pop %v5886
    %v5888 = vmul.f32 %v5886, %v5887
    %vm5889 = vcmp.eq.f32.partialorder %v5886, inf
    %v5890 = vsel %vm5889, %v5886, %v5888
    %vm5891 = vcmp.eq.f32.partialorder %v5886, 0.0
    %v5892 = vand.u32 %v5886, 2147483648
    %v5893 = vsel %vm5891, %v5892, %v5890
    %v5894 = vmax.f32 %v5893, 1e-12
    %v5895 = vrcp.pop %v5894
    %v5896 = vmul.f32 %v5878, %v5895
    %v5897 = vmul.f32 %v5879, %v5895
    %v5898 = vmul.f32 %v5880, %v5880
    %v5899 = vmul.f32 %v5881, %v5881
    %v5900 = vadd.f32 %v5898, %v5899
    %5901 = vadd.xlane.f32.xlu0 %v5900
    %v5902 = vpop.xlane.xlu0 %5901
    %v5903 = vrsqrt.pop %v5902
    %v5904 = vmul.f32 %v5902, %v5903
    %vm5905 = vcmp.eq.f32.partialorder %v5902, inf
    %v5906 = vsel %vm5905, %v5902, %v5904
    %vm5907 = vcmp.eq.f32.partialorder %v5902, 0.0
    %v5908 = vand.u32 %v5902, 2147483648
    %v5909 = vsel %vm5907, %v5908, %v5906
    %v5910 = vmax.f32 %v5909, 1e-12
    %v5911 = vrcp.pop %v5910
    %v5912 = vmul.f32 %v5880, %v5911
    %v5913 = vmul.f32 %v5881, %v5911
    %v5914 = vlaneseq
    %v5915 = vshrl.u32 %v5914, 7
    %v5916 = vsub.s32 0, %v5915
    %v5917 = vrot.slane %v5876, %v5916
    %v5918 = vlaneseq
    %v5919 = vshrl.u32 %v5918, 7
    %v5920 = vsub.s32 0, %v5919
    %v5921 = vrot.slane %v5877, %v5920
    %v5922 = vmul.f32 %v5896, %v5917
    %v5923 = vmul.f32 %v5897, %v5921
    %v5924 = vadd.f32 %v5922, %v5923
    %5925 = vadd.xlane.f32.xlu0 %v5924
    %v5926 = vpop.xlane.xlu0 %5925
    %v5927 = vmul.f32 %v5912, %v5917
    %v5928 = vmul.f32 %v5913, %v5921
    %v5929 = vadd.f32 %v5927, %v5928
    %5930 = vadd.xlane.f32.xlu0 %v5929
    %v5931 = vpop.xlane.xlu0 %5930
    %v5932 = vrot.slane %v5926, 4
    %v5933 = vadd.f32 %v5926, %v5932
    %v5934 = vrot.slane %v5933, 2
    %v5935 = vadd.f32 %v5933, %v5934
    %v5936 = vrot.slane %v5935, 1
    %v5937 = vadd.f32 %v5935, %v5936
    %v5938 = vrcp.pop 8.0
    %v5939 = vmul.f32 %v5937, %v5938
    %v5940 = vrcp.pop 0.1
    %v5941 = vmul.f32 %v5939, %v5940
    %v5942 = vmul.f32 %v5931, %v5940
    %v5943 = vrot.slane %v5942, 4
    %v5944 = vmax.f32 %v5942, %v5943
    %v5945 = vrot.slane %v5944, 2
    %v5946 = vmax.f32 %v5944, %v5945
    %v5947 = vrot.slane %v5946, 1
    %v5948 = vmax.f32 %v5946, %v5947
    %v5949 = vmax.f32 %v5941, %v5948
    %v5950 = vsub.f32 %v5941, %v5949
    %v5951 = vmul.f32 %v5950, 1.442695
    %v5952 = vpow.pop %v5951
    %v5953 = vsub.f32 %v5942, %v5949
    %v5954 = vmul.f32 %v5953, 1.442695
    %v5955 = vpow.pop %v5954
    %v5956 = vrot.slane %v5955, 4
    %v5957 = vadd.f32 %v5955, %v5956
    %v5958 = vrot.slane %v5957, 2
    %v5959 = vadd.f32 %v5957, %v5958
    %v5960 = vrot.slane %v5959, 1
    %v5961 = vadd.f32 %v5959, %v5960
    %v5962 = vadd.f32 %v5952, %v5961
    %v5963 = vlog2.pop %v5962
    %v5964 = vmul.f32 %v5963, 0.6931472
    %v5965 = vadd.f32 %v5949, %v5964
    %v5966 = vsub.f32 %v5965, %v5941
    %vm5967 = vcmask 0
    %5968 = vst.msk [vmem:[#allocation4] sm:$0x1] %vm5967, %v5966
    // Predicated region
    $region38: #{contrastive_loss_module.1} parent=1 // pred_check
      _
    $region39: #{contrastive_loss_module.1} parent=1 // pred_check_branch
      %5970 = sbr.rel (0) target = $region41
    $region40: #{contrastive_loss_module.1} parent=1 // pred_region
      %s5972 = ssub.s32 16, 16
      %5973 = vsyncadd [#allocation5], %s5972
      %s5975 = sshll.u32 [#allocation4], 4
      %s5976 = int_to_ptr.vmem [resolvable:$true] %s5975
      %5978 = dma.vmem_to_hbm [thread:$0]  %s5976, 16, %s9, [#allocation5]
    $region41: #{contrastive_loss_module.1} parent=1 // pred_fallthru
      _
    // Predicated region
    $region42: #{contrastive_loss_module.1} parent=1 // pred_check
      _
    $region43: #{contrastive_loss_module.1} parent=1 // pred_check_branch
      %5980 = sbr.rel (0) target = $region45
    $region44: #{contrastive_loss_module.1} parent=1 // pred_region
      %5981 = dma.done [#allocation5], 16
    $region45: #{contrastive_loss_module.1} parent=1 // pred_fallthru
      _
    %5982 = vsyncpa [#allocation5], 1

</llo_original>
